<compile_context>
chip_gen: v7x
topology: tpu7x:2x2x1
jax: 0.10.0
libtpu: 0.0.40
codegen_flags: <defaults>
</compile_context>

<pallas_src>
import functools

import numpy as np
import jax
import jax.numpy as jnp
from jax.experimental import pallas as pl
from jax.experimental.pallas import tpu as pltpu


N_PAD = 128            # lane-dense logits width (valid logits sliced in the wrapper)
H1, W1 = 7, 5          # conv1 output spatial (pad=1 keeps 7x5)
H2, W2 = 5, 3          # conv2 output spatial (pad=0 -> 5x3)
C1, C2 = 32, 64        # conv output channels
ROW1 = C1 * W1         # 160 lanes per conv1 output row, (c, x) order
ROW2 = C2 * W2         # 192 lanes per conv2 output row, (c, x) order


# -----------------------------------------------------------------------------
# Fused kernel: one batch-block (BM rows) of the whole network per grid step.
# -----------------------------------------------------------------------------
def _policy_kernel(x0_ref, vf_ref,
                   w1_ref, b1_ref, w2_ref, b2_ref,
                   wf_ref, bf_ref,
                   wh1a_ref, wh1b_ref, bh1_ref,
                   wh2_ref, bh2_ref,
                   o_ref):
    def mm(x, w):
        # bf16 MXU operands, f32 accumulation.
        return jnp.dot(x, w, preferred_element_type=jnp.float32)

    # conv1 as one dense matmul over the NCHW-flat input; output lanes in (y, c, x) order.
    h1 = jnp.maximum(mm(x0_ref[...], w1_ref[...]) + b1_ref[...], 0.0)      # (BM, 1120) f32
    h1 = h1.astype(jnp.bfloat16)

    # fc_vec branch.
    v = jnp.maximum(mm(vf_ref[...], wf_ref[...]) + bf_ref[...], 0.0)       # (BM, 64) f32

    # head[0] accumulator: fc_vec contribution + bias (the concat is folded away).
    h3 = mm(v.astype(jnp.bfloat16), wh1b_ref[...]) + bh1_ref[...]          # (BM, 128) f32

    # conv2 one output row at a time (shared 480x192 width-Toeplitz weight); each row
    # is fed straight into head[0] via its pre-permuted 192x128 weight slice.
    for y in range(H2):
        win = h1[:, y * ROW1:(y + 3) * ROW1]                               # (BM, 480) bf16
        row = jnp.maximum(mm(win, w2_ref[...]) + b2_ref[...], 0.0)         # (BM, 192) f32
        h3 = h3 + mm(row.astype(jnp.bfloat16), wh1a_ref[y])                # (BM, 128) f32

    h3 = jnp.maximum(h3, 0.0)

    # head[2]: lane-dense (zero-padded to 128) logits.
    o_ref[...] = (mm(h3.astype(jnp.bfloat16), wh2_ref[...])
                  + bh2_ref[...]).astype(o_ref.dtype)                      # (BM, 128)


# -----------------------------------------------------------------------------
# Wrapper: batch-tiled grid, constant-index weight blocks, true-FLOP cost estimate.
# -----------------------------------------------------------------------------
@functools.partial(jax.jit, static_argnums=3)
def policy_net_forward(prep, vc, vf, n_actions):
    """vc: (B, 8*history_len, 7, 5), vf: (B, 8*history_len) -> logits (B, n_actions)."""
    B = vc.shape[0]
    x0 = vc.reshape(B, -1).astype(jnp.bfloat16)      # NCHW flatten
    vfb = vf.astype(jnp.bfloat16)

    BM = 256 if B >= 256 else 128                    # rows per grid step (MXU tile height)
    Bp = ((B + BM - 1) // BM) * BM
    if Bp != B:
        x0 = jnp.pad(x0, ((0, Bp - B), (0, 0)))
        vfb = jnp.pad(vfb, ((0, Bp - B), (0, 0)))

    weights = (prep["w1"], prep["b1"], prep["w2"], prep["b2"],
               prep["wf"], prep["bf"],
               prep["wh1a"], prep["wh1b"], prep["bh1"],
               prep["wh2"], prep["bh2"])
    args = (x0, vfb) + weights

    def const_spec(a):
        # Full-array block, constant block index -> DMA'd once, reused by all grid steps.
        return pl.BlockSpec(a.shape, lambda i, nd=a.ndim: (0,) * nd)

    in_specs = ([pl.BlockSpec((BM, x0.shape[1]), lambda i: (i, 0)),
                 pl.BlockSpec((BM, vfb.shape[1]), lambda i: (i, 0))]
                + [const_spec(w) for w in weights])
    out_spec = pl.BlockSpec((BM, N_PAD), lambda i: (i, 0))

    in_ch = vc.shape[1]
    vf_dim = vf.shape[1]
    per_row_flops = 2 * (C1 * H1 * W1 * in_ch * 9        # conv1 (true flops)
                         + C2 * H2 * W2 * C1 * 9          # conv2 (true flops)
                         + vf_dim * 64                    # fc_vec
                         + (C2 * H2 * W2 + 64) * 128      # head[0]
                         + 128 * n_actions)               # head[2]
    bytes_accessed = sum(int(np.prod(a.shape)) * a.dtype.itemsize for a in args)
    bytes_accessed += Bp * N_PAD * 4

    out = pl.pallas_call(
        _policy_kernel,
        out_shape=jax.ShapeDtypeStruct((Bp, N_PAD), jnp.float32),
        grid=(Bp // BM,),
        in_specs=in_specs,
        out_specs=out_spec,
        compiler_params=pltpu.CompilerParams(
            dimension_semantics=("parallel",),
            vmem_limit_bytes=32 * 1024 * 1024),
        cost_estimate=pl.CostEstimate(flops=Bp * per_row_flops, transcendentals=0,
                                      bytes_accessed=bytes_accessed),
    )(*args)
    return out[:B, :n_actions]


# -----------------------------------------------------------------------------
# One-time parameter preparation (all plumbing hoisted out of the forward path).
# -----------------------------------------------------------------------------
def _conv1_dense_ycx(w, H, W, pad):
    """(Cout, Cin, 3, 3) stride-1 conv weight -> dense (Cin*H*W, Ho*Cout*Wo) matrix
    mapping the NCHW-flat input to a (y, c, x)-ordered flat output."""
    w = np.asarray(w, np.float32)
    Cout, Cin, kh, kw = w.shape
    Ho, Wo = H + 2 * pad - kh + 1, W + 2 * pad - kw + 1
    M = np.zeros((Cin, H, W, Ho, Cout, Wo), np.float32)
    for dy in range(kh):
        for dx in range(kw):
            wt = w[:, :, dy, dx].T                       # (Cin, Cout)
            for y in range(Ho):
                iy = y + dy - pad
                if iy < 0 or iy >= H:
                    continue
                for x in range(Wo):
                    ix = x + dx - pad
                    if ix < 0 or ix >= W:
                        continue
                    M[:, iy, ix, y, :, x] = wt
    return M.reshape(Cin * H * W, Ho * Cout * Wo)


def _conv2_row_weight(w):
    """(Cout, Cin, 3, 3) pad=0 conv weight -> (3*Cin*W1, Cout*W2) width-Toeplitz so that
    conv2 output row y (lanes in (c, x) order) = h1[:, y*ROW1:(y+3)*ROW1] @ M."""
    w = np.asarray(w, np.float32)
    Cout, Cin, kh, kw = w.shape
    M = np.zeros((kh, Cin, W1, Cout, W2), np.float32)
    for dy in range(kh):
        for dx in range(kw):
            wt = w[:, :, dy, dx].T                       # (Cin, Cout)
            for xo in range(W2):
                M[dy, :, xo + dx, :, xo] = wt
    return M.reshape(kh * Cin * W1, Cout * W2)           # (480, 192)


def init_params(key, n_actions, history_len=1):
    """Raw PyTorch-layout params mirroring PolicyNet.__init__
    (orthogonal, gain=sqrt(2), zero bias)."""
    in_ch = 8 * history_len
    vf_dim = 8 * history_len
    conv_out_dim = C2 * H2 * W2          # 960
    ortho = jax.nn.initializers.orthogonal(scale=float(np.sqrt(2.0)))
    ks = jax.random.split(key, 5)
    return {
        "conv1_w": ortho(ks[0], (C1, in_ch * 9), jnp.float32).reshape(C1, in_ch, 3, 3),
        "conv1_b": jnp.zeros((C1,), jnp.float32),
        "conv2_w": ortho(ks[1], (C2, C1 * 9), jnp.float32).reshape(C2, C1, 3, 3),
        "conv2_b": jnp.zeros((C2,), jnp.float32),
        "fcv_w": ortho(ks[2], (64, vf_dim), jnp.float32),   # (out, in) like nn.Linear
        "fcv_b": jnp.zeros((64,), jnp.float32),
        "head1_w": ortho(ks[3], (128, conv_out_dim + 64), jnp.float32),
        "head1_b": jnp.zeros((128,), jnp.float32),
        "head2_w": ortho(ks[4], (n_actions, 128), jnp.float32),
        "head2_b": jnp.zeros((n_actions,), jnp.float32),
    }


def prepare_params(raw, n_actions):
    """Kernel-ready params: conv->matmul lowering, head1 row permutation, bias expansion,
    lane padding of head2, bf16 casts of all matmul weights."""
    assert n_actions <= N_PAD
    conv_out_dim = C2 * H2 * W2                                  # 960

    w1 = _conv1_dense_ycx(raw["conv1_w"], H1, W1, pad=1)         # (in_ch*35, 1120)
    b1 = np.tile(np.repeat(np.asarray(raw["conv1_b"]), W1), H1)  # (1120,), (y,c,x) order
    w2 = _conv2_row_weight(raw["conv2_w"])                       # (480, 192)
    b2 = np.repeat(np.asarray(raw["conv2_b"]), W2)               # (192,),  (c,x) order

    wh1 = np.asarray(raw["head1_w"]).T                           # (1024, 128)
    # Conv part of head1: permute rows from PyTorch (c, y, x) flatten order into
    # per-output-row blocks of (c, x) order -> (5, 192, 128).
    wh1a = (wh1[:conv_out_dim].reshape(C2, H2, W2, 128)
            .transpose(1, 0, 2, 3).reshape(H2, ROW2, 128))
    wh1b = wh1[conv_out_dim:]                                    # (64, 128)

    wh2 = np.zeros((128, N_PAD), np.float32)
    wh2[:, :n_actions] = np.asarray(raw["head2_w"]).T
    bh2 = np.zeros((N_PAD,), np.float32)
    bh2[:n_actions] = np.asarray(raw["head2_b"])

    bf16 = lambda a: jnp.asarray(a, jnp.bfloat16)
    f32row = lambda a: jnp.asarray(a, jnp.float32).reshape(1, -1)
    return {
        "w1": bf16(w1), "b1": f32row(b1),
        "w2": bf16(w2), "b2": f32row(b2),
        "wf": bf16(np.asarray(raw["fcv_w"]).T), "bf": f32row(raw["fcv_b"]),
        "wh1a": bf16(wh1a), "wh1b": bf16(wh1b), "bh1": f32row(raw["head1_b"]),
        "wh2": bf16(wh2), "bh2": f32row(bh2),
    }


# -----------------------------------------------------------------------------
# Pure-JAX f32 reference (validation only).
# -----------------------------------------------------------------------------
def reference_forward(raw, vc, vf):
    dn = ("NCHW", "OIHW", "NCHW")
    h = jax.lax.conv_general_dilated(vc, raw["conv1_w"], (1, 1), ((1, 1), (1, 1)),
                                     dimension_numbers=dn)
    h = jax.nn.relu(h + raw["conv1_b"][None, :, None, None])
    h = jax.lax.conv_general_dilated(h, raw["conv2_w"], (1, 1), ((0, 0), (0, 0)),
                                     dimension_numbers=dn)
    h = jax.nn.relu(h + raw["conv2_b"][None, :, None, None])
    x1 = h.reshape(h.shape[0], -1)
    x2 = jax.nn.relu(vf @ raw["fcv_w"].T + raw["fcv_b"])
    x = jnp.concatenate([x1, x2], axis=1)
    h = jax.nn.relu(x @ raw["head1_w"].T + raw["head1_b"])
    return h @ raw["head2_w"].T + raw["head2_b"]


if __name__ == "__main__":
    key = jax.random.PRNGKey(0)
    kp, kvc, kvf = jax.random.split(key, 3)
    n_actions = 6
    history_len = 1

    raw = init_params(kp, n_actions, history_len)
    prep = prepare_params(raw, n_actions)

    # B=2: rollout-style tiny batch (grid=1).  B=200: exercises row padding + grid=2.
    for B in (2, 200):
        vc = jax.random.normal(jax.random.fold_in(kvc, B),
                               (B, 8 * history_len, 7, 5), jnp.float32)
        vf = jax.random.normal(jax.random.fold_in(kvf, B),
                               (B, 8 * history_len), jnp.float32)

        logits = policy_net_forward(prep, vc, vf, n_actions)
        jax.block_until_ready(logits)
        assert logits.shape == (B, n_actions)
        assert logits.dtype == jnp.float32

        # Validate against the pure-JAX f32 reference (kernel uses bf16 MXU operands with
        # f32 accumulation, so a small numerical difference is expected).
        ref = reference_forward(raw, vc, vf)
        max_err = float(jnp.max(jnp.abs(logits - ref)))
        assert max_err < 0.2, f"B={B}: max |kernel - reference| = {max_err}"

    print("KERNEL_OK")
</pallas_src>

<mosaic_0001>
module attributes {stable_mosaic.version = 11 : i64} {
  func.func @_policy_kernel(%arg0: i32, %arg1: memref<128x280xbf16, #tpu.memory_space<vmem>>, %arg2: memref<128x8xbf16, #tpu.memory_space<vmem>>, %arg3: memref<280x1120xbf16, #tpu.memory_space<vmem>>, %arg4: memref<1x1120xf32, #tpu.memory_space<vmem>>, %arg5: memref<480x192xbf16, #tpu.memory_space<vmem>>, %arg6: memref<1x192xf32, #tpu.memory_space<vmem>>, %arg7: memref<8x64xbf16, #tpu.memory_space<vmem>>, %arg8: memref<1x64xf32, #tpu.memory_space<vmem>>, %arg9: memref<5x192x128xbf16, #tpu.memory_space<vmem>>, %arg10: memref<64x128xbf16, #tpu.memory_space<vmem>>, %arg11: memref<1x128xf32, #tpu.memory_space<vmem>>, %arg12: memref<128x128xbf16, #tpu.memory_space<vmem>>, %arg13: memref<1x128xf32, #tpu.memory_space<vmem>>, %arg14: memref<128x128xf32, #tpu.memory_space<vmem>>) attributes {dimension_semantics = [#tpu.dimension_semantics<parallel>], iteration_bounds = array<i64: 1>, scalar_prefetch = 0 : i64, scratch_operands = 0 : i64, tpu.core_type = #tpu.core_type<tc>, window_params = [{transform_indices = @transform_0, window_bounds = array<i64: 128, 280>}, {transform_indices = @transform_1, window_bounds = array<i64: 128, 8>}, {pipeline_mode = #tpu.pipeline_mode<synchronous>, transform_indices = @transform_2, window_bounds = array<i64: 280, 1120>}, {pipeline_mode = #tpu.pipeline_mode<synchronous>, transform_indices = @transform_3, window_bounds = array<i64: 1, 1120>}, {pipeline_mode = #tpu.pipeline_mode<synchronous>, transform_indices = @transform_4, window_bounds = array<i64: 480, 192>}, {pipeline_mode = #tpu.pipeline_mode<synchronous>, transform_indices = @transform_5, window_bounds = array<i64: 1, 192>}, {pipeline_mode = #tpu.pipeline_mode<synchronous>, transform_indices = @transform_6, window_bounds = array<i64: 8, 64>}, {pipeline_mode = #tpu.pipeline_mode<synchronous>, transform_indices = @transform_7, window_bounds = array<i64: 1, 64>}, {pipeline_mode = #tpu.pipeline_mode<synchronous>, transform_indices = @transform_8, window_bounds = array<i64: 5, 192, 128>}, {pipeline_mode = #tpu.pipeline_mode<synchronous>, transform_indices = @transform_9, window_bounds = array<i64: 64, 128>}, {pipeline_mode = #tpu.pipeline_mode<synchronous>, transform_indices = @transform_10, window_bounds = array<i64: 1, 128>}, {pipeline_mode = #tpu.pipeline_mode<synchronous>, transform_indices = @transform_11, window_bounds = array<i64: 128, 128>}, {pipeline_mode = #tpu.pipeline_mode<synchronous>, transform_indices = @transform_12, window_bounds = array<i64: 1, 128>}, {transform_indices = @transform_13, window_bounds = array<i64: 128, 128>}]} {
    %c0 = arith.constant 0 : index
    %c0_0 = arith.constant 0 : index
    %0 = vector.load %arg1[%c0, %c0_0] : memref<128x280xbf16, #tpu.memory_space<vmem>>, vector<128x280xbf16>
    %c0_1 = arith.constant 0 : index
    %c0_2 = arith.constant 0 : index
    %1 = vector.load %arg3[%c0_1, %c0_2] : memref<280x1120xbf16, #tpu.memory_space<vmem>>, vector<280x1120xbf16>
    %cst = arith.constant dense<0.000000e+00> : vector<128x1120xf32>
    %2 = tpu.matmul %0, %1, %cst {dimension_numbers = #tpu.dot_dimension_numbers<[1], [0], [0], [1], [0, 0, 1, 1], [], []>} : vector<128x280xbf16>, vector<280x1120xbf16>, vector<128x1120xf32> -> vector<128x1120xf32>
    %c0_3 = arith.constant 0 : index
    %c0_4 = arith.constant 0 : index
    %3 = vector.load %arg4[%c0_3, %c0_4] : memref<1x1120xf32, #tpu.memory_space<vmem>>, vector<1x1120xf32>
    %4 = vector.broadcast %3 : vector<1x1120xf32> to vector<128x1120xf32>
    %5 = arith.addf %2, %4 : vector<128x1120xf32>
    %cst_5 = arith.constant 0.000000e+00 : f32
    %6 = vector.broadcast %cst_5 : f32 to vector<128x1120xf32>
    %7 = arith.maximumf %5, %6 : vector<128x1120xf32>
    %8 = arith.truncf %7 : vector<128x1120xf32> to vector<128x1120xbf16>
    %c0_6 = arith.constant 0 : index
    %c0_7 = arith.constant 0 : index
    %9 = vector.load %arg2[%c0_6, %c0_7] : memref<128x8xbf16, #tpu.memory_space<vmem>>, vector<128x8xbf16>
    %c0_8 = arith.constant 0 : index
    %c0_9 = arith.constant 0 : index
    %10 = vector.load %arg7[%c0_8, %c0_9] : memref<8x64xbf16, #tpu.memory_space<vmem>>, vector<8x64xbf16>
    %cst_10 = arith.constant dense<0.000000e+00> : vector<128x64xf32>
    %11 = tpu.matmul %9, %10, %cst_10 {dimension_numbers = #tpu.dot_dimension_numbers<[1], [0], [0], [1], [0, 0, 1, 1], [], []>} : vector<128x8xbf16>, vector<8x64xbf16>, vector<128x64xf32> -> vector<128x64xf32>
    %c0_11 = arith.constant 0 : index
    %c0_12 = arith.constant 0 : index
    %12 = vector.load %arg8[%c0_11, %c0_12] : memref<1x64xf32, #tpu.memory_space<vmem>>, vector<1x64xf32>
    %13 = vector.broadcast %12 : vector<1x64xf32> to vector<128x64xf32>
    %14 = arith.addf %11, %13 : vector<128x64xf32>
    %cst_13 = arith.constant 0.000000e+00 : f32
    %15 = vector.broadcast %cst_13 : f32 to vector<128x64xf32>
    %16 = arith.maximumf %14, %15 : vector<128x64xf32>
    %17 = arith.truncf %16 : vector<128x64xf32> to vector<128x64xbf16>
    %c0_14 = arith.constant 0 : index
    %c0_15 = arith.constant 0 : index
    %18 = vector.load %arg10[%c0_14, %c0_15] : memref<64x128xbf16, #tpu.memory_space<vmem>>, vector<64x128xbf16>
    %cst_16 = arith.constant dense<0.000000e+00> : vector<128x128xf32>
    %19 = tpu.matmul %17, %18, %cst_16 {dimension_numbers = #tpu.dot_dimension_numbers<[1], [0], [0], [1], [0, 0, 1, 1], [], []>} : vector<128x64xbf16>, vector<64x128xbf16>, vector<128x128xf32> -> vector<128x128xf32>
    %c0_17 = arith.constant 0 : index
    %c0_18 = arith.constant 0 : index
    %20 = vector.load %arg11[%c0_17, %c0_18] : memref<1x128xf32, #tpu.memory_space<vmem>>, vector<1x128xf32>
    %21 = vector.broadcast %20 : vector<1x128xf32> to vector<128x128xf32>
    %22 = arith.addf %19, %21 : vector<128x128xf32>
    %23 = vector.extract_strided_slice %8 {offsets = [0, 0], sizes = [128, 480], strides = [1, 1]} : vector<128x1120xbf16> to vector<128x480xbf16>
    %c0_19 = arith.constant 0 : index
    %c0_20 = arith.constant 0 : index
    %24 = vector.load %arg5[%c0_19, %c0_20] : memref<480x192xbf16, #tpu.memory_space<vmem>>, vector<480x192xbf16>
    %cst_21 = arith.constant dense<0.000000e+00> : vector<128x192xf32>
    %25 = tpu.matmul %23, %24, %cst_21 {dimension_numbers = #tpu.dot_dimension_numbers<[1], [0], [0], [1], [0, 0, 1, 1], [], []>} : vector<128x480xbf16>, vector<480x192xbf16>, vector<128x192xf32> -> vector<128x192xf32>
    %c0_22 = arith.constant 0 : index
    %c0_23 = arith.constant 0 : index
    %26 = vector.load %arg6[%c0_22, %c0_23] : memref<1x192xf32, #tpu.memory_space<vmem>>, vector<1x192xf32>
    %27 = vector.broadcast %26 : vector<1x192xf32> to vector<128x192xf32>
    %28 = arith.addf %25, %27 : vector<128x192xf32>
    %cst_24 = arith.constant 0.000000e+00 : f32
    %29 = vector.broadcast %cst_24 : f32 to vector<128x192xf32>
    %30 = arith.maximumf %28, %29 : vector<128x192xf32>
    %31 = arith.truncf %30 : vector<128x192xf32> to vector<128x192xbf16>
    %c0_25 = arith.constant 0 : index
    %c0_26 = arith.constant 0 : index
    %c0_27 = arith.constant 0 : index
    %32 = vector.load %arg9[%c0_25, %c0_26, %c0_27] : memref<5x192x128xbf16, #tpu.memory_space<vmem>>, vector<1x192x128xbf16>
    %33 = vector.shape_cast %32 : vector<1x192x128xbf16> to vector<192x128xbf16>
    %cst_28 = arith.constant dense<0.000000e+00> : vector<128x128xf32>
    %34 = tpu.matmul %31, %33, %cst_28 {dimension_numbers = #tpu.dot_dimension_numbers<[1], [0], [0], [1], [0, 0, 1, 1], [], []>} : vector<128x192xbf16>, vector<192x128xbf16>, vector<128x128xf32> -> vector<128x128xf32>
    %35 = arith.addf %22, %34 : vector<128x128xf32>
    %36 = vector.extract_strided_slice %8 {offsets = [0, 160], sizes = [128, 480], strides = [1, 1]} : vector<128x1120xbf16> to vector<128x480xbf16>
    %c0_29 = arith.constant 0 : index
    %c0_30 = arith.constant 0 : index
    %37 = vector.load %arg5[%c0_29, %c0_30] : memref<480x192xbf16, #tpu.memory_space<vmem>>, vector<480x192xbf16>
    %cst_31 = arith.constant dense<0.000000e+00> : vector<128x192xf32>
    %38 = tpu.matmul %36, %37, %cst_31 {dimension_numbers = #tpu.dot_dimension_numbers<[1], [0], [0], [1], [0, 0, 1, 1], [], []>} : vector<128x480xbf16>, vector<480x192xbf16>, vector<128x192xf32> -> vector<128x192xf32>
    %c0_32 = arith.constant 0 : index
    %c0_33 = arith.constant 0 : index
    %39 = vector.load %arg6[%c0_32, %c0_33] : memref<1x192xf32, #tpu.memory_space<vmem>>, vector<1x192xf32>
    %40 = vector.broadcast %39 : vector<1x192xf32> to vector<128x192xf32>
    %41 = arith.addf %38, %40 : vector<128x192xf32>
    %cst_34 = arith.constant 0.000000e+00 : f32
    %42 = vector.broadcast %cst_34 : f32 to vector<128x192xf32>
    %43 = arith.maximumf %41, %42 : vector<128x192xf32>
    %44 = arith.truncf %43 : vector<128x192xf32> to vector<128x192xbf16>
    %c1 = arith.constant 1 : index
    %c0_35 = arith.constant 0 : index
    %c0_36 = arith.constant 0 : index
    %45 = vector.load %arg9[%c1, %c0_35, %c0_36] : memref<5x192x128xbf16, #tpu.memory_space<vmem>>, vector<1x192x128xbf16>
    %46 = vector.shape_cast %45 : vector<1x192x128xbf16> to vector<192x128xbf16>
    %cst_37 = arith.constant dense<0.000000e+00> : vector<128x128xf32>
    %47 = tpu.matmul %44, %46, %cst_37 {dimension_numbers = #tpu.dot_dimension_numbers<[1], [0], [0], [1], [0, 0, 1, 1], [], []>} : vector<128x192xbf16>, vector<192x128xbf16>, vector<128x128xf32> -> vector<128x128xf32>
    %48 = arith.addf %35, %47 : vector<128x128xf32>
    %49 = vector.extract_strided_slice %8 {offsets = [0, 320], sizes = [128, 480], strides = [1, 1]} : vector<128x1120xbf16> to vector<128x480xbf16>
    %c0_38 = arith.constant 0 : index
    %c0_39 = arith.constant 0 : index
    %50 = vector.load %arg5[%c0_38, %c0_39] : memref<480x192xbf16, #tpu.memory_space<vmem>>, vector<480x192xbf16>
    %cst_40 = arith.constant dense<0.000000e+00> : vector<128x192xf32>
    %51 = tpu.matmul %49, %50, %cst_40 {dimension_numbers = #tpu.dot_dimension_numbers<[1], [0], [0], [1], [0, 0, 1, 1], [], []>} : vector<128x480xbf16>, vector<480x192xbf16>, vector<128x192xf32> -> vector<128x192xf32>
    %c0_41 = arith.constant 0 : index
    %c0_42 = arith.constant 0 : index
    %52 = vector.load %arg6[%c0_41, %c0_42] : memref<1x192xf32, #tpu.memory_space<vmem>>, vector<1x192xf32>
    %53 = vector.broadcast %52 : vector<1x192xf32> to vector<128x192xf32>
    %54 = arith.addf %51, %53 : vector<128x192xf32>
    %cst_43 = arith.constant 0.000000e+00 : f32
    %55 = vector.broadcast %cst_43 : f32 to vector<128x192xf32>
    %56 = arith.maximumf %54, %55 : vector<128x192xf32>
    %57 = arith.truncf %56 : vector<128x192xf32> to vector<128x192xbf16>
    %c2 = arith.constant 2 : index
    %c0_44 = arith.constant 0 : index
    %c0_45 = arith.constant 0 : index
    %58 = vector.load %arg9[%c2, %c0_44, %c0_45] : memref<5x192x128xbf16, #tpu.memory_space<vmem>>, vector<1x192x128xbf16>
    %59 = vector.shape_cast %58 : vector<1x192x128xbf16> to vector<192x128xbf16>
    %cst_46 = arith.constant dense<0.000000e+00> : vector<128x128xf32>
    %60 = tpu.matmul %57, %59, %cst_46 {dimension_numbers = #tpu.dot_dimension_numbers<[1], [0], [0], [1], [0, 0, 1, 1], [], []>} : vector<128x192xbf16>, vector<192x128xbf16>, vector<128x128xf32> -> vector<128x128xf32>
    %61 = arith.addf %48, %60 : vector<128x128xf32>
    %62 = vector.extract_strided_slice %8 {offsets = [0, 480], sizes = [128, 480], strides = [1, 1]} : vector<128x1120xbf16> to vector<128x480xbf16>
    %c0_47 = arith.constant 0 : index
    %c0_48 = arith.constant 0 : index
    %63 = vector.load %arg5[%c0_47, %c0_48] : memref<480x192xbf16, #tpu.memory_space<vmem>>, vector<480x192xbf16>
    %cst_49 = arith.constant dense<0.000000e+00> : vector<128x192xf32>
    %64 = tpu.matmul %62, %63, %cst_49 {dimension_numbers = #tpu.dot_dimension_numbers<[1], [0], [0], [1], [0, 0, 1, 1], [], []>} : vector<128x480xbf16>, vector<480x192xbf16>, vector<128x192xf32> -> vector<128x192xf32>
    %c0_50 = arith.constant 0 : index
    %c0_51 = arith.constant 0 : index
    %65 = vector.load %arg6[%c0_50, %c0_51] : memref<1x192xf32, #tpu.memory_space<vmem>>, vector<1x192xf32>
    %66 = vector.broadcast %65 : vector<1x192xf32> to vector<128x192xf32>
    %67 = arith.addf %64, %66 : vector<128x192xf32>
    %cst_52 = arith.constant 0.000000e+00 : f32
    %68 = vector.broadcast %cst_52 : f32 to vector<128x192xf32>
    %69 = arith.maximumf %67, %68 : vector<128x192xf32>
    %70 = arith.truncf %69 : vector<128x192xf32> to vector<128x192xbf16>
    %c3 = arith.constant 3 : index
    %c0_53 = arith.constant 0 : index
    %c0_54 = arith.constant 0 : index
    %71 = vector.load %arg9[%c3, %c0_53, %c0_54] : memref<5x192x128xbf16, #tpu.memory_space<vmem>>, vector<1x192x128xbf16>
    %72 = vector.shape_cast %71 : vector<1x192x128xbf16> to vector<192x128xbf16>
    %cst_55 = arith.constant dense<0.000000e+00> : vector<128x128xf32>
    %73 = tpu.matmul %70, %72, %cst_55 {dimension_numbers = #tpu.dot_dimension_numbers<[1], [0], [0], [1], [0, 0, 1, 1], [], []>} : vector<128x192xbf16>, vector<192x128xbf16>, vector<128x128xf32> -> vector<128x128xf32>
    %74 = arith.addf %61, %73 : vector<128x128xf32>
    %75 = vector.extract_strided_slice %8 {offsets = [0, 640], sizes = [128, 480], strides = [1, 1]} : vector<128x1120xbf16> to vector<128x480xbf16>
    %c0_56 = arith.constant 0 : index
    %c0_57 = arith.constant 0 : index
    %76 = vector.load %arg5[%c0_56, %c0_57] : memref<480x192xbf16, #tpu.memory_space<vmem>>, vector<480x192xbf16>
    %cst_58 = arith.constant dense<0.000000e+00> : vector<128x192xf32>
    %77 = tpu.matmul %75, %76, %cst_58 {dimension_numbers = #tpu.dot_dimension_numbers<[1], [0], [0], [1], [0, 0, 1, 1], [], []>} : vector<128x480xbf16>, vector<480x192xbf16>, vector<128x192xf32> -> vector<128x192xf32>
    %c0_59 = arith.constant 0 : index
    %c0_60 = arith.constant 0 : index
    %78 = vector.load %arg6[%c0_59, %c0_60] : memref<1x192xf32, #tpu.memory_space<vmem>>, vector<1x192xf32>
    %79 = vector.broadcast %78 : vector<1x192xf32> to vector<128x192xf32>
    %80 = arith.addf %77, %79 : vector<128x192xf32>
    %cst_61 = arith.constant 0.000000e+00 : f32
    %81 = vector.broadcast %cst_61 : f32 to vector<128x192xf32>
    %82 = arith.maximumf %80, %81 : vector<128x192xf32>
    %83 = arith.truncf %82 : vector<128x192xf32> to vector<128x192xbf16>
    %c4 = arith.constant 4 : index
    %c0_62 = arith.constant 0 : index
    %c0_63 = arith.constant 0 : index
    %84 = vector.load %arg9[%c4, %c0_62, %c0_63] : memref<5x192x128xbf16, #tpu.memory_space<vmem>>, vector<1x192x128xbf16>
    %85 = vector.shape_cast %84 : vector<1x192x128xbf16> to vector<192x128xbf16>
    %cst_64 = arith.constant dense<0.000000e+00> : vector<128x128xf32>
    %86 = tpu.matmul %83, %85, %cst_64 {dimension_numbers = #tpu.dot_dimension_numbers<[1], [0], [0], [1], [0, 0, 1, 1], [], []>} : vector<128x192xbf16>, vector<192x128xbf16>, vector<128x128xf32> -> vector<128x128xf32>
    %87 = arith.addf %74, %86 : vector<128x128xf32>
    %cst_65 = arith.constant 0.000000e+00 : f32
    %88 = vector.broadcast %cst_65 : f32 to vector<128x128xf32>
    %89 = arith.maximumf %87, %88 : vector<128x128xf32>
    %90 = arith.truncf %89 : vector<128x128xf32> to vector<128x128xbf16>
    %c0_66 = arith.constant 0 : index
    %c0_67 = arith.constant 0 : index
    %91 = vector.load %arg12[%c0_66, %c0_67] : memref<128x128xbf16, #tpu.memory_space<vmem>>, vector<128x128xbf16>
    %cst_68 = arith.constant dense<0.000000e+00> : vector<128x128xf32>
    %92 = tpu.matmul %90, %91, %cst_68 {dimension_numbers = #tpu.dot_dimension_numbers<[1], [0], [0], [1], [0, 0, 1, 1], [], []>} : vector<128x128xbf16>, vector<128x128xbf16>, vector<128x128xf32> -> vector<128x128xf32>
    %c0_69 = arith.constant 0 : index
    %c0_70 = arith.constant 0 : index
    %93 = vector.load %arg13[%c0_69, %c0_70] : memref<1x128xf32, #tpu.memory_space<vmem>>, vector<1x128xf32>
    %94 = vector.broadcast %93 : vector<1x128xf32> to vector<128x128xf32>
    %95 = arith.addf %92, %94 : vector<128x128xf32>
    %c0_71 = arith.constant 0 : index
    %c0_72 = arith.constant 0 : index
    %96 = vector.load %arg14[%c0_71, %c0_72] : memref<128x128xf32, #tpu.memory_space<vmem>>, vector<128x128xf32>
    tpu.vector_store %arg14[%c0_71, %c0_72], %95 {strides = array<i32>} : memref<128x128xf32, #tpu.memory_space<vmem>>, vector<128x128xf32>,
    return
  }
  func.func @transform_0(%arg0: i32) -> (i32, i32) {
    %c0_i32 = arith.constant 0 : i32
    %c0_i32_0 = arith.constant 0 : i32
    return %arg0, %c0_i32 : i32, i32
  }
  func.func @transform_1(%arg0: i32) -> (i32, i32) {
    %c0_i32 = arith.constant 0 : i32
    %c0_i32_0 = arith.constant 0 : i32
    return %arg0, %c0_i32 : i32, i32
  }
  func.func @transform_2(%arg0: i32) -> (i32, i32) {
    %c0_i32 = arith.constant 0 : i32
    %c0_i32_0 = arith.constant 0 : i32
    %c0_i32_1 = arith.constant 0 : i32
    return %c0_i32, %c0_i32_0 : i32, i32
  }
  func.func @transform_3(%arg0: i32) -> (i32, i32) {
    %c0_i32 = arith.constant 0 : i32
    %c0_i32_0 = arith.constant 0 : i32
    %c0_i32_1 = arith.constant 0 : i32
    return %c0_i32, %c0_i32_0 : i32, i32
  }
  func.func @transform_4(%arg0: i32) -> (i32, i32) {
    %c0_i32 = arith.constant 0 : i32
    %c0_i32_0 = arith.constant 0 : i32
    %c0_i32_1 = arith.constant 0 : i32
    return %c0_i32, %c0_i32_0 : i32, i32
  }
  func.func @transform_5(%arg0: i32) -> (i32, i32) {
    %c0_i32 = arith.constant 0 : i32
    %c0_i32_0 = arith.constant 0 : i32
    %c0_i32_1 = arith.constant 0 : i32
    return %c0_i32, %c0_i32_0 : i32, i32
  }
  func.func @transform_6(%arg0: i32) -> (i32, i32) {
    %c0_i32 = arith.constant 0 : i32
    %c0_i32_0 = arith.constant 0 : i32
    %c0_i32_1 = arith.constant 0 : i32
    return %c0_i32, %c0_i32_0 : i32, i32
  }
  func.func @transform_7(%arg0: i32) -> (i32, i32) {
    %c0_i32 = arith.constant 0 : i32
    %c0_i32_0 = arith.constant 0 : i32
    %c0_i32_1 = arith.constant 0 : i32
    return %c0_i32, %c0_i32_0 : i32, i32
  }
  func.func @transform_8(%arg0: i32) -> (i32, i32, i32) {
    %c0_i32 = arith.constant 0 : i32
    %c0_i32_0 = arith.constant 0 : i32
    %c0_i32_1 = arith.constant 0 : i32
    %c0_i32_2 = arith.constant 0 : i32
    return %c0_i32, %c0_i32_0, %c0_i32_1 : i32, i32, i32
  }
  func.func @transform_9(%arg0: i32) -> (i32, i32) {
    %c0_i32 = arith.constant 0 : i32
    %c0_i32_0 = arith.constant 0 : i32
    %c0_i32_1 = arith.constant 0 : i32
    return %c0_i32, %c0_i32_0 : i32, i32
  }
  func.func @transform_10(%arg0: i32) -> (i32, i32) {
    %c0_i32 = arith.constant 0 : i32
    %c0_i32_0 = arith.constant 0 : i32
    %c0_i32_1 = arith.constant 0 : i32
    return %c0_i32, %c0_i32_0 : i32, i32
  }
  func.func @transform_11(%arg0: i32) -> (i32, i32) {
    %c0_i32 = arith.constant 0 : i32
    %c0_i32_0 = arith.constant 0 : i32
    %c0_i32_1 = arith.constant 0 : i32
    return %c0_i32, %c0_i32_0 : i32, i32
  }
  func.func @transform_12(%arg0: i32) -> (i32, i32) {
    %c0_i32 = arith.constant 0 : i32
    %c0_i32_0 = arith.constant 0 : i32
    %c0_i32_1 = arith.constant 0 : i32
    return %c0_i32, %c0_i32_0 : i32, i32
  }
  func.func @transform_13(%arg0: i32) -> (i32, i32) {
    %c0_i32 = arith.constant 0 : i32
    %c0_i32_0 = arith.constant 0 : i32
    return %arg0, %c0_i32 : i32, i32
  }
}

</mosaic_0001>

<llo_original>
// kernel: policy_net_forward.1
$region0: #{policy_net_forward.1}
  #allocation0 [shape = 'u32[]', space=smem, size = 0x4, offset = 0x4, fixed_abs, tag = 'smem constant byte address 0x4 - core index']
  #allocation1 [shape = 'u32[144,128]{1,0:T(1,128)}', space=vmem, size = 0x12000, scoped, tag = 'internal scratch']
  %s0 = inlined_call_operand.vmem [shape: bf16[128,280], index: 0, kind: input, shape index: {}]
  %s1 = inlined_call_operand.vmem [shape: bf16[128,8], index: 1, kind: input, shape index: {}]
  %s2 = inlined_call_operand.vmem [shape: bf16[280,1120], index: 2, kind: input, shape index: {}]
  %s3 = inlined_call_operand.vmem [shape: f32[1,1120], index: 3, kind: input, shape index: {}]
  %s4 = inlined_call_operand.vmem [shape: bf16[480,192], index: 4, kind: input, shape index: {}]
  %s5 = inlined_call_operand.vmem [shape: f32[1,192], index: 5, kind: input, shape index: {}]
  %s6 = inlined_call_operand.vmem [shape: bf16[8,64], index: 6, kind: input, shape index: {}]
  %s7 = inlined_call_operand.vmem [shape: f32[1,64], index: 7, kind: input, shape index: {}]
  %s8 = inlined_call_operand.hbm [shape: bf16[5,192,128], index: 8, kind: input, shape index: {}]
  %s9 = inlined_call_operand.vmem [shape: bf16[64,128], index: 9, kind: input, shape index: {}]
  %s10 = inlined_call_operand.vmem [shape: f32[1,128], index: 10, kind: input, shape index: {}]
  %s11 = inlined_call_operand.vmem [shape: bf16[128,128], index: 11, kind: input, shape index: {}]
  %s12 = inlined_call_operand.vmem [shape: f32[1,128], index: 12, kind: input, shape index: {}]
  %s13 = inlined_call_operand.vmem [shape: f32[128,128], index: 13, kind: output, shape index: {}]
  %s14 = sld [smem:[#allocation0]]
  $region66: #{policy_net_forward.1} parent=0
    _
  %s16 = ssub.s32 1, %s14
  %s17 = scalar_select 0, %s16, %s14
  $region1: #{policy_net_forward.1} parent=0
    #allocation2 [shape = 'u8[245760]{0}', space=vmem, size = 0x3c000, scoped, tag = 'input window, operand 8, single buffered']
    #allocation3 [shape = 's32[1]{0}', space=sflag, size = 0x4, scoped, tag = 'scoped memory for policy_net_forward.1']
    %18 = vsyncpa [#allocation3], 0
    // Predicated region
    $region2: #{policy_net_forward.1} parent=1 // pred_check
      _
    $region3: #{policy_net_forward.1} parent=1 // pred_check_branch
      %20 = sbr.rel (0) target = $region5
    $region4: #{policy_net_forward.1} parent=1 // pred_region
      _
    $region5: #{policy_net_forward.1} parent=1 // pred_fallthru
      _
    // Predicated region
    $region6: #{policy_net_forward.1} parent=1 // pred_check
      _
    $region7: #{policy_net_forward.1} parent=1 // pred_check_branch
      %22 = sbr.rel (0) target = $region9
    $region8: #{policy_net_forward.1} parent=1 // pred_region
      _
    $region9: #{policy_net_forward.1} parent=1 // pred_fallthru
      _
    // Predicated region
    $region10: #{policy_net_forward.1} parent=1 // pred_check
      _
    $region11: #{policy_net_forward.1} parent=1 // pred_check_branch
      %24 = sbr.rel (0) target = $region13
    $region12: #{policy_net_forward.1} parent=1 // pred_region
      _
    $region13: #{policy_net_forward.1} parent=1 // pred_fallthru
      _
    // Predicated region
    $region14: #{policy_net_forward.1} parent=1 // pred_check
      _
    $region15: #{policy_net_forward.1} parent=1 // pred_check_branch
      %26 = sbr.rel (0) target = $region17
    $region16: #{policy_net_forward.1} parent=1 // pred_region
      _
    $region17: #{policy_net_forward.1} parent=1 // pred_fallthru
      _
    // Predicated region
    $region18: #{policy_net_forward.1} parent=1 // pred_check
      _
    $region19: #{policy_net_forward.1} parent=1 // pred_check_branch
      %28 = sbr.rel (0) target = $region21
    $region20: #{policy_net_forward.1} parent=1 // pred_region
      _
    $region21: #{policy_net_forward.1} parent=1 // pred_fallthru
      _
    // Predicated region
    $region22: #{policy_net_forward.1} parent=1 // pred_check
      _
    $region23: #{policy_net_forward.1} parent=1 // pred_check_branch
      %30 = sbr.rel (0) target = $region25
    $region24: #{policy_net_forward.1} parent=1 // pred_region
      _
    $region25: #{policy_net_forward.1} parent=1 // pred_fallthru
      _
    // Predicated region
    $region26: #{policy_net_forward.1} parent=1 // pred_check
      _
    $region27: #{policy_net_forward.1} parent=1 // pred_check_branch
      %32 = sbr.rel (0) target = $region29
    $region28: #{policy_net_forward.1} parent=1 // pred_region
      _
    $region29: #{policy_net_forward.1} parent=1 // pred_fallthru
      _
    // Predicated region
    $region30: #{policy_net_forward.1} parent=1 // pred_check
      _
    $region31: #{policy_net_forward.1} parent=1 // pred_check_branch
      %34 = sbr.rel (0) target = $region33
    $region32: #{policy_net_forward.1} parent=1 // pred_region
      _
    $region33: #{policy_net_forward.1} parent=1 // pred_fallthru
      _
    // Predicated region
    $region34: #{policy_net_forward.1} parent=1 // pred_check
      _
    $region35: #{policy_net_forward.1} parent=1 // pred_check_branch
      %36 = sbr.rel (0) target = $region37
    $region36: #{policy_net_forward.1} parent=1 // pred_region
      %s38 = ssub.s32 7680, 7680
      %39 = vsyncadd [#allocation3], %s38
      %s40 = sshll.u32 [#allocation2], 4
      %s41 = int_to_ptr.vmem [resolvable:$true] %s40
      %46 = dma.hbm_to_vmem [thread:$0]  %s8, 7680, %s41, [#allocation3], 64, 64, 4
    $region37: #{policy_net_forward.1} parent=1 // pred_fallthru
      _
    // Predicated region
    $region38: #{policy_net_forward.1} parent=1 // pred_check
      _
    $region39: #{policy_net_forward.1} parent=1 // pred_check_branch
      %48 = sbr.rel (0) target = $region41
    $region40: #{policy_net_forward.1} parent=1 // pred_region
      _
    $region41: #{policy_net_forward.1} parent=1 // pred_fallthru
      _
    // Predicated region
    $region42: #{policy_net_forward.1} parent=1 // pred_check
      _
    $region43: #{policy_net_forward.1} parent=1 // pred_check_branch
      %50 = sbr.rel (0) target = $region45
    $region44: #{policy_net_forward.1} parent=1 // pred_region
      _
    $region45: #{policy_net_forward.1} parent=1 // pred_fallthru
      _
    // Predicated region
    $region46: #{policy_net_forward.1} parent=1 // pred_check
      _
    $region47: #{policy_net_forward.1} parent=1 // pred_check_branch
      %52 = sbr.rel (0) target = $region49
    $region48: #{policy_net_forward.1} parent=1 // pred_region
      _
    $region49: #{policy_net_forward.1} parent=1 // pred_fallthru
      _
    // Predicated region
    $region50: #{policy_net_forward.1} parent=1 // pred_check
      _
    $region51: #{policy_net_forward.1} parent=1 // pred_check_branch
      %54 = sbr.rel (0) target = $region53
    $region52: #{policy_net_forward.1} parent=1 // pred_region
      _
    $region53: #{policy_net_forward.1} parent=1 // pred_fallthru
      _
    // Predicated region
    $region54: #{policy_net_forward.1} parent=1 // pred_check
      _
    $region55: #{policy_net_forward.1} parent=1 // pred_check_branch
      %56 = sbr.rel (0) target = $region57
    $region56: #{policy_net_forward.1} parent=1 // pred_region
      %57 = dma.done [#allocation3], 7680
    $region57: #{policy_net_forward.1} parent=1 // pred_fallthru
      _
    %v59 = vld [vmem:[%s0] sm:$0xff]
    %v60 = vld [vmem:[%s0 + $0x8] sm:$0xf]
    %v61 = vld [vmem:[%s0 + $0xc] sm:$0xff]
    %v62 = vld [vmem:[%s0 + $0x14] sm:$0xf]
    %v63 = vld [vmem:[%s0 + $0x18] sm:$0xff]
    %v64 = vld [vmem:[%s0 + $0x20] sm:$0xf]
    %v65 = vld [vmem:[%s0 + $0x24] sm:$0xff]
    %v66 = vld [vmem:[%s0 + $0x2c] sm:$0xf]
    %v67 = vld [vmem:[%s0 + $0x30] sm:$0xff]
    %v68 = vld [vmem:[%s0 + $0x38] sm:$0xf]
    %v69 = vld [vmem:[%s0 + $0x3c] sm:$0xff]
    %v70 = vld [vmem:[%s0 + $0x44] sm:$0xf]
    %v71 = vld [vmem:[%s0 + $0x48] sm:$0xff]
    %v72 = vld [vmem:[%s0 + $0x50] sm:$0xf]
    %v73 = vld [vmem:[%s0 + $0x54] sm:$0xff]
    %v74 = vld [vmem:[%s0 + $0x5c] sm:$0xf]
    %v75 = vld [vmem:[%s0 + $0x60] sm:$0xff]
    %v76 = vld [vmem:[%s0 + $0x68] sm:$0xf]
    %v77 = vld [vmem:[%s0 + $0x6c] sm:$0xff]
    %v78 = vld [vmem:[%s0 + $0x74] sm:$0xf]
    %v79 = vld [vmem:[%s0 + $0x78] sm:$0xff]
    %v80 = vld [vmem:[%s0 + $0x80] sm:$0xf]
    %v81 = vld [vmem:[%s0 + $0x84] sm:$0xff]
    %v82 = vld [vmem:[%s0 + $0x8c] sm:$0xf]
    %v83 = vld [vmem:[%s0 + $0x90] sm:$0xff]
    %v84 = vld [vmem:[%s0 + $0x98] sm:$0xf]
    %v85 = vld [vmem:[%s0 + $0x9c] sm:$0xff]
    %v86 = vld [vmem:[%s0 + $0xa4] sm:$0xf]
    %v87 = vld [vmem:[%s0 + $0xa8] sm:$0xff]
    %v88 = vld [vmem:[%s0 + $0xb0] sm:$0xf]
    %v89 = vld [vmem:[%s0 + $0xb4] sm:$0xff]
    %v90 = vld [vmem:[%s0 + $0xbc] sm:$0xf]
    %v91 = vld [vmem:[%s2] sm:$0xff]
    %v92 = vld [vmem:[%s2 + $0x8] sm:$0xff]
    %v93 = vld [vmem:[%s2 + $0x10] sm:$0xff]
    %v94 = vld [vmem:[%s2 + $0x18] sm:$0xff]
    %v95 = vld [vmem:[%s2 + $0x20] sm:$0xf]
    %v96 = vld [vmem:[%s2 + $0x24] sm:$0xff]
    %v97 = vld [vmem:[%s2 + $0x2c] sm:$0xff]
    %v98 = vld [vmem:[%s2 + $0x34] sm:$0xff]
    %v99 = vld [vmem:[%s2 + $0x3c] sm:$0xff]
    %v100 = vld [vmem:[%s2 + $0x44] sm:$0xf]
    %v101 = vld [vmem:[%s2 + $0x48] sm:$0xff]
    %v102 = vld [vmem:[%s2 + $0x50] sm:$0xff]
    %v103 = vld [vmem:[%s2 + $0x58] sm:$0xff]
    %v104 = vld [vmem:[%s2 + $0x60] sm:$0xff]
    %v105 = vld [vmem:[%s2 + $0x68] sm:$0xf]
    %v106 = vld [vmem:[%s2 + $0x6c] sm:$0xff]
    %v107 = vld [vmem:[%s2 + $0x74] sm:$0xff]
    %v108 = vld [vmem:[%s2 + $0x7c] sm:$0xff]
    %v109 = vld [vmem:[%s2 + $0x84] sm:$0xff]
    %v110 = vld [vmem:[%s2 + $0x8c] sm:$0xf]
    %v111 = vld [vmem:[%s2 + $0x90] sm:$0xff]
    %v112 = vld [vmem:[%s2 + $0x98] sm:$0xff]
    %v113 = vld [vmem:[%s2 + $0xa0] sm:$0xff]
    %v114 = vld [vmem:[%s2 + $0xa8] sm:$0xff]
    %v115 = vld [vmem:[%s2 + $0xb0] sm:$0xf]
    %v116 = vld [vmem:[%s2 + $0xb4] sm:$0xff]
    %v117 = vld [vmem:[%s2 + $0xbc] sm:$0xff]
    %v118 = vld [vmem:[%s2 + $0xc4] sm:$0xff]
    %v119 = vld [vmem:[%s2 + $0xcc] sm:$0xff]
    %v120 = vld [vmem:[%s2 + $0xd4] sm:$0xf]
    %v121 = vld [vmem:[%s2 + $0xd8] sm:$0xff]
    %v122 = vld [vmem:[%s2 + $0xe0] sm:$0xff]
    %v123 = vld [vmem:[%s2 + $0xe8] sm:$0xff]
    %v124 = vld [vmem:[%s2 + $0xf0] sm:$0xff]
    %v125 = vld [vmem:[%s2 + $0xf8] sm:$0xf]
    %v126 = vld [vmem:[%s2 + $0xfc] sm:$0xff]
    %v127 = vld [vmem:[%s2 + $0x104] sm:$0xff]
    %v128 = vld [vmem:[%s2 + $0x10c] sm:$0xff]
    %v129 = vld [vmem:[%s2 + $0x114] sm:$0xff]
    %v130 = vld [vmem:[%s2 + $0x11c] sm:$0xf]
    %v131 = vld [vmem:[%s2 + $0x120] sm:$0xff]
    %v132 = vld [vmem:[%s2 + $0x128] sm:$0xff]
    %v133 = vld [vmem:[%s2 + $0x130] sm:$0xff]
    %v134 = vld [vmem:[%s2 + $0x138] sm:$0xff]
    %v135 = vld [vmem:[%s2 + $0x140] sm:$0xf]
    %v136 = vld [vmem:[%s2 + $0x144] sm:$0xff]
    %v137 = vld [vmem:[%s2 + $0x14c] sm:$0xff]
    %v138 = vld [vmem:[%s2 + $0x154] sm:$0xff]
    %v139 = vld [vmem:[%s2 + $0x15c] sm:$0xff]
    %v140 = vld [vmem:[%s2 + $0x164] sm:$0xf]
    %v141 = vld [vmem:[%s2 + $0x168] sm:$0xff]
    %v142 = vld [vmem:[%s2 + $0x170] sm:$0xff]
    %v143 = vld [vmem:[%s2 + $0x178] sm:$0xff]
    %v144 = vld [vmem:[%s2 + $0x180] sm:$0xff]
    %v145 = vld [vmem:[%s2 + $0x188] sm:$0xf]
    %v146 = vld [vmem:[%s2 + $0x18c] sm:$0xff]
    %v147 = vld [vmem:[%s2 + $0x194] sm:$0xff]
    %v148 = vld [vmem:[%s2 + $0x19c] sm:$0xff]
    %v149 = vld [vmem:[%s2 + $0x1a4] sm:$0xff]
    %v150 = vld [vmem:[%s2 + $0x1ac] sm:$0xf]
    %v151 = vld [vmem:[%s2 + $0x1b0] sm:$0xff]
    %v152 = vld [vmem:[%s2 + $0x1b8] sm:$0xff]
    %v153 = vld [vmem:[%s2 + $0x1c0] sm:$0xff]
    %v154 = vld [vmem:[%s2 + $0x1c8] sm:$0xff]
    %v155 = vld [vmem:[%s2 + $0x1d0] sm:$0xf]
    %v156 = vld [vmem:[%s2 + $0x1d4] sm:$0xff]
    %v157 = vld [vmem:[%s2 + $0x1dc] sm:$0xff]
    %v158 = vld [vmem:[%s2 + $0x1e4] sm:$0xff]
    %v159 = vld [vmem:[%s2 + $0x1ec] sm:$0xff]
    %v160 = vld [vmem:[%s2 + $0x1f4] sm:$0xf]
    %v161 = vld [vmem:[%s2 + $0x1f8] sm:$0xff]
    %v162 = vld [vmem:[%s2 + $0x200] sm:$0xff]
    %v163 = vld [vmem:[%s2 + $0x208] sm:$0xff]
    %v164 = vld [vmem:[%s2 + $0x210] sm:$0xff]
    %v165 = vld [vmem:[%s2 + $0x218] sm:$0xf]
    %v166 = vld [vmem:[%s2 + $0x21c] sm:$0xff]
    %v167 = vld [vmem:[%s2 + $0x224] sm:$0xff]
    %v168 = vld [vmem:[%s2 + $0x22c] sm:$0xff]
    %v169 = vld [vmem:[%s2 + $0x234] sm:$0xff]
    %v170 = vld [vmem:[%s2 + $0x23c] sm:$0xf]
    %v171 = vld [vmem:[%s2 + $0x240] sm:$0xff]
    %v172 = vld [vmem:[%s2 + $0x248] sm:$0xff]
    %v173 = vld [vmem:[%s2 + $0x250] sm:$0xff]
    %v174 = vld [vmem:[%s2 + $0x258] sm:$0xff]
    %v175 = vld [vmem:[%s2 + $0x260] sm:$0xf]
    %v176 = vld [vmem:[%s2 + $0x264] sm:$0xff]
    %v177 = vld [vmem:[%s2 + $0x26c] sm:$0xff]
    %v178 = vld [vmem:[%s2 + $0x274] sm:$0xff]
    %v179 = vld [vmem:[%s2 + $0x27c] sm:$0xff]
    %v180 = vld [vmem:[%s2 + $0x284] sm:$0xf]
    %v181 = vld [vmem:[%s2 + $0x288] sm:$0xff]
    %v182 = vld [vmem:[%s2 + $0x290] sm:$0xff]
    %v183 = vld [vmem:[%s2 + $0x298] sm:$0xff]
    %v184 = vld [vmem:[%s2 + $0x2a0] sm:$0xff]
    %v185 = vld [vmem:[%s2 + $0x2a8] sm:$0xf]
    %v186 = vld [vmem:[%s2 + $0x2ac] sm:$0xff]
    %v187 = vld [vmem:[%s2 + $0x2b4] sm:$0xff]
    %v188 = vld [vmem:[%s2 + $0x2bc] sm:$0xff]
    %v189 = vld [vmem:[%s2 + $0x2c4] sm:$0xff]
    %v190 = vld [vmem:[%s2 + $0x2cc] sm:$0xf]
    %v191 = vld [vmem:[%s2 + $0x2d0] sm:$0xff]
    %v192 = vld [vmem:[%s2 + $0x2d8] sm:$0xff]
    %v193 = vld [vmem:[%s2 + $0x2e0] sm:$0xff]
    %v194 = vld [vmem:[%s2 + $0x2e8] sm:$0xff]
    %v195 = vld [vmem:[%s2 + $0x2f0] sm:$0xf]
    %v196 = vld [vmem:[%s2 + $0x2f4] sm:$0xff]
    %v197 = vld [vmem:[%s2 + $0x2fc] sm:$0xff]
    %v198 = vld [vmem:[%s2 + $0x304] sm:$0xff]
    %v199 = vld [vmem:[%s2 + $0x30c] sm:$0xff]
    %v200 = vld [vmem:[%s2 + $0x314] sm:$0xf]
    %v201 = vld [vmem:[%s2 + $0x318] sm:$0xff]
    %v202 = vld [vmem:[%s2 + $0x320] sm:$0xff]
    %v203 = vld [vmem:[%s2 + $0x328] sm:$0xff]
    %v204 = vld [vmem:[%s2 + $0x330] sm:$0xff]
    %v205 = vld [vmem:[%s2 + $0x338] sm:$0xf]
    %v206 = vld [vmem:[%s2 + $0x33c] sm:$0xff]
    %v207 = vld [vmem:[%s2 + $0x344] sm:$0xff]
    %v208 = vld [vmem:[%s2 + $0x34c] sm:$0xff]
    %v209 = vld [vmem:[%s2 + $0x354] sm:$0xff]
    %v210 = vld [vmem:[%s2 + $0x35c] sm:$0xf]
    %v211 = vld [vmem:[%s2 + $0x360] sm:$0xff]
    %v212 = vld [vmem:[%s2 + $0x368] sm:$0xff]
    %v213 = vld [vmem:[%s2 + $0x370] sm:$0xff]
    %v214 = vld [vmem:[%s2 + $0x378] sm:$0xff]
    %v215 = vld [vmem:[%s2 + $0x380] sm:$0xf]
    %v216 = vld [vmem:[%s2 + $0x384] sm:$0xff]
    %v217 = vld [vmem:[%s2 + $0x38c] sm:$0xff]
    %v218 = vld [vmem:[%s2 + $0x394] sm:$0xff]
    %v219 = vld [vmem:[%s2 + $0x39c] sm:$0xff]
    %v220 = vld [vmem:[%s2 + $0x3a4] sm:$0xf]
    %v221 = vld [vmem:[%s2 + $0x3a8] sm:$0xff]
    %v222 = vld [vmem:[%s2 + $0x3b0] sm:$0xff]
    %v223 = vld [vmem:[%s2 + $0x3b8] sm:$0xff]
    %v224 = vld [vmem:[%s2 + $0x3c0] sm:$0xff]
    %v225 = vld [vmem:[%s2 + $0x3c8] sm:$0xf]
    %v226 = vld [vmem:[%s2 + $0x3cc] sm:$0xff]
    %v227 = vld [vmem:[%s2 + $0x3d4] sm:$0xff]
    %v228 = vld [vmem:[%s2 + $0x3dc] sm:$0xff]
    %v229 = vld [vmem:[%s2 + $0x3e4] sm:$0xff]
    %v230 = vld [vmem:[%s2 + $0x3ec] sm:$0xf]
    %v231 = vld [vmem:[%s2 + $0x3f0] sm:$0xff]
    %v232 = vld [vmem:[%s2 + $0x3f8] sm:$0xff]
    %v233 = vld [vmem:[%s2 + $0x400] sm:$0xff]
    %v234 = vld [vmem:[%s2 + $0x408] sm:$0xff]
    %v235 = vld [vmem:[%s2 + $0x410] sm:$0xf]
    %v236 = vld [vmem:[%s2 + $0x414] sm:$0xff]
    %v237 = vld [vmem:[%s2 + $0x41c] sm:$0xff]
    %v238 = vld [vmem:[%s2 + $0x424] sm:$0xff]
    %v239 = vld [vmem:[%s2 + $0x42c] sm:$0xff]
    %v240 = vld [vmem:[%s2 + $0x434] sm:$0xf]
    %v241 = vld [vmem:[%s2 + $0x438] sm:$0xff]
    %v242 = vld [vmem:[%s2 + $0x440] sm:$0xff]
    %v243 = vld [vmem:[%s2 + $0x448] sm:$0xff]
    %v244 = vld [vmem:[%s2 + $0x450] sm:$0xff]
    %v245 = vld [vmem:[%s2 + $0x458] sm:$0xf]
    %v246 = vld [vmem:[%s2 + $0x45c] sm:$0xff]
    %v247 = vld [vmem:[%s2 + $0x464] sm:$0xff]
    %v248 = vld [vmem:[%s2 + $0x46c] sm:$0xff]
    %v249 = vld [vmem:[%s2 + $0x474] sm:$0xff]
    %v250 = vld [vmem:[%s2 + $0x47c] sm:$0xf]
    %v251 = vld [vmem:[%s2 + $0x480] sm:$0xff]
    %v252 = vld [vmem:[%s2 + $0x488] sm:$0xff]
    %v253 = vld [vmem:[%s2 + $0x490] sm:$0xff]
    %v254 = vld [vmem:[%s2 + $0x498] sm:$0xff]
    %v255 = vld [vmem:[%s2 + $0x4a0] sm:$0xf]
    %v256 = vld [vmem:[%s2 + $0x4a4] sm:$0xff]
    %v257 = vld [vmem:[%s2 + $0x4ac] sm:$0xff]
    %v258 = vld [vmem:[%s2 + $0x4b4] sm:$0xff]
    %v259 = vld [vmem:[%s2 + $0x4bc] sm:$0xff]
    %v260 = vld [vmem:[%s2 + $0x4c4] sm:$0xf]
    %v261 = vld [vmem:[%s2 + $0x4c8] sm:$0xff]
    %v262 = vld [vmem:[%s2 + $0x4d0] sm:$0xff]
    %v263 = vld [vmem:[%s2 + $0x4d8] sm:$0xff]
    %v264 = vld [vmem:[%s2 + $0x4e0] sm:$0xff]
    %v265 = vld [vmem:[%s2 + $0x4e8] sm:$0xf]
    %v266 = vld [vmem:[%s3] sm:$0xff]
    %v267 = vld [vmem:[%s3 + $0x8] sm:$0x1]
    %v270 = vlaneseq
    %v271 = vshrl.u32 %v270, 7
    %v272 = vsub.s32 0, %v271
    %v273 = vrot.slane %v266, %v272
    %v274 = vlaneseq
    %v275 = vshrl.u32 %v274, 7
    %v276 = vsub.s32 1, %v275
    %v277 = vrot.slane %v266, %v276
    %v278 = vlaneseq
    %v279 = vshrl.u32 %v278, 7
    %v280 = vsub.s32 2, %v279
    %v281 = vrot.slane %v266, %v280
    %v282 = vlaneseq
    %v283 = vshrl.u32 %v282, 7
    %v284 = vsub.s32 3, %v283
    %v285 = vrot.slane %v266, %v284
    %v286 = vlaneseq
    %v287 = vshrl.u32 %v286, 7
    %v288 = vsub.s32 4, %v287
    %v289 = vrot.slane %v266, %v288
    %v290 = vlaneseq
    %v291 = vshrl.u32 %v290, 7
    %v292 = vsub.s32 5, %v291
    %v293 = vrot.slane %v266, %v292
    %v294 = vlaneseq
    %v295 = vshrl.u32 %v294, 7
    %v296 = vsub.s32 6, %v295
    %v297 = vrot.slane %v266, %v296
    %v298 = vlaneseq
    %v299 = vshrl.u32 %v298, 7
    %v300 = vsub.s32 7, %v299
    %v301 = vrot.slane %v266, %v300
    %v302 = vlaneseq
    %v303 = vshrl.u32 %v302, 7
    %v304 = vsub.s32 0, %v303
    %v305 = vrot.slane %v267, %v304
    %v347 = vunpack.c.l.b16 %v59
    %v348 = vunpack.c.h.b16 %v59
    %v349 = vunpack.c.l.b16 %v60
    %v350 = vunpack.c.l.b16 %v61
    %v351 = vunpack.c.h.b16 %v61
    %v352 = vunpack.c.l.b16 %v62
    %v353 = vunpack.c.l.b16 %v63
    %v354 = vunpack.c.h.b16 %v63
    %v355 = vunpack.c.l.b16 %v64
    %v356 = vunpack.c.l.b16 %v65
    %v357 = vunpack.c.h.b16 %v65
    %v358 = vunpack.c.l.b16 %v66
    %v359 = vunpack.c.l.b16 %v67
    %v360 = vunpack.c.h.b16 %v67
    %v361 = vunpack.c.l.b16 %v68
    %v362 = vunpack.c.l.b16 %v69
    %v363 = vunpack.c.h.b16 %v69
    %v364 = vunpack.c.l.b16 %v70
    %v365 = vunpack.c.l.b16 %v71
    %v366 = vunpack.c.h.b16 %v71
    %v367 = vunpack.c.l.b16 %v72
    %v368 = vunpack.c.l.b16 %v73
    %v369 = vunpack.c.h.b16 %v73
    %v370 = vunpack.c.l.b16 %v74
    %v371 = vunpack.c.l.b16 %v75
    %v372 = vunpack.c.h.b16 %v75
    %v373 = vunpack.c.l.b16 %v76
    %v374 = vunpack.c.l.b16 %v77
    %v375 = vunpack.c.h.b16 %v77
    %v376 = vunpack.c.l.b16 %v78
    %v377 = vunpack.c.l.b16 %v79
    %v378 = vunpack.c.h.b16 %v79
    %v379 = vunpack.c.l.b16 %v80
    %v380 = vunpack.c.l.b16 %v81
    %v381 = vunpack.c.h.b16 %v81
    %v382 = vunpack.c.l.b16 %v82
    %v383 = vunpack.c.l.b16 %v83
    %v384 = vunpack.c.h.b16 %v83
    %v385 = vunpack.c.l.b16 %v84
    %v386 = vunpack.c.l.b16 %v85
    %v387 = vunpack.c.h.b16 %v85
    %v388 = vunpack.c.l.b16 %v86
    %v389 = vunpack.c.l.b16 %v87
    %v390 = vunpack.c.h.b16 %v87
    %v391 = vunpack.c.l.b16 %v88
    %v392 = vunpack.c.l.b16 %v89
    %v393 = vunpack.c.h.b16 %v89
    %v394 = vunpack.c.l.b16 %v90
    %v395 = vpack.c.b16 %v350, %v347
    %v396 = vpack.c.b16 %v351, %v348
    %v397 = vpack.c.b16 %v352, %v349
    %v398 = vpack.c.b16 %v356, %v353
    %v399 = vpack.c.b16 %v357, %v354
    %v400 = vpack.c.b16 %v358, %v355
    %v401 = vpack.c.b16 %v362, %v359
    %v402 = vpack.c.b16 %v363, %v360
    %v403 = vpack.c.b16 %v364, %v361
    %v404 = vpack.c.b16 %v368, %v365
    %v405 = vpack.c.b16 %v369, %v366
    %v406 = vpack.c.b16 %v370, %v367
    %v407 = vpack.c.b16 %v374, %v371
    %v408 = vpack.c.b16 %v375, %v372
    %v409 = vpack.c.b16 %v376, %v373
    %v410 = vpack.c.b16 %v380, %v377
    %v411 = vpack.c.b16 %v381, %v378
    %v412 = vpack.c.b16 %v382, %v379
    %v413 = vpack.c.b16 %v386, %v383
    %v414 = vpack.c.b16 %v387, %v384
    %v415 = vpack.c.b16 %v388, %v385
    %v416 = vpack.c.b16 %v392, %v389
    %v417 = vpack.c.b16 %v393, %v390
    %v418 = vpack.c.b16 %v394, %v391
    %v610 = vunpack.c.l.b16 %v91
    %v611 = vunpack.c.h.b16 %v91
    %v612 = vunpack.c.l.b16 %v92
    %v613 = vunpack.c.h.b16 %v92
    %v614 = vunpack.c.l.b16 %v93
    %v615 = vunpack.c.h.b16 %v93
    %v616 = vunpack.c.l.b16 %v94
    %v617 = vunpack.c.h.b16 %v94
    %v618 = vunpack.c.l.b16 %v95
    %v619 = vunpack.c.l.b16 %v96
    %v620 = vunpack.c.h.b16 %v96
    %v621 = vunpack.c.l.b16 %v97
    %v622 = vunpack.c.h.b16 %v97
    %v623 = vunpack.c.l.b16 %v98
    %v624 = vunpack.c.h.b16 %v98
    %v625 = vunpack.c.l.b16 %v99
    %v626 = vunpack.c.h.b16 %v99
    %v627 = vunpack.c.l.b16 %v100
    %v628 = vunpack.c.l.b16 %v101
    %v629 = vunpack.c.h.b16 %v101
    %v630 = vunpack.c.l.b16 %v102
    %v631 = vunpack.c.h.b16 %v102
    %v632 = vunpack.c.l.b16 %v103
    %v633 = vunpack.c.h.b16 %v103
    %v634 = vunpack.c.l.b16 %v104
    %v635 = vunpack.c.h.b16 %v104
    %v636 = vunpack.c.l.b16 %v105
    %v637 = vunpack.c.l.b16 %v106
    %v638 = vunpack.c.h.b16 %v106
    %v639 = vunpack.c.l.b16 %v107
    %v640 = vunpack.c.h.b16 %v107
    %v641 = vunpack.c.l.b16 %v108
    %v642 = vunpack.c.h.b16 %v108
    %v643 = vunpack.c.l.b16 %v109
    %v644 = vunpack.c.h.b16 %v109
    %v645 = vunpack.c.l.b16 %v110
    %v646 = vunpack.c.l.b16 %v111
    %v647 = vunpack.c.h.b16 %v111
    %v648 = vunpack.c.l.b16 %v112
    %v649 = vunpack.c.h.b16 %v112
    %v650 = vunpack.c.l.b16 %v113
    %v651 = vunpack.c.h.b16 %v113
    %v652 = vunpack.c.l.b16 %v114
    %v653 = vunpack.c.h.b16 %v114
    %v654 = vunpack.c.l.b16 %v115
    %v655 = vunpack.c.l.b16 %v116
    %v656 = vunpack.c.h.b16 %v116
    %v657 = vunpack.c.l.b16 %v117
    %v658 = vunpack.c.h.b16 %v117
    %v659 = vunpack.c.l.b16 %v118
    %v660 = vunpack.c.h.b16 %v118
    %v661 = vunpack.c.l.b16 %v119
    %v662 = vunpack.c.h.b16 %v119
    %v663 = vunpack.c.l.b16 %v120
    %v664 = vunpack.c.l.b16 %v121
    %v665 = vunpack.c.h.b16 %v121
    %v666 = vunpack.c.l.b16 %v122
    %v667 = vunpack.c.h.b16 %v122
    %v668 = vunpack.c.l.b16 %v123
    %v669 = vunpack.c.h.b16 %v123
    %v670 = vunpack.c.l.b16 %v124
    %v671 = vunpack.c.h.b16 %v124
    %v672 = vunpack.c.l.b16 %v125
    %v673 = vunpack.c.l.b16 %v126
    %v674 = vunpack.c.h.b16 %v126
    %v675 = vunpack.c.l.b16 %v127
    %v676 = vunpack.c.h.b16 %v127
    %v677 = vunpack.c.l.b16 %v128
    %v678 = vunpack.c.h.b16 %v128
    %v679 = vunpack.c.l.b16 %v129
    %v680 = vunpack.c.h.b16 %v129
    %v681 = vunpack.c.l.b16 %v130
    %v682 = vunpack.c.l.b16 %v131
    %v683 = vunpack.c.h.b16 %v131
    %v684 = vunpack.c.l.b16 %v132
    %v685 = vunpack.c.h.b16 %v132
    %v686 = vunpack.c.l.b16 %v133
    %v687 = vunpack.c.h.b16 %v133
    %v688 = vunpack.c.l.b16 %v134
    %v689 = vunpack.c.h.b16 %v134
    %v690 = vunpack.c.l.b16 %v135
    %v691 = vunpack.c.l.b16 %v136
    %v692 = vunpack.c.h.b16 %v136
    %v693 = vunpack.c.l.b16 %v137
    %v694 = vunpack.c.h.b16 %v137
    %v695 = vunpack.c.l.b16 %v138
    %v696 = vunpack.c.h.b16 %v138
    %v697 = vunpack.c.l.b16 %v139
    %v698 = vunpack.c.h.b16 %v139
    %v699 = vunpack.c.l.b16 %v140
    %v700 = vunpack.c.l.b16 %v141
    %v701 = vunpack.c.h.b16 %v141
    %v702 = vunpack.c.l.b16 %v142
    %v703 = vunpack.c.h.b16 %v142
    %v704 = vunpack.c.l.b16 %v143
    %v705 = vunpack.c.h.b16 %v143
    %v706 = vunpack.c.l.b16 %v144
    %v707 = vunpack.c.h.b16 %v144
    %v708 = vunpack.c.l.b16 %v145
    %v709 = vunpack.c.l.b16 %v146
    %v710 = vunpack.c.h.b16 %v146
    %v711 = vunpack.c.l.b16 %v147
    %v712 = vunpack.c.h.b16 %v147
    %v713 = vunpack.c.l.b16 %v148
    %v714 = vunpack.c.h.b16 %v148
    %v715 = vunpack.c.l.b16 %v149
    %v716 = vunpack.c.h.b16 %v149
    %v717 = vunpack.c.l.b16 %v150
    %v718 = vunpack.c.l.b16 %v151
    %v719 = vunpack.c.h.b16 %v151
    %v720 = vunpack.c.l.b16 %v152
    %v721 = vunpack.c.h.b16 %v152
    %v722 = vunpack.c.l.b16 %v153
    %v723 = vunpack.c.h.b16 %v153
    %v724 = vunpack.c.l.b16 %v154
    %v725 = vunpack.c.h.b16 %v154
    %v726 = vunpack.c.l.b16 %v155
    %v727 = vunpack.c.l.b16 %v156
    %v728 = vunpack.c.h.b16 %v156
    %v729 = vunpack.c.l.b16 %v157
    %v730 = vunpack.c.h.b16 %v157
    %v731 = vunpack.c.l.b16 %v158
    %v732 = vunpack.c.h.b16 %v158
    %v733 = vunpack.c.l.b16 %v159
    %v734 = vunpack.c.h.b16 %v159
    %v735 = vunpack.c.l.b16 %v160
    %v736 = vunpack.c.l.b16 %v161
    %v737 = vunpack.c.h.b16 %v161
    %v738 = vunpack.c.l.b16 %v162
    %v739 = vunpack.c.h.b16 %v162
    %v740 = vunpack.c.l.b16 %v163
    %v741 = vunpack.c.h.b16 %v163
    %v742 = vunpack.c.l.b16 %v164
    %v743 = vunpack.c.h.b16 %v164
    %v744 = vunpack.c.l.b16 %v165
    %v745 = vunpack.c.l.b16 %v166
    %v746 = vunpack.c.h.b16 %v166
    %v747 = vunpack.c.l.b16 %v167
    %v748 = vunpack.c.h.b16 %v167
    %v749 = vunpack.c.l.b16 %v168
    %v750 = vunpack.c.h.b16 %v168
    %v751 = vunpack.c.l.b16 %v169
    %v752 = vunpack.c.h.b16 %v169
    %v753 = vunpack.c.l.b16 %v170
    %v754 = vunpack.c.l.b16 %v171
    %v755 = vunpack.c.h.b16 %v171
    %v756 = vunpack.c.l.b16 %v172
    %v757 = vunpack.c.h.b16 %v172
    %v758 = vunpack.c.l.b16 %v173
    %v759 = vunpack.c.h.b16 %v173
    %v760 = vunpack.c.l.b16 %v174
    %v761 = vunpack.c.h.b16 %v174
    %v762 = vunpack.c.l.b16 %v175
    %v763 = vunpack.c.l.b16 %v176
    %v764 = vunpack.c.h.b16 %v176
    %v765 = vunpack.c.l.b16 %v177
    %v766 = vunpack.c.h.b16 %v177
    %v767 = vunpack.c.l.b16 %v178
    %v768 = vunpack.c.h.b16 %v178
    %v769 = vunpack.c.l.b16 %v179
    %v770 = vunpack.c.h.b16 %v179
    %v771 = vunpack.c.l.b16 %v180
    %v772 = vunpack.c.l.b16 %v181
    %v773 = vunpack.c.h.b16 %v181
    %v774 = vunpack.c.l.b16 %v182
    %v775 = vunpack.c.h.b16 %v182
    %v776 = vunpack.c.l.b16 %v183
    %v777 = vunpack.c.h.b16 %v183
    %v778 = vunpack.c.l.b16 %v184
    %v779 = vunpack.c.h.b16 %v184
    %v780 = vunpack.c.l.b16 %v185
    %v781 = vunpack.c.l.b16 %v186
    %v782 = vunpack.c.h.b16 %v186
    %v783 = vunpack.c.l.b16 %v187
    %v784 = vunpack.c.h.b16 %v187
    %v785 = vunpack.c.l.b16 %v188
    %v786 = vunpack.c.h.b16 %v188
    %v787 = vunpack.c.l.b16 %v189
    %v788 = vunpack.c.h.b16 %v189
    %v789 = vunpack.c.l.b16 %v190
    %v790 = vunpack.c.l.b16 %v191
    %v791 = vunpack.c.h.b16 %v191
    %v792 = vunpack.c.l.b16 %v192
    %v793 = vunpack.c.h.b16 %v192
    %v794 = vunpack.c.l.b16 %v193
    %v795 = vunpack.c.h.b16 %v193
    %v796 = vunpack.c.l.b16 %v194
    %v797 = vunpack.c.h.b16 %v194
    %v798 = vunpack.c.l.b16 %v195
    %v799 = vunpack.c.l.b16 %v196
    %v800 = vunpack.c.h.b16 %v196
    %v801 = vunpack.c.l.b16 %v197
    %v802 = vunpack.c.h.b16 %v197
    %v803 = vunpack.c.l.b16 %v198
    %v804 = vunpack.c.h.b16 %v198
    %v805 = vunpack.c.l.b16 %v199
    %v806 = vunpack.c.h.b16 %v199
    %v807 = vunpack.c.l.b16 %v200
    %v808 = vunpack.c.l.b16 %v201
    %v809 = vunpack.c.h.b16 %v201
    %v810 = vunpack.c.l.b16 %v202
    %v811 = vunpack.c.h.b16 %v202
    %v812 = vunpack.c.l.b16 %v203
    %v813 = vunpack.c.h.b16 %v203
    %v814 = vunpack.c.l.b16 %v204
    %v815 = vunpack.c.h.b16 %v204
    %v816 = vunpack.c.l.b16 %v205
    %v817 = vunpack.c.l.b16 %v206
    %v818 = vunpack.c.h.b16 %v206
    %v819 = vunpack.c.l.b16 %v207
    %v820 = vunpack.c.h.b16 %v207
    %v821 = vunpack.c.l.b16 %v208
    %v822 = vunpack.c.h.b16 %v208
    %v823 = vunpack.c.l.b16 %v209
    %v824 = vunpack.c.h.b16 %v209
    %v825 = vunpack.c.l.b16 %v210
    %v826 = vunpack.c.l.b16 %v211
    %v827 = vunpack.c.h.b16 %v211
    %v828 = vunpack.c.l.b16 %v212
    %v829 = vunpack.c.h.b16 %v212
    %v830 = vunpack.c.l.b16 %v213
    %v831 = vunpack.c.h.b16 %v213
    %v832 = vunpack.c.l.b16 %v214
    %v833 = vunpack.c.h.b16 %v214
    %v834 = vunpack.c.l.b16 %v215
    %v835 = vunpack.c.l.b16 %v216
    %v836 = vunpack.c.h.b16 %v216
    %v837 = vunpack.c.l.b16 %v217
    %v838 = vunpack.c.h.b16 %v217
    %v839 = vunpack.c.l.b16 %v218
    %v840 = vunpack.c.h.b16 %v218
    %v841 = vunpack.c.l.b16 %v219
    %v842 = vunpack.c.h.b16 %v219
    %v843 = vunpack.c.l.b16 %v220
    %v844 = vunpack.c.l.b16 %v221
    %v845 = vunpack.c.h.b16 %v221
    %v846 = vunpack.c.l.b16 %v222
    %v847 = vunpack.c.h.b16 %v222
    %v848 = vunpack.c.l.b16 %v223
    %v849 = vunpack.c.h.b16 %v223
    %v850 = vunpack.c.l.b16 %v224
    %v851 = vunpack.c.h.b16 %v224
    %v852 = vunpack.c.l.b16 %v225
    %v853 = vunpack.c.l.b16 %v226
    %v854 = vunpack.c.h.b16 %v226
    %v855 = vunpack.c.l.b16 %v227
    %v856 = vunpack.c.h.b16 %v227
    %v857 = vunpack.c.l.b16 %v228
    %v858 = vunpack.c.h.b16 %v228
    %v859 = vunpack.c.l.b16 %v229
    %v860 = vunpack.c.h.b16 %v229
    %v861 = vunpack.c.l.b16 %v230
    %v862 = vunpack.c.l.b16 %v231
    %v863 = vunpack.c.h.b16 %v231
    %v864 = vunpack.c.l.b16 %v232
    %v865 = vunpack.c.h.b16 %v232
    %v866 = vunpack.c.l.b16 %v233
    %v867 = vunpack.c.h.b16 %v233
    %v868 = vunpack.c.l.b16 %v234
    %v869 = vunpack.c.h.b16 %v234
    %v870 = vunpack.c.l.b16 %v235
    %v871 = vunpack.c.l.b16 %v236
    %v872 = vunpack.c.h.b16 %v236
    %v873 = vunpack.c.l.b16 %v237
    %v874 = vunpack.c.h.b16 %v237
    %v875 = vunpack.c.l.b16 %v238
    %v876 = vunpack.c.h.b16 %v238
    %v877 = vunpack.c.l.b16 %v239
    %v878 = vunpack.c.h.b16 %v239
    %v879 = vunpack.c.l.b16 %v240
    %v880 = vunpack.c.l.b16 %v241
    %v881 = vunpack.c.h.b16 %v241
    %v882 = vunpack.c.l.b16 %v242
    %v883 = vunpack.c.h.b16 %v242
    %v884 = vunpack.c.l.b16 %v243
    %v885 = vunpack.c.h.b16 %v243
    %v886 = vunpack.c.l.b16 %v244
    %v887 = vunpack.c.h.b16 %v244
    %v888 = vunpack.c.l.b16 %v245
    %v889 = vunpack.c.l.b16 %v246
    %v890 = vunpack.c.h.b16 %v246
    %v891 = vunpack.c.l.b16 %v247
    %v892 = vunpack.c.h.b16 %v247
    %v893 = vunpack.c.l.b16 %v248
    %v894 = vunpack.c.h.b16 %v248
    %v895 = vunpack.c.l.b16 %v249
    %v896 = vunpack.c.h.b16 %v249
    %v897 = vunpack.c.l.b16 %v250
    %v898 = vunpack.c.l.b16 %v251
    %v899 = vunpack.c.h.b16 %v251
    %v900 = vunpack.c.l.b16 %v252
    %v901 = vunpack.c.h.b16 %v252
    %v902 = vunpack.c.l.b16 %v253
    %v903 = vunpack.c.h.b16 %v253
    %v904 = vunpack.c.l.b16 %v254
    %v905 = vunpack.c.h.b16 %v254
    %v906 = vunpack.c.l.b16 %v255
    %v907 = vunpack.c.l.b16 %v256
    %v908 = vunpack.c.h.b16 %v256
    %v909 = vunpack.c.l.b16 %v257
    %v910 = vunpack.c.h.b16 %v257
    %v911 = vunpack.c.l.b16 %v258
    %v912 = vunpack.c.h.b16 %v258
    %v913 = vunpack.c.l.b16 %v259
    %v914 = vunpack.c.h.b16 %v259
    %v915 = vunpack.c.l.b16 %v260
    %v916 = vunpack.c.l.b16 %v261
    %v917 = vunpack.c.h.b16 %v261
    %v918 = vunpack.c.l.b16 %v262
    %v919 = vunpack.c.h.b16 %v262
    %v920 = vunpack.c.l.b16 %v263
    %v921 = vunpack.c.h.b16 %v263
    %v922 = vunpack.c.l.b16 %v264
    %v923 = vunpack.c.h.b16 %v264
    %v924 = vunpack.c.l.b16 %v265
    %v925 = vpack.c.b16 %v619, %v610
    %v926 = vpack.c.b16 %v620, %v611
    %v927 = vpack.c.b16 %v621, %v612
    %v928 = vpack.c.b16 %v622, %v613
    %v929 = vpack.c.b16 %v623, %v614
    %v930 = vpack.c.b16 %v624, %v615
    %v931 = vpack.c.b16 %v625, %v616
    %v932 = vpack.c.b16 %v626, %v617
    %v933 = vpack.c.b16 %v627, %v618
    %v934 = vpack.c.b16 %v637, %v628
    %v935 = vpack.c.b16 %v638, %v629
    %v936 = vpack.c.b16 %v639, %v630
    %v937 = vpack.c.b16 %v640, %v631
    %v938 = vpack.c.b16 %v641, %v632
    %v939 = vpack.c.b16 %v642, %v633
    %v940 = vpack.c.b16 %v643, %v634
    %v941 = vpack.c.b16 %v644, %v635
    %v942 = vpack.c.b16 %v645, %v636
    %v943 = vpack.c.b16 %v655, %v646
    %v944 = vpack.c.b16 %v656, %v647
    %v945 = vpack.c.b16 %v657, %v648
    %v946 = vpack.c.b16 %v658, %v649
    %v947 = vpack.c.b16 %v659, %v650
    %v948 = vpack.c.b16 %v660, %v651
    %v949 = vpack.c.b16 %v661, %v652
    %v950 = vpack.c.b16 %v662, %v653
    %v951 = vpack.c.b16 %v663, %v654
    %v952 = vpack.c.b16 %v673, %v664
    %v953 = vpack.c.b16 %v674, %v665
    %v954 = vpack.c.b16 %v675, %v666
    %v955 = vpack.c.b16 %v676, %v667
    %v956 = vpack.c.b16 %v677, %v668
    %v957 = vpack.c.b16 %v678, %v669
    %v958 = vpack.c.b16 %v679, %v670
    %v959 = vpack.c.b16 %v680, %v671
    %v960 = vpack.c.b16 %v681, %v672
    %v961 = vpack.c.b16 %v691, %v682
    %v962 = vpack.c.b16 %v692, %v683
    %v963 = vpack.c.b16 %v693, %v684
    %v964 = vpack.c.b16 %v694, %v685
    %v965 = vpack.c.b16 %v695, %v686
    %v966 = vpack.c.b16 %v696, %v687
    %v967 = vpack.c.b16 %v697, %v688
    %v968 = vpack.c.b16 %v698, %v689
    %v969 = vpack.c.b16 %v699, %v690
    %v970 = vpack.c.b16 %v709, %v700
    %v971 = vpack.c.b16 %v710, %v701
    %v972 = vpack.c.b16 %v711, %v702
    %v973 = vpack.c.b16 %v712, %v703
    %v974 = vpack.c.b16 %v713, %v704
    %v975 = vpack.c.b16 %v714, %v705
    %v976 = vpack.c.b16 %v715, %v706
    %v977 = vpack.c.b16 %v716, %v707
    %v978 = vpack.c.b16 %v717, %v708
    %v979 = vpack.c.b16 %v727, %v718
    %v980 = vpack.c.b16 %v728, %v719
    %v981 = vpack.c.b16 %v729, %v720
    %v982 = vpack.c.b16 %v730, %v721
    %v983 = vpack.c.b16 %v731, %v722
    %v984 = vpack.c.b16 %v732, %v723
    %v985 = vpack.c.b16 %v733, %v724
    %v986 = vpack.c.b16 %v734, %v725
    %v987 = vpack.c.b16 %v735, %v726
    %v988 = vpack.c.b16 %v745, %v736
    %v989 = vpack.c.b16 %v746, %v737
    %v990 = vpack.c.b16 %v747, %v738
    %v991 = vpack.c.b16 %v748, %v739
    %v992 = vpack.c.b16 %v749, %v740
    %v993 = vpack.c.b16 %v750, %v741
    %v994 = vpack.c.b16 %v751, %v742
    %v995 = vpack.c.b16 %v752, %v743
    %v996 = vpack.c.b16 %v753, %v744
    %v997 = vpack.c.b16 %v763, %v754
    %v998 = vpack.c.b16 %v764, %v755
    %v999 = vpack.c.b16 %v765, %v756
    %v1000 = vpack.c.b16 %v766, %v757
    %v1001 = vpack.c.b16 %v767, %v758
    %v1002 = vpack.c.b16 %v768, %v759
    %v1003 = vpack.c.b16 %v769, %v760
    %v1004 = vpack.c.b16 %v770, %v761
    %v1005 = vpack.c.b16 %v771, %v762
    %v1006 = vpack.c.b16 %v781, %v772
    %v1007 = vpack.c.b16 %v782, %v773
    %v1008 = vpack.c.b16 %v783, %v774
    %v1009 = vpack.c.b16 %v784, %v775
    %v1010 = vpack.c.b16 %v785, %v776
    %v1011 = vpack.c.b16 %v786, %v777
    %v1012 = vpack.c.b16 %v787, %v778
    %v1013 = vpack.c.b16 %v788, %v779
    %v1014 = vpack.c.b16 %v789, %v780
    %v1015 = vpack.c.b16 %v799, %v790
    %v1016 = vpack.c.b16 %v800, %v791
    %v1017 = vpack.c.b16 %v801, %v792
    %v1018 = vpack.c.b16 %v802, %v793
    %v1019 = vpack.c.b16 %v803, %v794
    %v1020 = vpack.c.b16 %v804, %v795
    %v1021 = vpack.c.b16 %v805, %v796
    %v1022 = vpack.c.b16 %v806, %v797
    %v1023 = vpack.c.b16 %v807, %v798
    %v1024 = vpack.c.b16 %v817, %v808
    %v1025 = vpack.c.b16 %v818, %v809
    %v1026 = vpack.c.b16 %v819, %v810
    %v1027 = vpack.c.b16 %v820, %v811
    %v1028 = vpack.c.b16 %v821, %v812
    %v1029 = vpack.c.b16 %v822, %v813
    %v1030 = vpack.c.b16 %v823, %v814
    %v1031 = vpack.c.b16 %v824, %v815
    %v1032 = vpack.c.b16 %v825, %v816
    %v1033 = vpack.c.b16 %v835, %v826
    %v1034 = vpack.c.b16 %v836, %v827
    %v1035 = vpack.c.b16 %v837, %v828
    %v1036 = vpack.c.b16 %v838, %v829
    %v1037 = vpack.c.b16 %v839, %v830
    %v1038 = vpack.c.b16 %v840, %v831
    %v1039 = vpack.c.b16 %v841, %v832
    %v1040 = vpack.c.b16 %v842, %v833
    %v1041 = vpack.c.b16 %v843, %v834
    %v1042 = vpack.c.b16 %v853, %v844
    %v1043 = vpack.c.b16 %v854, %v845
    %v1044 = vpack.c.b16 %v855, %v846
    %v1045 = vpack.c.b16 %v856, %v847
    %v1046 = vpack.c.b16 %v857, %v848
    %v1047 = vpack.c.b16 %v858, %v849
    %v1048 = vpack.c.b16 %v859, %v850
    %v1049 = vpack.c.b16 %v860, %v851
    %v1050 = vpack.c.b16 %v861, %v852
    %v1051 = vpack.c.b16 %v871, %v862
    %v1052 = vpack.c.b16 %v872, %v863
    %v1053 = vpack.c.b16 %v873, %v864
    %v1054 = vpack.c.b16 %v874, %v865
    %v1055 = vpack.c.b16 %v875, %v866
    %v1056 = vpack.c.b16 %v876, %v867
    %v1057 = vpack.c.b16 %v877, %v868
    %v1058 = vpack.c.b16 %v878, %v869
    %v1059 = vpack.c.b16 %v879, %v870
    %v1060 = vpack.c.b16 %v889, %v880
    %v1061 = vpack.c.b16 %v890, %v881
    %v1062 = vpack.c.b16 %v891, %v882
    %v1063 = vpack.c.b16 %v892, %v883
    %v1064 = vpack.c.b16 %v893, %v884
    %v1065 = vpack.c.b16 %v894, %v885
    %v1066 = vpack.c.b16 %v895, %v886
    %v1067 = vpack.c.b16 %v896, %v887
    %v1068 = vpack.c.b16 %v897, %v888
    %v1069 = vpack.c.b16 %v907, %v898
    %v1070 = vpack.c.b16 %v908, %v899
    %v1071 = vpack.c.b16 %v909, %v900
    %v1072 = vpack.c.b16 %v910, %v901
    %v1073 = vpack.c.b16 %v911, %v902
    %v1074 = vpack.c.b16 %v912, %v903
    %v1075 = vpack.c.b16 %v913, %v904
    %v1076 = vpack.c.b16 %v914, %v905
    %v1077 = vpack.c.b16 %v915, %v906
    %v1078 = vpack.c.b16 %v916, %v916
    %v1079 = vpack.c.b16 %v917, %v917
    %v1080 = vpack.c.b16 %v918, %v918
    %v1081 = vpack.c.b16 %v919, %v919
    %v1082 = vpack.c.b16 %v920, %v920
    %v1083 = vpack.c.b16 %v921, %v921
    %v1084 = vpack.c.b16 %v922, %v922
    %v1085 = vpack.c.b16 %v923, %v923
    %v1086 = vpack.c.b16 %v924, %v924
    %vm1240 = vcmask 195584
    %v1242 = vsel %vm1240, %v397, 0
    %v1245 = vsel %vm1240, %v400, 0
    %v1248 = vsel %vm1240, %v403, 0
    %v1251 = vsel %vm1240, %v406, 0
    %v1254 = vsel %vm1240, %v409, 0
    %v1257 = vsel %vm1240, %v412, 0
    %v1260 = vsel %vm1240, %v415, 0
    %v1263 = vsel %vm1240, %v418, 0
    %vm1265 = vcmask 1043456
    %v1267 = vsel %vm1265, %v1078, 0
    %v1270 = vsel %vm1265, %v1079, 0
    %v1273 = vsel %vm1265, %v1080, 0
    %v1276 = vsel %vm1265, %v1081, 0
    %v1279 = vsel %vm1265, %v1082, 0
    %v1282 = vsel %vm1265, %v1083, 0
    %v1285 = vsel %vm1265, %v1084, 0
    %v1288 = vsel %vm1265, %v1085, 0
    %v1291 = vsel %vm1265, %v1086, 0
    %1293 = vmatprep.subr.bf16.mxu0 %v926
    %1294 = vmatpush1.bf16.msra.mxu0 %v925
    %1295 = vmatprep.subr.bf16.mxu0 %v935
    %1296 = vmatpush1.bf16.msra.mxu0 %v934
    %1297 = vmatprep.subr.bf16.mxu0 %v944
    %1298 = vmatpush1.bf16.msra.mxu0 %v943
    %1299 = vmatprep.subr.bf16.mxu0 %v953
    %1300 = vmatpush1.bf16.msra.mxu0 %v952
    %1301 = vmatprep.subr.bf16.mxu0 %v962
    %1302 = vmatpush1.bf16.msra.mxu0 %v961
    %1303 = vmatprep.subr.bf16.mxu0 %v971
    %1304 = vmatpush1.bf16.msra.mxu0 %v970
    %1305 = vmatprep.subr.bf16.mxu0 %v980
    %1306 = vmatpush1.bf16.msra.mxu0 %v979
    %1307 = vmatprep.subr.bf16.mxu0 %v989
    %1308 = vmatpush1.bf16.msra.mxu0 %v988
    %1309 = vmatprep.subr.bf16.mxu0 %v998
    %1310 = vmatpush1.bf16.msra.mxu0 %v997
    %1311 = vmatprep.subr.bf16.mxu0 %v1007
    %1312 = vmatpush1.bf16.msra.mxu0 %v1006
    %1313 = vmatprep.subr.bf16.mxu0 %v1016
    %1314 = vmatpush1.bf16.msra.mxu0 %v1015
    %1315 = vmatprep.subr.bf16.mxu0 %v1025
    %1316 = vmatpush1.bf16.msra.mxu0 %v1024
    %1317 = vmatprep.subr.bf16.mxu0 %v1034
    %1318 = vmatpush1.bf16.msra.mxu0 %v1033
    %1319 = vmatprep.subr.bf16.mxu0 %v1043
    %1320 = vmatpush1.bf16.msra.mxu0 %v1042
    %1321 = vmatprep.subr.bf16.mxu0 %v1052
    %1322 = vmatpush1.bf16.msra.mxu0 %v1051
    %1323 = vmatprep.subr.bf16.mxu0 %v1061
    %1324 = vmatpush1.bf16.msra.mxu0 %v1060
    %1325 = vmatprep.mubr.bf16.mxu0 %v396
    %1326 = vmatmul.mubr.bf16.gmra.mrb[0].mxu0 %v395
    %v1327 = vpop.f32.mrb[0].mxu0
    %v1328 = vadd.f32 %v273, %v1327
    %v1329 = vpop.f32.mrb[0].mxu0
    %v1330 = vadd.f32 %v277, %v1329
    %v1331 = vpop.f32.mrb[0].mxu0
    %v1332 = vadd.f32 %v273, %v1331
    %v1333 = vpop.f32.mrb[0].mxu0
    %v1334 = vadd.f32 %v277, %v1333
    %1335 = vmatprep.mubr.bf16.mxu0 %v399
    %1336 = vmatmul.mubr.bf16.gmra.mrb[0].mxu0 %v398
    %v1337 = vpop.f32.mrb[0].mxu0
    %v1338 = vadd.f32 %v273, %v1337
    %v1339 = vpop.f32.mrb[0].mxu0
    %v1340 = vadd.f32 %v277, %v1339
    %v1341 = vpop.f32.mrb[0].mxu0
    %v1342 = vadd.f32 %v273, %v1341
    %v1343 = vpop.f32.mrb[0].mxu0
    %v1344 = vadd.f32 %v277, %v1343
    %1345 = vmatprep.mubr.bf16.mxu0 %v402
    %1346 = vmatmul.mubr.bf16.gmra.mrb[0].mxu0 %v401
    %v1347 = vpop.f32.mrb[0].mxu0
    %v1348 = vadd.f32 %v273, %v1347
    %v1349 = vpop.f32.mrb[0].mxu0
    %v1350 = vadd.f32 %v277, %v1349
    %v1351 = vpop.f32.mrb[0].mxu0
    %v1352 = vadd.f32 %v273, %v1351
    %v1353 = vpop.f32.mrb[0].mxu0
    %v1354 = vadd.f32 %v277, %v1353
    %1355 = vmatprep.mubr.bf16.mxu0 %v405
    %1356 = vmatmul.mubr.bf16.gmra.mrb[0].mxu0 %v404
    %v1357 = vpop.f32.mrb[0].mxu0
    %v1358 = vadd.f32 %v273, %v1357
    %v1359 = vpop.f32.mrb[0].mxu0
    %v1360 = vadd.f32 %v277, %v1359
    %v1361 = vpop.f32.mrb[0].mxu0
    %v1362 = vadd.f32 %v273, %v1361
    %v1363 = vpop.f32.mrb[0].mxu0
    %v1364 = vadd.f32 %v277, %v1363
    %1365 = vmatprep.mubr.bf16.mxu0 %v408
    %1366 = vmatmul.mubr.bf16.gmra.mrb[0].mxu0 %v407
    %v1367 = vpop.f32.mrb[0].mxu0
    %v1368 = vadd.f32 %v273, %v1367
    %v1369 = vpop.f32.mrb[0].mxu0
    %v1370 = vadd.f32 %v277, %v1369
    %v1371 = vpop.f32.mrb[0].mxu0
    %v1372 = vadd.f32 %v273, %v1371
    %v1373 = vpop.f32.mrb[0].mxu0
    %v1374 = vadd.f32 %v277, %v1373
    %1375 = vmatprep.mubr.bf16.mxu0 %v411
    %1376 = vmatmul.mubr.bf16.gmra.mrb[0].mxu0 %v410
    %v1377 = vpop.f32.mrb[0].mxu0
    %v1378 = vadd.f32 %v273, %v1377
    %v1379 = vpop.f32.mrb[0].mxu0
    %v1380 = vadd.f32 %v277, %v1379
    %v1381 = vpop.f32.mrb[0].mxu0
    %v1382 = vadd.f32 %v273, %v1381
    %v1383 = vpop.f32.mrb[0].mxu0
    %v1384 = vadd.f32 %v277, %v1383
    %1385 = vmatprep.mubr.bf16.mxu0 %v414
    %1386 = vmatmul.mubr.bf16.gmra.mrb[0].mxu0 %v413
    %v1387 = vpop.f32.mrb[0].mxu0
    %v1388 = vadd.f32 %v273, %v1387
    %v1389 = vpop.f32.mrb[0].mxu0
    %v1390 = vadd.f32 %v277, %v1389
    %v1391 = vpop.f32.mrb[0].mxu0
    %v1392 = vadd.f32 %v273, %v1391
    %v1393 = vpop.f32.mrb[0].mxu0
    %v1394 = vadd.f32 %v277, %v1393
    %1395 = vmatprep.mubr.bf16.mxu0 %v417
    %1396 = vmatmul.mubr.bf16.gmra.mrb[0].mxu0 %v416
    %v1397 = vpop.f32.mrb[0].mxu0
    %v1398 = vadd.f32 %v273, %v1397
    %v1399 = vpop.f32.mrb[0].mxu0
    %v1400 = vadd.f32 %v277, %v1399
    %v1401 = vpop.f32.mrb[0].mxu0
    %v1402 = vadd.f32 %v273, %v1401
    %v1403 = vpop.f32.mrb[0].mxu0
    %v1404 = vadd.f32 %v277, %v1403
    %1405 = vdwg.mxu0
    %1406 = vmatprep.subr.bf16.mxu0 %v1070
    %1407 = vmatpush1.bf16.msra.mxu0 %v1069
    %1408 = vmatprep.subr.bf16.mxu0 %v1270
    %1409 = vmatpush1.bf16.msra.mxu0 %v1267
    %1410 = vmatprep.subr.bf16.mxu0 0
    %1411 = vmatpush1.bf16.msra.mxu0 0
    %1412 = vmatprep.subr.bf16.mxu0 0
    %1413 = vmatpush1.bf16.msra.mxu0 0
    %1414 = vmatprep.subr.bf16.mxu0 0
    %1415 = vmatpush1.bf16.msra.mxu0 0
    %1416 = vmatprep.subr.bf16.mxu0 0
    %1417 = vmatpush1.bf16.msra.mxu0 0
    %1418 = vmatprep.subr.bf16.mxu0 0
    %1419 = vmatpush1.bf16.msra.mxu0 0
    %1420 = vmatprep.subr.bf16.mxu0 0
    %1421 = vmatpush1.bf16.msra.mxu0 0
    %1422 = vmatprep.subr.bf16.mxu0 0
    %1423 = vmatpush1.bf16.msra.mxu0 0
    %1424 = vmatprep.subr.bf16.mxu0 0
    %1425 = vmatpush1.bf16.msra.mxu0 0
    %1426 = vmatprep.subr.bf16.mxu0 0
    %1427 = vmatpush1.bf16.msra.mxu0 0
    %1428 = vmatprep.subr.bf16.mxu0 0
    %1429 = vmatpush1.bf16.msra.mxu0 0
    %1430 = vmatprep.subr.bf16.mxu0 0
    %1431 = vmatpush1.bf16.msra.mxu0 0
    %1432 = vmatprep.subr.bf16.mxu0 0
    %1433 = vmatpush1.bf16.msra.mxu0 0
    %1434 = vmatprep.subr.bf16.mxu0 0
    %1435 = vmatpush1.bf16.msra.mxu0 0
    %1436 = vmatprep.subr.bf16.mxu0 0
    %1437 = vmatpush1.bf16.msra.mxu0 0
    %1438 = vmatprep.mubr.bf16.mxu0 0
    %1439 = vmatmul.mubr.bf16.gmra.mrb[0].mxu0 %v1242
    %v1440 = vpop.f32.mrb[0].mxu0
    %v1441 = vadd.f32 %v1328, %v1440
    %v1442 = vpop.f32.mrb[0].mxu0
    %v1443 = vadd.f32 %v1330, %v1442
    %v1444 = vpop.f32.mrb[0].mxu0
    %v1445 = vadd.f32 %v1332, %v1444
    %v1446 = vpop.f32.mrb[0].mxu0
    %v1447 = vadd.f32 %v1334, %v1446
    %1448 = vmatprep.mubr.bf16.mxu0 0
    %1449 = vmatmul.mubr.bf16.gmra.mrb[0].mxu0 %v1245
    %v1450 = vpop.f32.mrb[0].mxu0
    %v1451 = vadd.f32 %v1338, %v1450
    %v1452 = vpop.f32.mrb[0].mxu0
    %v1453 = vadd.f32 %v1340, %v1452
    %v1454 = vpop.f32.mrb[0].mxu0
    %v1455 = vadd.f32 %v1342, %v1454
    %v1456 = vpop.f32.mrb[0].mxu0
    %v1457 = vadd.f32 %v1344, %v1456
    %1458 = vmatprep.mubr.bf16.mxu0 0
    %1459 = vmatmul.mubr.bf16.gmra.mrb[0].mxu0 %v1248
    %v1460 = vpop.f32.mrb[0].mxu0
    %v1461 = vadd.f32 %v1348, %v1460
    %v1462 = vpop.f32.mrb[0].mxu0
    %v1463 = vadd.f32 %v1350, %v1462
    %v1464 = vpop.f32.mrb[0].mxu0
    %v1465 = vadd.f32 %v1352, %v1464
    %v1466 = vpop.f32.mrb[0].mxu0
    %v1467 = vadd.f32 %v1354, %v1466
    %1468 = vmatprep.mubr.bf16.mxu0 0
    %1469 = vmatmul.mubr.bf16.gmra.mrb[0].mxu0 %v1251
    %v1470 = vpop.f32.mrb[0].mxu0
    %v1471 = vadd.f32 %v1358, %v1470
    %v1472 = vpop.f32.mrb[0].mxu0
    %v1473 = vadd.f32 %v1360, %v1472
    %v1474 = vpop.f32.mrb[0].mxu0
    %v1475 = vadd.f32 %v1362, %v1474
    %v1476 = vpop.f32.mrb[0].mxu0
    %v1477 = vadd.f32 %v1364, %v1476
    %1478 = vmatprep.mubr.bf16.mxu0 0
    %1479 = vmatmul.mubr.bf16.gmra.mrb[0].mxu0 %v1254
    %v1480 = vpop.f32.mrb[0].mxu0
    %v1481 = vadd.f32 %v1368, %v1480
    %v1482 = vpop.f32.mrb[0].mxu0
    %v1483 = vadd.f32 %v1370, %v1482
    %v1484 = vpop.f32.mrb[0].mxu0
    %v1485 = vadd.f32 %v1372, %v1484
    %v1486 = vpop.f32.mrb[0].mxu0
    %v1487 = vadd.f32 %v1374, %v1486
    %1488 = vmatprep.mubr.bf16.mxu0 0
    %1489 = vmatmul.mubr.bf16.gmra.mrb[0].mxu0 %v1257
    %v1490 = vpop.f32.mrb[0].mxu0
    %v1491 = vadd.f32 %v1378, %v1490
    %v1492 = vpop.f32.mrb[0].mxu0
    %v1493 = vadd.f32 %v1380, %v1492
    %v1494 = vpop.f32.mrb[0].mxu0
    %v1495 = vadd.f32 %v1382, %v1494
    %v1496 = vpop.f32.mrb[0].mxu0
    %v1497 = vadd.f32 %v1384, %v1496
    %1498 = vmatprep.mubr.bf16.mxu0 0
    %1499 = vmatmul.mubr.bf16.gmra.mrb[0].mxu0 %v1260
    %v1500 = vpop.f32.mrb[0].mxu0
    %v1501 = vadd.f32 %v1388, %v1500
    %v1502 = vpop.f32.mrb[0].mxu0
    %v1503 = vadd.f32 %v1390, %v1502
    %v1504 = vpop.f32.mrb[0].mxu0
    %v1505 = vadd.f32 %v1392, %v1504
    %v1506 = vpop.f32.mrb[0].mxu0
    %v1507 = vadd.f32 %v1394, %v1506
    %1508 = vmatprep.mubr.bf16.mxu0 0
    %1509 = vmatmul.mubr.bf16.gmra.mrb[0].mxu0 %v1263
    %v1510 = vpop.f32.mrb[0].mxu0
    %v1511 = vadd.f32 %v1398, %v1510
    %v1512 = vpop.f32.mrb[0].mxu0
    %v1513 = vadd.f32 %v1400, %v1512
    %v1514 = vpop.f32.mrb[0].mxu0
    %v1515 = vadd.f32 %v1402, %v1514
    %v1516 = vpop.f32.mrb[0].mxu0
    %v1517 = vadd.f32 %v1404, %v1516
    %1518 = vdwg.mxu0
    %1519 = vmatprep.subr.bf16.mxu0 %v928
    %1520 = vmatpush1.bf16.msra.mxu0 %v927
    %1521 = vmatprep.subr.bf16.mxu0 %v937
    %1522 = vmatpush1.bf16.msra.mxu0 %v936
    %1523 = vmatprep.subr.bf16.mxu0 %v946
    %1524 = vmatpush1.bf16.msra.mxu0 %v945
    %1525 = vmatprep.subr.bf16.mxu0 %v955
    %1526 = vmatpush1.bf16.msra.mxu0 %v954
    %1527 = vmatprep.subr.bf16.mxu0 %v964
    %1528 = vmatpush1.bf16.msra.mxu0 %v963
    %1529 = vmatprep.subr.bf16.mxu0 %v973
    %1530 = vmatpush1.bf16.msra.mxu0 %v972
    %1531 = vmatprep.subr.bf16.mxu0 %v982
    %1532 = vmatpush1.bf16.msra.mxu0 %v981
    %1533 = vmatprep.subr.bf16.mxu0 %v991
    %1534 = vmatpush1.bf16.msra.mxu0 %v990
    %1535 = vmatprep.subr.bf16.mxu0 %v1000
    %1536 = vmatpush1.bf16.msra.mxu0 %v999
    %1537 = vmatprep.subr.bf16.mxu0 %v1009
    %1538 = vmatpush1.bf16.msra.mxu0 %v1008
    %1539 = vmatprep.subr.bf16.mxu0 %v1018
    %1540 = vmatpush1.bf16.msra.mxu0 %v1017
    %1541 = vmatprep.subr.bf16.mxu0 %v1027
    %1542 = vmatpush1.bf16.msra.mxu0 %v1026
    %1543 = vmatprep.subr.bf16.mxu0 %v1036
    %1544 = vmatpush1.bf16.msra.mxu0 %v1035
    %1545 = vmatprep.subr.bf16.mxu0 %v1045
    %1546 = vmatpush1.bf16.msra.mxu0 %v1044
    %1547 = vmatprep.subr.bf16.mxu0 %v1054
    %1548 = vmatpush1.bf16.msra.mxu0 %v1053
    %1549 = vmatprep.subr.bf16.mxu0 %v1063
    %1550 = vmatpush1.bf16.msra.mxu0 %v1062
    %1551 = vmatprep.mubr.bf16.mxu0 %v396
    %1552 = vmatmul.mubr.bf16.gmra.mrb[0].mxu0 %v395
    %v1553 = vpop.f32.mrb[0].mxu0
    %v1554 = vadd.f32 %v281, %v1553
    %v1555 = vpop.f32.mrb[0].mxu0
    %v1556 = vadd.f32 %v285, %v1555
    %v1557 = vpop.f32.mrb[0].mxu0
    %v1558 = vadd.f32 %v281, %v1557
    %v1559 = vpop.f32.mrb[0].mxu0
    %v1560 = vadd.f32 %v285, %v1559
    %1561 = vmatprep.mubr.bf16.mxu0 %v399
    %1562 = vmatmul.mubr.bf16.gmra.mrb[0].mxu0 %v398
    %v1563 = vpop.f32.mrb[0].mxu0
    %v1564 = vadd.f32 %v281, %v1563
    %v1565 = vpop.f32.mrb[0].mxu0
    %v1566 = vadd.f32 %v285, %v1565
    %v1567 = vpop.f32.mrb[0].mxu0
    %v1568 = vadd.f32 %v281, %v1567
    %v1569 = vpop.f32.mrb[0].mxu0
    %v1570 = vadd.f32 %v285, %v1569
    %1571 = vmatprep.mubr.bf16.mxu0 %v402
    %1572 = vmatmul.mubr.bf16.gmra.mrb[0].mxu0 %v401
    %v1573 = vpop.f32.mrb[0].mxu0
    %v1574 = vadd.f32 %v281, %v1573
    %v1575 = vpop.f32.mrb[0].mxu0
    %v1576 = vadd.f32 %v285, %v1575
    %v1577 = vpop.f32.mrb[0].mxu0
    %v1578 = vadd.f32 %v281, %v1577
    %v1579 = vpop.f32.mrb[0].mxu0
    %v1580 = vadd.f32 %v285, %v1579
    %1581 = vmatprep.mubr.bf16.mxu0 %v405
    %1582 = vmatmul.mubr.bf16.gmra.mrb[0].mxu0 %v404
    %v1583 = vpop.f32.mrb[0].mxu0
    %v1584 = vadd.f32 %v281, %v1583
    %v1585 = vpop.f32.mrb[0].mxu0
    %v1586 = vadd.f32 %v285, %v1585
    %v1587 = vpop.f32.mrb[0].mxu0
    %v1588 = vadd.f32 %v281, %v1587
    %v1589 = vpop.f32.mrb[0].mxu0
    %v1590 = vadd.f32 %v285, %v1589
    %1591 = vmatprep.mubr.bf16.mxu0 %v408
    %1592 = vmatmul.mubr.bf16.gmra.mrb[0].mxu0 %v407
    %v1593 = vpop.f32.mrb[0].mxu0
    %v1594 = vadd.f32 %v281, %v1593
    %v1595 = vpop.f32.mrb[0].mxu0
    %v1596 = vadd.f32 %v285, %v1595
    %v1597 = vpop.f32.mrb[0].mxu0
    %v1598 = vadd.f32 %v281, %v1597
    %v1599 = vpop.f32.mrb[0].mxu0
    %v1600 = vadd.f32 %v285, %v1599
    %1601 = vmatprep.mubr.bf16.mxu0 %v411
    %1602 = vmatmul.mubr.bf16.gmra.mrb[0].mxu0 %v410
    %v1603 = vpop.f32.mrb[0].mxu0
    %v1604 = vadd.f32 %v281, %v1603
    %v1605 = vpop.f32.mrb[0].mxu0
    %v1606 = vadd.f32 %v285, %v1605
    %v1607 = vpop.f32.mrb[0].mxu0
    %v1608 = vadd.f32 %v281, %v1607
    %v1609 = vpop.f32.mrb[0].mxu0
    %v1610 = vadd.f32 %v285, %v1609
    %1611 = vmatprep.mubr.bf16.mxu0 %v414
    %1612 = vmatmul.mubr.bf16.gmra.mrb[0].mxu0 %v413
    %v1613 = vpop.f32.mrb[0].mxu0
    %v1614 = vadd.f32 %v281, %v1613
    %v1615 = vpop.f32.mrb[0].mxu0
    %v1616 = vadd.f32 %v285, %v1615
    %v1617 = vpop.f32.mrb[0].mxu0
    %v1618 = vadd.f32 %v281, %v1617
    %v1619 = vpop.f32.mrb[0].mxu0
    %v1620 = vadd.f32 %v285, %v1619
    %1621 = vmatprep.mubr.bf16.mxu0 %v417
    %1622 = vmatmul.mubr.bf16.gmra.mrb[0].mxu0 %v416
    %v1623 = vpop.f32.mrb[0].mxu0
    %v1624 = vadd.f32 %v281, %v1623
    %v1625 = vpop.f32.mrb[0].mxu0
    %v1626 = vadd.f32 %v285, %v1625
    %v1627 = vpop.f32.mrb[0].mxu0
    %v1628 = vadd.f32 %v281, %v1627
    %v1629 = vpop.f32.mrb[0].mxu0
    %v1630 = vadd.f32 %v285, %v1629
    %1631 = vdwg.mxu0
    %1632 = vmatprep.subr.bf16.mxu0 %v1072
    %1633 = vmatpush1.bf16.msra.mxu0 %v1071
    %1634 = vmatprep.subr.bf16.mxu0 %v1276
    %1635 = vmatpush1.bf16.msra.mxu0 %v1273
    %1636 = vmatprep.subr.bf16.mxu0 0
    %1637 = vmatpush1.bf16.msra.mxu0 0
    %1638 = vmatprep.subr.bf16.mxu0 0
    %1639 = vmatpush1.bf16.msra.mxu0 0
    %1640 = vmatprep.subr.bf16.mxu0 0
    %1641 = vmatpush1.bf16.msra.mxu0 0
    %1642 = vmatprep.subr.bf16.mxu0 0
    %1643 = vmatpush1.bf16.msra.mxu0 0
    %1644 = vmatprep.subr.bf16.mxu0 0
    %1645 = vmatpush1.bf16.msra.mxu0 0
    %1646 = vmatprep.subr.bf16.mxu0 0
    %1647 = vmatpush1.bf16.msra.mxu0 0
    %1648 = vmatprep.subr.bf16.mxu0 0
    %1649 = vmatpush1.bf16.msra.mxu0 0
    %1650 = vmatprep.subr.bf16.mxu0 0
    %1651 = vmatpush1.bf16.msra.mxu0 0
    %1652 = vmatprep.subr.bf16.mxu0 0
    %1653 = vmatpush1.bf16.msra.mxu0 0
    %1654 = vmatprep.subr.bf16.mxu0 0
    %1655 = vmatpush1.bf16.msra.mxu0 0
    %1656 = vmatprep.subr.bf16.mxu0 0
    %1657 = vmatpush1.bf16.msra.mxu0 0
    %1658 = vmatprep.subr.bf16.mxu0 0
    %1659 = vmatpush1.bf16.msra.mxu0 0
    %1660 = vmatprep.subr.bf16.mxu0 0
    %1661 = vmatpush1.bf16.msra.mxu0 0
    %1662 = vmatprep.subr.bf16.mxu0 0
    %1663 = vmatpush1.bf16.msra.mxu0 0
    %1664 = vmatprep.mubr.bf16.mxu0 0
    %1665 = vmatmul.mubr.bf16.gmra.mrb[0].mxu0 %v1242
    %v1666 = vpop.f32.mrb[0].mxu0
    %v1667 = vadd.f32 %v1554, %v1666
    %v1668 = vpop.f32.mrb[0].mxu0
    %v1669 = vadd.f32 %v1556, %v1668
    %v1670 = vpop.f32.mrb[0].mxu0
    %v1671 = vadd.f32 %v1558, %v1670
    %v1672 = vpop.f32.mrb[0].mxu0
    %v1673 = vadd.f32 %v1560, %v1672
    %1674 = vmatprep.mubr.bf16.mxu0 0
    %1675 = vmatmul.mubr.bf16.gmra.mrb[0].mxu0 %v1245
    %v1676 = vpop.f32.mrb[0].mxu0
    %v1677 = vadd.f32 %v1564, %v1676
    %v1678 = vpop.f32.mrb[0].mxu0
    %v1679 = vadd.f32 %v1566, %v1678
    %v1680 = vpop.f32.mrb[0].mxu0
    %v1681 = vadd.f32 %v1568, %v1680
    %v1682 = vpop.f32.mrb[0].mxu0
    %v1683 = vadd.f32 %v1570, %v1682
    %1684 = vmatprep.mubr.bf16.mxu0 0
    %1685 = vmatmul.mubr.bf16.gmra.mrb[0].mxu0 %v1248
    %v1686 = vpop.f32.mrb[0].mxu0
    %v1687 = vadd.f32 %v1574, %v1686
    %v1688 = vpop.f32.mrb[0].mxu0
    %v1689 = vadd.f32 %v1576, %v1688
    %v1690 = vpop.f32.mrb[0].mxu0
    %v1691 = vadd.f32 %v1578, %v1690
    %v1692 = vpop.f32.mrb[0].mxu0
    %v1693 = vadd.f32 %v1580, %v1692
    %1694 = vmatprep.mubr.bf16.mxu0 0
    %1695 = vmatmul.mubr.bf16.gmra.mrb[0].mxu0 %v1251
    %v1696 = vpop.f32.mrb[0].mxu0
    %v1697 = vadd.f32 %v1584, %v1696
    %v1698 = vpop.f32.mrb[0].mxu0
    %v1699 = vadd.f32 %v1586, %v1698
    %v1700 = vpop.f32.mrb[0].mxu0
    %v1701 = vadd.f32 %v1588, %v1700
    %v1702 = vpop.f32.mrb[0].mxu0
    %v1703 = vadd.f32 %v1590, %v1702
    %1704 = vmatprep.mubr.bf16.mxu0 0
    %1705 = vmatmul.mubr.bf16.gmra.mrb[0].mxu0 %v1254
    %v1706 = vpop.f32.mrb[0].mxu0
    %v1707 = vadd.f32 %v1594, %v1706
    %v1708 = vpop.f32.mrb[0].mxu0
    %v1709 = vadd.f32 %v1596, %v1708
    %v1710 = vpop.f32.mrb[0].mxu0
    %v1711 = vadd.f32 %v1598, %v1710
    %v1712 = vpop.f32.mrb[0].mxu0
    %v1713 = vadd.f32 %v1600, %v1712
    %1714 = vmatprep.mubr.bf16.mxu0 0
    %1715 = vmatmul.mubr.bf16.gmra.mrb[0].mxu0 %v1257
    %v1716 = vpop.f32.mrb[0].mxu0
    %v1717 = vadd.f32 %v1604, %v1716
    %v1718 = vpop.f32.mrb[0].mxu0
    %v1719 = vadd.f32 %v1606, %v1718
    %v1720 = vpop.f32.mrb[0].mxu0
    %v1721 = vadd.f32 %v1608, %v1720
    %v1722 = vpop.f32.mrb[0].mxu0
    %v1723 = vadd.f32 %v1610, %v1722
    %1724 = vmatprep.mubr.bf16.mxu0 0
    %1725 = vmatmul.mubr.bf16.gmra.mrb[0].mxu0 %v1260
    %v1726 = vpop.f32.mrb[0].mxu0
    %v1727 = vadd.f32 %v1614, %v1726
    %v1728 = vpop.f32.mrb[0].mxu0
    %v1729 = vadd.f32 %v1616, %v1728
    %v1730 = vpop.f32.mrb[0].mxu0
    %v1731 = vadd.f32 %v1618, %v1730
    %v1732 = vpop.f32.mrb[0].mxu0
    %v1733 = vadd.f32 %v1620, %v1732
    %1734 = vmatprep.mubr.bf16.mxu0 0
    %1735 = vmatmul.mubr.bf16.gmra.mrb[0].mxu0 %v1263
    %v1736 = vpop.f32.mrb[0].mxu0
    %v1737 = vadd.f32 %v1624, %v1736
    %v1738 = vpop.f32.mrb[0].mxu0
    %v1739 = vadd.f32 %v1626, %v1738
    %v1740 = vpop.f32.mrb[0].mxu0
    %v1741 = vadd.f32 %v1628, %v1740
    %v1742 = vpop.f32.mrb[0].mxu0
    %v1743 = vadd.f32 %v1630, %v1742
    %1744 = vdwg.mxu0
    %1745 = vmatprep.subr.bf16.mxu0 %v930
    %1746 = vmatpush1.bf16.msra.mxu0 %v929
    %1747 = vmatprep.subr.bf16.mxu0 %v939
    %1748 = vmatpush1.bf16.msra.mxu0 %v938
    %1749 = vmatprep.subr.bf16.mxu0 %v948
    %1750 = vmatpush1.bf16.msra.mxu0 %v947
    %1751 = vmatprep.subr.bf16.mxu0 %v957
    %1752 = vmatpush1.bf16.msra.mxu0 %v956
    %1753 = vmatprep.subr.bf16.mxu0 %v966
    %1754 = vmatpush1.bf16.msra.mxu0 %v965
    %1755 = vmatprep.subr.bf16.mxu0 %v975
    %1756 = vmatpush1.bf16.msra.mxu0 %v974
    %1757 = vmatprep.subr.bf16.mxu0 %v984
    %1758 = vmatpush1.bf16.msra.mxu0 %v983
    %1759 = vmatprep.subr.bf16.mxu0 %v993
    %1760 = vmatpush1.bf16.msra.mxu0 %v992
    %1761 = vmatprep.subr.bf16.mxu0 %v1002
    %1762 = vmatpush1.bf16.msra.mxu0 %v1001
    %1763 = vmatprep.subr.bf16.mxu0 %v1011
    %1764 = vmatpush1.bf16.msra.mxu0 %v1010
    %1765 = vmatprep.subr.bf16.mxu0 %v1020
    %1766 = vmatpush1.bf16.msra.mxu0 %v1019
    %1767 = vmatprep.subr.bf16.mxu0 %v1029
    %1768 = vmatpush1.bf16.msra.mxu0 %v1028
    %1769 = vmatprep.subr.bf16.mxu0 %v1038
    %1770 = vmatpush1.bf16.msra.mxu0 %v1037
    %1771 = vmatprep.subr.bf16.mxu0 %v1047
    %1772 = vmatpush1.bf16.msra.mxu0 %v1046
    %1773 = vmatprep.subr.bf16.mxu0 %v1056
    %1774 = vmatpush1.bf16.msra.mxu0 %v1055
    %1775 = vmatprep.subr.bf16.mxu0 %v1065
    %1776 = vmatpush1.bf16.msra.mxu0 %v1064
    %1777 = vmatprep.mubr.bf16.mxu0 %v396
    %1778 = vmatmul.mubr.bf16.gmra.mrb[0].mxu0 %v395
    %v1779 = vpop.f32.mrb[0].mxu0
    %v1780 = vadd.f32 %v289, %v1779
    %v1781 = vpop.f32.mrb[0].mxu0
    %v1782 = vadd.f32 %v293, %v1781
    %v1783 = vpop.f32.mrb[0].mxu0
    %v1784 = vadd.f32 %v289, %v1783
    %v1785 = vpop.f32.mrb[0].mxu0
    %v1786 = vadd.f32 %v293, %v1785
    %1787 = vmatprep.mubr.bf16.mxu0 %v399
    %1788 = vmatmul.mubr.bf16.gmra.mrb[0].mxu0 %v398
    %v1789 = vpop.f32.mrb[0].mxu0
    %v1790 = vadd.f32 %v289, %v1789
    %v1791 = vpop.f32.mrb[0].mxu0
    %v1792 = vadd.f32 %v293, %v1791
    %v1793 = vpop.f32.mrb[0].mxu0
    %v1794 = vadd.f32 %v289, %v1793
    %v1795 = vpop.f32.mrb[0].mxu0
    %v1796 = vadd.f32 %v293, %v1795
    %1797 = vmatprep.mubr.bf16.mxu0 %v402
    %1798 = vmatmul.mubr.bf16.gmra.mrb[0].mxu0 %v401
    %v1799 = vpop.f32.mrb[0].mxu0
    %v1800 = vadd.f32 %v289, %v1799
    %v1801 = vpop.f32.mrb[0].mxu0
    %v1802 = vadd.f32 %v293, %v1801
    %v1803 = vpop.f32.mrb[0].mxu0
    %v1804 = vadd.f32 %v289, %v1803
    %v1805 = vpop.f32.mrb[0].mxu0
    %v1806 = vadd.f32 %v293, %v1805
    %1807 = vmatprep.mubr.bf16.mxu0 %v405
    %1808 = vmatmul.mubr.bf16.gmra.mrb[0].mxu0 %v404
    %v1809 = vpop.f32.mrb[0].mxu0
    %v1810 = vadd.f32 %v289, %v1809
    %v1811 = vpop.f32.mrb[0].mxu0
    %v1812 = vadd.f32 %v293, %v1811
    %v1813 = vpop.f32.mrb[0].mxu0
    %v1814 = vadd.f32 %v289, %v1813
    %v1815 = vpop.f32.mrb[0].mxu0
    %v1816 = vadd.f32 %v293, %v1815
    %1817 = vmatprep.mubr.bf16.mxu0 %v408
    %1818 = vmatmul.mubr.bf16.gmra.mrb[0].mxu0 %v407
    %v1819 = vpop.f32.mrb[0].mxu0
    %v1820 = vadd.f32 %v289, %v1819
    %v1821 = vpop.f32.mrb[0].mxu0
    %v1822 = vadd.f32 %v293, %v1821
    %v1823 = vpop.f32.mrb[0].mxu0
    %v1824 = vadd.f32 %v289, %v1823
    %v1825 = vpop.f32.mrb[0].mxu0
    %v1826 = vadd.f32 %v293, %v1825
    %1827 = vmatprep.mubr.bf16.mxu0 %v411
    %1828 = vmatmul.mubr.bf16.gmra.mrb[0].mxu0 %v410
    %v1829 = vpop.f32.mrb[0].mxu0
    %v1830 = vadd.f32 %v289, %v1829
    %v1831 = vpop.f32.mrb[0].mxu0
    %v1832 = vadd.f32 %v293, %v1831
    %v1833 = vpop.f32.mrb[0].mxu0
    %v1834 = vadd.f32 %v289, %v1833
    %v1835 = vpop.f32.mrb[0].mxu0
    %v1836 = vadd.f32 %v293, %v1835
    %1837 = vmatprep.mubr.bf16.mxu0 %v414
    %1838 = vmatmul.mubr.bf16.gmra.mrb[0].mxu0 %v413
    %v1839 = vpop.f32.mrb[0].mxu0
    %v1840 = vadd.f32 %v289, %v1839
    %v1841 = vpop.f32.mrb[0].mxu0
    %v1842 = vadd.f32 %v293, %v1841
    %v1843 = vpop.f32.mrb[0].mxu0
    %v1844 = vadd.f32 %v289, %v1843
    %v1845 = vpop.f32.mrb[0].mxu0
    %v1846 = vadd.f32 %v293, %v1845
    %1847 = vmatprep.mubr.bf16.mxu0 %v417
    %1848 = vmatmul.mubr.bf16.gmra.mrb[0].mxu0 %v416
    %v1849 = vpop.f32.mrb[0].mxu0
    %v1850 = vadd.f32 %v289, %v1849
    %v1851 = vpop.f32.mrb[0].mxu0
    %v1852 = vadd.f32 %v293, %v1851
    %v1853 = vpop.f32.mrb[0].mxu0
    %v1854 = vadd.f32 %v289, %v1853
    %v1855 = vpop.f32.mrb[0].mxu0
    %v1856 = vadd.f32 %v293, %v1855
    %1857 = vdwg.mxu0
    %1858 = vmatprep.subr.bf16.mxu0 %v1074
    %1859 = vmatpush1.bf16.msra.mxu0 %v1073
    %1860 = vmatprep.subr.bf16.mxu0 %v1282
    %1861 = vmatpush1.bf16.msra.mxu0 %v1279
    %1862 = vmatprep.subr.bf16.mxu0 0
    %1863 = vmatpush1.bf16.msra.mxu0 0
    %1864 = vmatprep.subr.bf16.mxu0 0
    %1865 = vmatpush1.bf16.msra.mxu0 0
    %1866 = vmatprep.subr.bf16.mxu0 0
    %1867 = vmatpush1.bf16.msra.mxu0 0
    %1868 = vmatprep.subr.bf16.mxu0 0
    %1869 = vmatpush1.bf16.msra.mxu0 0
    %1870 = vmatprep.subr.bf16.mxu0 0
    %1871 = vmatpush1.bf16.msra.mxu0 0
    %1872 = vmatprep.subr.bf16.mxu0 0
    %1873 = vmatpush1.bf16.msra.mxu0 0
    %1874 = vmatprep.subr.bf16.mxu0 0
    %1875 = vmatpush1.bf16.msra.mxu0 0
    %1876 = vmatprep.subr.bf16.mxu0 0
    %1877 = vmatpush1.bf16.msra.mxu0 0
    %1878 = vmatprep.subr.bf16.mxu0 0
    %1879 = vmatpush1.bf16.msra.mxu0 0
    %1880 = vmatprep.subr.bf16.mxu0 0
    %1881 = vmatpush1.bf16.msra.mxu0 0
    %1882 = vmatprep.subr.bf16.mxu0 0
    %1883 = vmatpush1.bf16.msra.mxu0 0
    %1884 = vmatprep.subr.bf16.mxu0 0
    %1885 = vmatpush1.bf16.msra.mxu0 0
    %1886 = vmatprep.subr.bf16.mxu0 0
    %1887 = vmatpush1.bf16.msra.mxu0 0
    %1888 = vmatprep.subr.bf16.mxu0 0
    %1889 = vmatpush1.bf16.msra.mxu0 0
    %1890 = vmatprep.mubr.bf16.mxu0 0
    %1891 = vmatmul.mubr.bf16.gmra.mrb[0].mxu0 %v1242
    %v1892 = vpop.f32.mrb[0].mxu0
    %v1893 = vadd.f32 %v1780, %v1892
    %v1894 = vpop.f32.mrb[0].mxu0
    %v1895 = vadd.f32 %v1782, %v1894
    %v1896 = vpop.f32.mrb[0].mxu0
    %v1897 = vadd.f32 %v1784, %v1896
    %v1898 = vpop.f32.mrb[0].mxu0
    %v1899 = vadd.f32 %v1786, %v1898
    %1900 = vmatprep.mubr.bf16.mxu0 0
    %1901 = vmatmul.mubr.bf16.gmra.mrb[0].mxu0 %v1245
    %v1902 = vpop.f32.mrb[0].mxu0
    %v1903 = vadd.f32 %v1790, %v1902
    %v1904 = vpop.f32.mrb[0].mxu0
    %v1905 = vadd.f32 %v1792, %v1904
    %v1906 = vpop.f32.mrb[0].mxu0
    %v1907 = vadd.f32 %v1794, %v1906
    %v1908 = vpop.f32.mrb[0].mxu0
    %v1909 = vadd.f32 %v1796, %v1908
    %1910 = vmatprep.mubr.bf16.mxu0 0
    %1911 = vmatmul.mubr.bf16.gmra.mrb[0].mxu0 %v1248
    %v1912 = vpop.f32.mrb[0].mxu0
    %v1913 = vadd.f32 %v1800, %v1912
    %v1914 = vpop.f32.mrb[0].mxu0
    %v1915 = vadd.f32 %v1802, %v1914
    %v1916 = vpop.f32.mrb[0].mxu0
    %v1917 = vadd.f32 %v1804, %v1916
    %v1918 = vpop.f32.mrb[0].mxu0
    %v1919 = vadd.f32 %v1806, %v1918
    %1920 = vmatprep.mubr.bf16.mxu0 0
    %1921 = vmatmul.mubr.bf16.gmra.mrb[0].mxu0 %v1251
    %v1922 = vpop.f32.mrb[0].mxu0
    %v1923 = vadd.f32 %v1810, %v1922
    %v1924 = vpop.f32.mrb[0].mxu0
    %v1925 = vadd.f32 %v1812, %v1924
    %v1926 = vpop.f32.mrb[0].mxu0
    %v1927 = vadd.f32 %v1814, %v1926
    %v1928 = vpop.f32.mrb[0].mxu0
    %v1929 = vadd.f32 %v1816, %v1928
    %1930 = vmatprep.mubr.bf16.mxu0 0
    %1931 = vmatmul.mubr.bf16.gmra.mrb[0].mxu0 %v1254
    %v1932 = vpop.f32.mrb[0].mxu0
    %v1933 = vadd.f32 %v1820, %v1932
    %v1934 = vpop.f32.mrb[0].mxu0
    %v1935 = vadd.f32 %v1822, %v1934
    %v1936 = vpop.f32.mrb[0].mxu0
    %v1937 = vadd.f32 %v1824, %v1936
    %v1938 = vpop.f32.mrb[0].mxu0
    %v1939 = vadd.f32 %v1826, %v1938
    %1940 = vmatprep.mubr.bf16.mxu0 0
    %1941 = vmatmul.mubr.bf16.gmra.mrb[0].mxu0 %v1257
    %v1942 = vpop.f32.mrb[0].mxu0
    %v1943 = vadd.f32 %v1830, %v1942
    %v1944 = vpop.f32.mrb[0].mxu0
    %v1945 = vadd.f32 %v1832, %v1944
    %v1946 = vpop.f32.mrb[0].mxu0
    %v1947 = vadd.f32 %v1834, %v1946
    %v1948 = vpop.f32.mrb[0].mxu0
    %v1949 = vadd.f32 %v1836, %v1948
    %1950 = vmatprep.mubr.bf16.mxu0 0
    %1951 = vmatmul.mubr.bf16.gmra.mrb[0].mxu0 %v1260
    %v1952 = vpop.f32.mrb[0].mxu0
    %v1953 = vadd.f32 %v1840, %v1952
    %v1954 = vpop.f32.mrb[0].mxu0
    %v1955 = vadd.f32 %v1842, %v1954
    %v1956 = vpop.f32.mrb[0].mxu0
    %v1957 = vadd.f32 %v1844, %v1956
    %v1958 = vpop.f32.mrb[0].mxu0
    %v1959 = vadd.f32 %v1846, %v1958
    %1960 = vmatprep.mubr.bf16.mxu0 0
    %1961 = vmatmul.mubr.bf16.gmra.mrb[0].mxu0 %v1263
    %v1962 = vpop.f32.mrb[0].mxu0
    %v1963 = vadd.f32 %v1850, %v1962
    %v1964 = vpop.f32.mrb[0].mxu0
    %v1965 = vadd.f32 %v1852, %v1964
    %v1966 = vpop.f32.mrb[0].mxu0
    %v1967 = vadd.f32 %v1854, %v1966
    %v1968 = vpop.f32.mrb[0].mxu0
    %v1969 = vadd.f32 %v1856, %v1968
    %1970 = vdwg.mxu0
    %1971 = vmatprep.subr.bf16.mxu0 %v932
    %1972 = vmatpush1.bf16.msra.mxu0 %v931
    %1973 = vmatprep.subr.bf16.mxu0 %v941
    %1974 = vmatpush1.bf16.msra.mxu0 %v940
    %1975 = vmatprep.subr.bf16.mxu0 %v950
    %1976 = vmatpush1.bf16.msra.mxu0 %v949
    %1977 = vmatprep.subr.bf16.mxu0 %v959
    %1978 = vmatpush1.bf16.msra.mxu0 %v958
    %1979 = vmatprep.subr.bf16.mxu0 %v968
    %1980 = vmatpush1.bf16.msra.mxu0 %v967
    %1981 = vmatprep.subr.bf16.mxu0 %v977
    %1982 = vmatpush1.bf16.msra.mxu0 %v976
    %1983 = vmatprep.subr.bf16.mxu0 %v986
    %1984 = vmatpush1.bf16.msra.mxu0 %v985
    %1985 = vmatprep.subr.bf16.mxu0 %v995
    %1986 = vmatpush1.bf16.msra.mxu0 %v994
    %1987 = vmatprep.subr.bf16.mxu0 %v1004
    %1988 = vmatpush1.bf16.msra.mxu0 %v1003
    %1989 = vmatprep.subr.bf16.mxu0 %v1013
    %1990 = vmatpush1.bf16.msra.mxu0 %v1012
    %1991 = vmatprep.subr.bf16.mxu0 %v1022
    %1992 = vmatpush1.bf16.msra.mxu0 %v1021
    %1993 = vmatprep.subr.bf16.mxu0 %v1031
    %1994 = vmatpush1.bf16.msra.mxu0 %v1030
    %1995 = vmatprep.subr.bf16.mxu0 %v1040
    %1996 = vmatpush1.bf16.msra.mxu0 %v1039
    %1997 = vmatprep.subr.bf16.mxu0 %v1049
    %1998 = vmatpush1.bf16.msra.mxu0 %v1048
    %1999 = vmatprep.subr.bf16.mxu0 %v1058
    %2000 = vmatpush1.bf16.msra.mxu0 %v1057
    %2001 = vmatprep.subr.bf16.mxu0 %v1067
    %2002 = vmatpush1.bf16.msra.mxu0 %v1066
    %2003 = vmatprep.mubr.bf16.mxu0 %v396
    %2004 = vmatmul.mubr.bf16.gmra.mrb[0].mxu0 %v395
    %v2005 = vpop.f32.mrb[0].mxu0
    %v2006 = vadd.f32 %v297, %v2005
    %v2007 = vpop.f32.mrb[0].mxu0
    %v2008 = vadd.f32 %v301, %v2007
    %v2009 = vpop.f32.mrb[0].mxu0
    %v2010 = vadd.f32 %v297, %v2009
    %v2011 = vpop.f32.mrb[0].mxu0
    %v2012 = vadd.f32 %v301, %v2011
    %2013 = vmatprep.mubr.bf16.mxu0 %v399
    %2014 = vmatmul.mubr.bf16.gmra.mrb[0].mxu0 %v398
    %v2015 = vpop.f32.mrb[0].mxu0
    %v2016 = vadd.f32 %v297, %v2015
    %v2017 = vpop.f32.mrb[0].mxu0
    %v2018 = vadd.f32 %v301, %v2017
    %v2019 = vpop.f32.mrb[0].mxu0
    %v2020 = vadd.f32 %v297, %v2019
    %v2021 = vpop.f32.mrb[0].mxu0
    %v2022 = vadd.f32 %v301, %v2021
    %2023 = vmatprep.mubr.bf16.mxu0 %v402
    %2024 = vmatmul.mubr.bf16.gmra.mrb[0].mxu0 %v401
    %v2025 = vpop.f32.mrb[0].mxu0
    %v2026 = vadd.f32 %v297, %v2025
    %v2027 = vpop.f32.mrb[0].mxu0
    %v2028 = vadd.f32 %v301, %v2027
    %v2029 = vpop.f32.mrb[0].mxu0
    %v2030 = vadd.f32 %v297, %v2029
    %v2031 = vpop.f32.mrb[0].mxu0
    %v2032 = vadd.f32 %v301, %v2031
    %2033 = vmatprep.mubr.bf16.mxu0 %v405
    %2034 = vmatmul.mubr.bf16.gmra.mrb[0].mxu0 %v404
    %v2035 = vpop.f32.mrb[0].mxu0
    %v2036 = vadd.f32 %v297, %v2035
    %v2037 = vpop.f32.mrb[0].mxu0
    %v2038 = vadd.f32 %v301, %v2037
    %v2039 = vpop.f32.mrb[0].mxu0
    %v2040 = vadd.f32 %v297, %v2039
    %v2041 = vpop.f32.mrb[0].mxu0
    %v2042 = vadd.f32 %v301, %v2041
    %2043 = vmatprep.mubr.bf16.mxu0 %v408
    %2044 = vmatmul.mubr.bf16.gmra.mrb[0].mxu0 %v407
    %v2045 = vpop.f32.mrb[0].mxu0
    %v2046 = vadd.f32 %v297, %v2045
    %v2047 = vpop.f32.mrb[0].mxu0
    %v2048 = vadd.f32 %v301, %v2047
    %v2049 = vpop.f32.mrb[0].mxu0
    %v2050 = vadd.f32 %v297, %v2049
    %v2051 = vpop.f32.mrb[0].mxu0
    %v2052 = vadd.f32 %v301, %v2051
    %2053 = vmatprep.mubr.bf16.mxu0 %v411
    %2054 = vmatmul.mubr.bf16.gmra.mrb[0].mxu0 %v410
    %v2055 = vpop.f32.mrb[0].mxu0
    %v2056 = vadd.f32 %v297, %v2055
    %v2057 = vpop.f32.mrb[0].mxu0
    %v2058 = vadd.f32 %v301, %v2057
    %v2059 = vpop.f32.mrb[0].mxu0
    %v2060 = vadd.f32 %v297, %v2059
    %v2061 = vpop.f32.mrb[0].mxu0
    %v2062 = vadd.f32 %v301, %v2061
    %2063 = vmatprep.mubr.bf16.mxu0 %v414
    %2064 = vmatmul.mubr.bf16.gmra.mrb[0].mxu0 %v413
    %v2065 = vpop.f32.mrb[0].mxu0
    %v2066 = vadd.f32 %v297, %v2065
    %v2067 = vpop.f32.mrb[0].mxu0
    %v2068 = vadd.f32 %v301, %v2067
    %v2069 = vpop.f32.mrb[0].mxu0
    %v2070 = vadd.f32 %v297, %v2069
    %v2071 = vpop.f32.mrb[0].mxu0
    %v2072 = vadd.f32 %v301, %v2071
    %2073 = vmatprep.mubr.bf16.mxu0 %v417
    %2074 = vmatmul.mubr.bf16.gmra.mrb[0].mxu0 %v416
    %v2075 = vpop.f32.mrb[0].mxu0
    %v2076 = vadd.f32 %v297, %v2075
    %v2077 = vpop.f32.mrb[0].mxu0
    %v2078 = vadd.f32 %v301, %v2077
    %v2079 = vpop.f32.mrb[0].mxu0
    %v2080 = vadd.f32 %v297, %v2079
    %v2081 = vpop.f32.mrb[0].mxu0
    %v2082 = vadd.f32 %v301, %v2081
    %2083 = vdwg.mxu0
    %2084 = vmatprep.subr.bf16.mxu0 %v1076
    %2085 = vmatpush1.bf16.msra.mxu0 %v1075
    %2086 = vmatprep.subr.bf16.mxu0 %v1288
    %2087 = vmatpush1.bf16.msra.mxu0 %v1285
    %2088 = vmatprep.subr.bf16.mxu0 0
    %2089 = vmatpush1.bf16.msra.mxu0 0
    %2090 = vmatprep.subr.bf16.mxu0 0
    %2091 = vmatpush1.bf16.msra.mxu0 0
    %2092 = vmatprep.subr.bf16.mxu0 0
    %2093 = vmatpush1.bf16.msra.mxu0 0
    %2094 = vmatprep.subr.bf16.mxu0 0
    %2095 = vmatpush1.bf16.msra.mxu0 0
    %2096 = vmatprep.subr.bf16.mxu0 0
    %2097 = vmatpush1.bf16.msra.mxu0 0
    %2098 = vmatprep.subr.bf16.mxu0 0
    %2099 = vmatpush1.bf16.msra.mxu0 0
    %2100 = vmatprep.subr.bf16.mxu0 0
    %2101 = vmatpush1.bf16.msra.mxu0 0
    %2102 = vmatprep.subr.bf16.mxu0 0
    %2103 = vmatpush1.bf16.msra.mxu0 0
    %2104 = vmatprep.subr.bf16.mxu0 0
    %2105 = vmatpush1.bf16.msra.mxu0 0
    %2106 = vmatprep.subr.bf16.mxu0 0
    %2107 = vmatpush1.bf16.msra.mxu0 0
    %2108 = vmatprep.subr.bf16.mxu0 0
    %2109 = vmatpush1.bf16.msra.mxu0 0
    %2110 = vmatprep.subr.bf16.mxu0 0
    %2111 = vmatpush1.bf16.msra.mxu0 0
    %2112 = vmatprep.subr.bf16.mxu0 0
    %2113 = vmatpush1.bf16.msra.mxu0 0
    %2114 = vmatprep.subr.bf16.mxu0 0
    %2115 = vmatpush1.bf16.msra.mxu0 0
    %2116 = vmatprep.mubr.bf16.mxu0 0
    %2117 = vmatmul.mubr.bf16.gmra.mrb[0].mxu0 %v1242
    %v2118 = vpop.f32.mrb[0].mxu0
    %v2119 = vadd.f32 %v2006, %v2118
    %v2120 = vpop.f32.mrb[0].mxu0
    %v2121 = vadd.f32 %v2008, %v2120
    %v2122 = vpop.f32.mrb[0].mxu0
    %v2123 = vadd.f32 %v2010, %v2122
    %v2124 = vpop.f32.mrb[0].mxu0
    %v2125 = vadd.f32 %v2012, %v2124
    %2126 = vmatprep.mubr.bf16.mxu0 0
    %2127 = vmatmul.mubr.bf16.gmra.mrb[0].mxu0 %v1245
    %v2128 = vpop.f32.mrb[0].mxu0
    %v2129 = vadd.f32 %v2016, %v2128
    %v2130 = vpop.f32.mrb[0].mxu0
    %v2131 = vadd.f32 %v2018, %v2130
    %v2132 = vpop.f32.mrb[0].mxu0
    %v2133 = vadd.f32 %v2020, %v2132
    %v2134 = vpop.f32.mrb[0].mxu0
    %v2135 = vadd.f32 %v2022, %v2134
    %2136 = vmatprep.mubr.bf16.mxu0 0
    %2137 = vmatmul.mubr.bf16.gmra.mrb[0].mxu0 %v1248
    %v2138 = vpop.f32.mrb[0].mxu0
    %v2139 = vadd.f32 %v2026, %v2138
    %v2140 = vpop.f32.mrb[0].mxu0
    %v2141 = vadd.f32 %v2028, %v2140
    %v2142 = vpop.f32.mrb[0].mxu0
    %v2143 = vadd.f32 %v2030, %v2142
    %v2144 = vpop.f32.mrb[0].mxu0
    %v2145 = vadd.f32 %v2032, %v2144
    %2146 = vmatprep.mubr.bf16.mxu0 0
    %2147 = vmatmul.mubr.bf16.gmra.mrb[0].mxu0 %v1251
    %v2148 = vpop.f32.mrb[0].mxu0
    %v2149 = vadd.f32 %v2036, %v2148
    %v2150 = vpop.f32.mrb[0].mxu0
    %v2151 = vadd.f32 %v2038, %v2150
    %v2152 = vpop.f32.mrb[0].mxu0
    %v2153 = vadd.f32 %v2040, %v2152
    %v2154 = vpop.f32.mrb[0].mxu0
    %v2155 = vadd.f32 %v2042, %v2154
    %2156 = vmatprep.mubr.bf16.mxu0 0
    %2157 = vmatmul.mubr.bf16.gmra.mrb[0].mxu0 %v1254
    %v2158 = vpop.f32.mrb[0].mxu0
    %v2159 = vadd.f32 %v2046, %v2158
    %v2160 = vpop.f32.mrb[0].mxu0
    %v2161 = vadd.f32 %v2048, %v2160
    %v2162 = vpop.f32.mrb[0].mxu0
    %v2163 = vadd.f32 %v2050, %v2162
    %v2164 = vpop.f32.mrb[0].mxu0
    %v2165 = vadd.f32 %v2052, %v2164
    %2166 = vmatprep.mubr.bf16.mxu0 0
    %2167 = vmatmul.mubr.bf16.gmra.mrb[0].mxu0 %v1257
    %v2168 = vpop.f32.mrb[0].mxu0
    %v2169 = vadd.f32 %v2056, %v2168
    %v2170 = vpop.f32.mrb[0].mxu0
    %v2171 = vadd.f32 %v2058, %v2170
    %v2172 = vpop.f32.mrb[0].mxu0
    %v2173 = vadd.f32 %v2060, %v2172
    %v2174 = vpop.f32.mrb[0].mxu0
    %v2175 = vadd.f32 %v2062, %v2174
    %2176 = vmatprep.mubr.bf16.mxu0 0
    %2177 = vmatmul.mubr.bf16.gmra.mrb[0].mxu0 %v1260
    %v2178 = vpop.f32.mrb[0].mxu0
    %v2179 = vadd.f32 %v2066, %v2178
    %v2180 = vpop.f32.mrb[0].mxu0
    %v2181 = vadd.f32 %v2068, %v2180
    %v2182 = vpop.f32.mrb[0].mxu0
    %v2183 = vadd.f32 %v2070, %v2182
    %v2184 = vpop.f32.mrb[0].mxu0
    %v2185 = vadd.f32 %v2072, %v2184
    %2186 = vmatprep.mubr.bf16.mxu0 0
    %2187 = vmatmul.mubr.bf16.gmra.mrb[0].mxu0 %v1263
    %v2188 = vpop.f32.mrb[0].mxu0
    %v2189 = vadd.f32 %v2076, %v2188
    %v2190 = vpop.f32.mrb[0].mxu0
    %v2191 = vadd.f32 %v2078, %v2190
    %v2192 = vpop.f32.mrb[0].mxu0
    %v2193 = vadd.f32 %v2080, %v2192
    %v2194 = vpop.f32.mrb[0].mxu0
    %v2195 = vadd.f32 %v2082, %v2194
    %2196 = vdwg.mxu0
    %2197 = vmatprep.subr.bf16.mxu0 0
    %2198 = vmatpush1.bf16.msra.mxu0 %v933
    %2199 = vmatprep.subr.bf16.mxu0 0
    %2200 = vmatpush1.bf16.msra.mxu0 %v942
    %2201 = vmatprep.subr.bf16.mxu0 0
    %2202 = vmatpush1.bf16.msra.mxu0 %v951
    %2203 = vmatprep.subr.bf16.mxu0 0
    %2204 = vmatpush1.bf16.msra.mxu0 %v960
    %2205 = vmatprep.subr.bf16.mxu0 0
    %2206 = vmatpush1.bf16.msra.mxu0 %v969
    %2207 = vmatprep.subr.bf16.mxu0 0
    %2208 = vmatpush1.bf16.msra.mxu0 %v978
    %2209 = vmatprep.subr.bf16.mxu0 0
    %2210 = vmatpush1.bf16.msra.mxu0 %v987
    %2211 = vmatprep.subr.bf16.mxu0 0
    %2212 = vmatpush1.bf16.msra.mxu0 %v996
    %2213 = vmatprep.subr.bf16.mxu0 0
    %2214 = vmatpush1.bf16.msra.mxu0 %v1005
    %2215 = vmatprep.subr.bf16.mxu0 0
    %2216 = vmatpush1.bf16.msra.mxu0 %v1014
    %2217 = vmatprep.subr.bf16.mxu0 0
    %2218 = vmatpush1.bf16.msra.mxu0 %v1023
    %2219 = vmatprep.subr.bf16.mxu0 0
    %2220 = vmatpush1.bf16.msra.mxu0 %v1032
    %2221 = vmatprep.subr.bf16.mxu0 0
    %2222 = vmatpush1.bf16.msra.mxu0 %v1041
    %2223 = vmatprep.subr.bf16.mxu0 0
    %2224 = vmatpush1.bf16.msra.mxu0 %v1050
    %2225 = vmatprep.subr.bf16.mxu0 0
    %2226 = vmatpush1.bf16.msra.mxu0 %v1059
    %2227 = vmatprep.subr.bf16.mxu0 0
    %2228 = vmatpush1.bf16.msra.mxu0 %v1068
    %2229 = vmatprep.mubr.bf16.mxu0 %v396
    %2230 = vmatmul.mubr.bf16.gmra.mrb[0].mxu0 %v395
    %v2231 = vpop.f32.mrb[0].mxu0
    %v2232 = vadd.f32 %v305, %v2231
    %v2233 = vpop.f32.mrb[0].mxu0
    %v2234 = vpop.f32.mrb[0].mxu0
    %v2235 = vadd.f32 %v305, %v2234
    %v2236 = vpop.f32.mrb[0].mxu0
    %2237 = vmatprep.mubr.bf16.mxu0 %v399
    %2238 = vmatmul.mubr.bf16.gmra.mrb[0].mxu0 %v398
    %v2239 = vpop.f32.mrb[0].mxu0
    %v2240 = vadd.f32 %v305, %v2239
    %v2241 = vpop.f32.mrb[0].mxu0
    %v2242 = vpop.f32.mrb[0].mxu0
    %v2243 = vadd.f32 %v305, %v2242
    %v2244 = vpop.f32.mrb[0].mxu0
    %2245 = vmatprep.mubr.bf16.mxu0 %v402
    %2246 = vmatmul.mubr.bf16.gmra.mrb[0].mxu0 %v401
    %v2247 = vpop.f32.mrb[0].mxu0
    %v2248 = vadd.f32 %v305, %v2247
    %v2249 = vpop.f32.mrb[0].mxu0
    %v2250 = vpop.f32.mrb[0].mxu0
    %v2251 = vadd.f32 %v305, %v2250
    %v2252 = vpop.f32.mrb[0].mxu0
    %2253 = vmatprep.mubr.bf16.mxu0 %v405
    %2254 = vmatmul.mubr.bf16.gmra.mrb[0].mxu0 %v404
    %v2255 = vpop.f32.mrb[0].mxu0
    %v2256 = vadd.f32 %v305, %v2255
    %v2257 = vpop.f32.mrb[0].mxu0
    %v2258 = vpop.f32.mrb[0].mxu0
    %v2259 = vadd.f32 %v305, %v2258
    %v2260 = vpop.f32.mrb[0].mxu0
    %2261 = vmatprep.mubr.bf16.mxu0 %v408
    %2262 = vmatmul.mubr.bf16.gmra.mrb[0].mxu0 %v407
    %v2263 = vpop.f32.mrb[0].mxu0
    %v2264 = vadd.f32 %v305, %v2263
    %v2265 = vpop.f32.mrb[0].mxu0
    %v2266 = vpop.f32.mrb[0].mxu0
    %v2267 = vadd.f32 %v305, %v2266
    %v2268 = vpop.f32.mrb[0].mxu0
    %2269 = vmatprep.mubr.bf16.mxu0 %v411
    %2270 = vmatmul.mubr.bf16.gmra.mrb[0].mxu0 %v410
    %v2271 = vpop.f32.mrb[0].mxu0
    %v2272 = vadd.f32 %v305, %v2271
    %v2273 = vpop.f32.mrb[0].mxu0
    %v2274 = vpop.f32.mrb[0].mxu0
    %v2275 = vadd.f32 %v305, %v2274
    %v2276 = vpop.f32.mrb[0].mxu0
    %2277 = vmatprep.mubr.bf16.mxu0 %v414
    %2278 = vmatmul.mubr.bf16.gmra.mrb[0].mxu0 %v413
    %v2279 = vpop.f32.mrb[0].mxu0
    %v2280 = vadd.f32 %v305, %v2279
    %v2281 = vpop.f32.mrb[0].mxu0
    %v2282 = vpop.f32.mrb[0].mxu0
    %v2283 = vadd.f32 %v305, %v2282
    %v2284 = vpop.f32.mrb[0].mxu0
    %2285 = vmatprep.mubr.bf16.mxu0 %v417
    %2286 = vmatmul.mubr.bf16.gmra.mrb[0].mxu0 %v416
    %v2287 = vpop.f32.mrb[0].mxu0
    %v2288 = vadd.f32 %v305, %v2287
    %v2289 = vpop.f32.mrb[0].mxu0
    %v2290 = vpop.f32.mrb[0].mxu0
    %v2291 = vadd.f32 %v305, %v2290
    %v2292 = vpop.f32.mrb[0].mxu0
    %2293 = vdwg.mxu0
    %2294 = vmatprep.subr.bf16.mxu0 0
    %2295 = vmatpush1.bf16.msra.mxu0 %v1077
    %2296 = vmatprep.subr.bf16.mxu0 0
    %2297 = vmatpush1.bf16.msra.mxu0 %v1291
    %2298 = vmatprep.subr.bf16.mxu0 0
    %2299 = vmatpush1.bf16.msra.mxu0 0
    %2300 = vmatprep.subr.bf16.mxu0 0
    %2301 = vmatpush1.bf16.msra.mxu0 0
    %2302 = vmatprep.subr.bf16.mxu0 0
    %2303 = vmatpush1.bf16.msra.mxu0 0
    %2304 = vmatprep.subr.bf16.mxu0 0
    %2305 = vmatpush1.bf16.msra.mxu0 0
    %2306 = vmatprep.subr.bf16.mxu0 0
    %2307 = vmatpush1.bf16.msra.mxu0 0
    %2308 = vmatprep.subr.bf16.mxu0 0
    %2309 = vmatpush1.bf16.msra.mxu0 0
    %2310 = vmatprep.subr.bf16.mxu0 0
    %2311 = vmatpush1.bf16.msra.mxu0 0
    %2312 = vmatprep.subr.bf16.mxu0 0
    %2313 = vmatpush1.bf16.msra.mxu0 0
    %2314 = vmatprep.subr.bf16.mxu0 0
    %2315 = vmatpush1.bf16.msra.mxu0 0
    %2316 = vmatprep.subr.bf16.mxu0 0
    %2317 = vmatpush1.bf16.msra.mxu0 0
    %2318 = vmatprep.subr.bf16.mxu0 0
    %2319 = vmatpush1.bf16.msra.mxu0 0
    %2320 = vmatprep.subr.bf16.mxu0 0
    %2321 = vmatpush1.bf16.msra.mxu0 0
    %2322 = vmatprep.subr.bf16.mxu0 0
    %2323 = vmatpush1.bf16.msra.mxu0 0
    %2324 = vmatprep.subr.bf16.mxu0 0
    %2325 = vmatpush1.bf16.msra.mxu0 0
    %2326 = vmatprep.mubr.bf16.mxu0 0
    %2327 = vmatmul.mubr.bf16.gmra.mrb[0].mxu0 %v1242
    %v2328 = vpop.f32.mrb[0].mxu0
    %v2329 = vadd.f32 %v2232, %v2328
    %v2330 = vpop.f32.mrb[0].mxu0
    %v2331 = vpop.f32.mrb[0].mxu0
    %v2332 = vadd.f32 %v2235, %v2331
    %v2333 = vpop.f32.mrb[0].mxu0
    %2334 = vmatprep.mubr.bf16.mxu0 0
    %2335 = vmatmul.mubr.bf16.gmra.mrb[0].mxu0 %v1245
    %v2336 = vpop.f32.mrb[0].mxu0
    %v2337 = vadd.f32 %v2240, %v2336
    %v2338 = vpop.f32.mrb[0].mxu0
    %v2339 = vpop.f32.mrb[0].mxu0
    %v2340 = vadd.f32 %v2243, %v2339
    %v2341 = vpop.f32.mrb[0].mxu0
    %2342 = vmatprep.mubr.bf16.mxu0 0
    %2343 = vmatmul.mubr.bf16.gmra.mrb[0].mxu0 %v1248
    %v2344 = vpop.f32.mrb[0].mxu0
    %v2345 = vadd.f32 %v2248, %v2344
    %v2346 = vpop.f32.mrb[0].mxu0
    %v2347 = vpop.f32.mrb[0].mxu0
    %v2348 = vadd.f32 %v2251, %v2347
    %v2349 = vpop.f32.mrb[0].mxu0
    %2350 = vmatprep.mubr.bf16.mxu0 0
    %2351 = vmatmul.mubr.bf16.gmra.mrb[0].mxu0 %v1251
    %v2352 = vpop.f32.mrb[0].mxu0
    %v2353 = vadd.f32 %v2256, %v2352
    %v2354 = vpop.f32.mrb[0].mxu0
    %v2355 = vpop.f32.mrb[0].mxu0
    %v2356 = vadd.f32 %v2259, %v2355
    %v2357 = vpop.f32.mrb[0].mxu0
    %2358 = vmatprep.mubr.bf16.mxu0 0
    %2359 = vmatmul.mubr.bf16.gmra.mrb[0].mxu0 %v1254
    %v2360 = vpop.f32.mrb[0].mxu0
    %v2361 = vadd.f32 %v2264, %v2360
    %v2362 = vpop.f32.mrb[0].mxu0
    %v2363 = vpop.f32.mrb[0].mxu0
    %v2364 = vadd.f32 %v2267, %v2363
    %v2365 = vpop.f32.mrb[0].mxu0
    %2366 = vmatprep.mubr.bf16.mxu0 0
    %2367 = vmatmul.mubr.bf16.gmra.mrb[0].mxu0 %v1257
    %v2368 = vpop.f32.mrb[0].mxu0
    %v2369 = vadd.f32 %v2272, %v2368
    %v2370 = vpop.f32.mrb[0].mxu0
    %v2371 = vpop.f32.mrb[0].mxu0
    %v2372 = vadd.f32 %v2275, %v2371
    %v2373 = vpop.f32.mrb[0].mxu0
    %2374 = vmatprep.mubr.bf16.mxu0 0
    %2375 = vmatmul.mubr.bf16.gmra.mrb[0].mxu0 %v1260
    %v2376 = vpop.f32.mrb[0].mxu0
    %v2377 = vadd.f32 %v2280, %v2376
    %v2378 = vpop.f32.mrb[0].mxu0
    %v2379 = vpop.f32.mrb[0].mxu0
    %v2380 = vadd.f32 %v2283, %v2379
    %v2381 = vpop.f32.mrb[0].mxu0
    %2382 = vmatprep.mubr.bf16.mxu0 0
    %2383 = vmatmul.mubr.bf16.gmra.mrb[0].mxu0 %v1263
    %v2384 = vpop.f32.mrb[0].mxu0
    %v2385 = vadd.f32 %v2288, %v2384
    %v2386 = vpop.f32.mrb[0].mxu0
    %v2387 = vpop.f32.mrb[0].mxu0
    %v2388 = vadd.f32 %v2291, %v2387
    %v2389 = vpop.f32.mrb[0].mxu0
    %2390 = vdwg.mxu0
    %v2391 = vmax.f32 %v1441, 0.0
    %v2392 = vmax.f32 %v1443, 0.0
    %v2393 = vmax.f32 %v1667, 0.0
    %v2394 = vmax.f32 %v1669, 0.0
    %v2395 = vmax.f32 %v1893, 0.0
    %v2396 = vmax.f32 %v1895, 0.0
    %v2397 = vmax.f32 %v2119, 0.0
    %v2398 = vmax.f32 %v2121, 0.0
    %v2399 = vmax.f32 %v2329, 0.0
    %v2400 = vmax.f32 %v1445, 0.0
    %v2401 = vmax.f32 %v1447, 0.0
    %v2402 = vmax.f32 %v1671, 0.0
    %v2403 = vmax.f32 %v1673, 0.0
    %v2404 = vmax.f32 %v1897, 0.0
    %v2405 = vmax.f32 %v1899, 0.0
    %v2406 = vmax.f32 %v2123, 0.0
    %v2407 = vmax.f32 %v2125, 0.0
    %v2408 = vmax.f32 %v2332, 0.0
    %v2409 = vmax.f32 %v1451, 0.0
    %v2410 = vmax.f32 %v1453, 0.0
    %v2411 = vmax.f32 %v1677, 0.0
    %v2412 = vmax.f32 %v1679, 0.0
    %v2413 = vmax.f32 %v1903, 0.0
    %v2414 = vmax.f32 %v1905, 0.0
    %v2415 = vmax.f32 %v2129, 0.0
    %v2416 = vmax.f32 %v2131, 0.0
    %v2417 = vmax.f32 %v2337, 0.0
    %v2418 = vmax.f32 %v1455, 0.0
    %v2419 = vmax.f32 %v1457, 0.0
    %v2420 = vmax.f32 %v1681, 0.0
    %v2421 = vmax.f32 %v1683, 0.0
    %v2422 = vmax.f32 %v1907, 0.0
    %v2423 = vmax.f32 %v1909, 0.0
    %v2424 = vmax.f32 %v2133, 0.0
    %v2425 = vmax.f32 %v2135, 0.0
    %v2426 = vmax.f32 %v2340, 0.0
    %v2427 = vmax.f32 %v1461, 0.0
    %v2428 = vmax.f32 %v1463, 0.0
    %v2429 = vmax.f32 %v1687, 0.0
    %v2430 = vmax.f32 %v1689, 0.0
    %v2431 = vmax.f32 %v1913, 0.0
    %v2432 = vmax.f32 %v1915, 0.0
    %v2433 = vmax.f32 %v2139, 0.0
    %v2434 = vmax.f32 %v2141, 0.0
    %v2435 = vmax.f32 %v2345, 0.0
    %v2436 = vmax.f32 %v1465, 0.0
    %v2437 = vmax.f32 %v1467, 0.0
    %v2438 = vmax.f32 %v1691, 0.0
    %v2439 = vmax.f32 %v1693, 0.0
    %v2440 = vmax.f32 %v1917, 0.0
    %v2441 = vmax.f32 %v1919, 0.0
    %v2442 = vmax.f32 %v2143, 0.0
    %v2443 = vmax.f32 %v2145, 0.0
    %v2444 = vmax.f32 %v2348, 0.0
    %v2445 = vmax.f32 %v1471, 0.0
    %v2446 = vmax.f32 %v1473, 0.0
    %v2447 = vmax.f32 %v1697, 0.0
    %v2448 = vmax.f32 %v1699, 0.0
    %v2449 = vmax.f32 %v1923, 0.0
    %v2450 = vmax.f32 %v1925, 0.0
    %v2451 = vmax.f32 %v2149, 0.0
    %v2452 = vmax.f32 %v2151, 0.0
    %v2453 = vmax.f32 %v2353, 0.0
    %v2454 = vmax.f32 %v1475, 0.0
    %v2455 = vmax.f32 %v1477, 0.0
    %v2456 = vmax.f32 %v1701, 0.0
    %v2457 = vmax.f32 %v1703, 0.0
    %v2458 = vmax.f32 %v1927, 0.0
    %v2459 = vmax.f32 %v1929, 0.0
    %v2460 = vmax.f32 %v2153, 0.0
    %v2461 = vmax.f32 %v2155, 0.0
    %v2462 = vmax.f32 %v2356, 0.0
    %v2463 = vmax.f32 %v1481, 0.0
    %v2464 = vmax.f32 %v1483, 0.0
    %v2465 = vmax.f32 %v1707, 0.0
    %v2466 = vmax.f32 %v1709, 0.0
    %v2467 = vmax.f32 %v1933, 0.0
    %v2468 = vmax.f32 %v1935, 0.0
    %v2469 = vmax.f32 %v2159, 0.0
    %v2470 = vmax.f32 %v2161, 0.0
    %v2471 = vmax.f32 %v2361, 0.0
    %v2472 = vmax.f32 %v1485, 0.0
    %v2473 = vmax.f32 %v1487, 0.0
    %v2474 = vmax.f32 %v1711, 0.0
    %v2475 = vmax.f32 %v1713, 0.0
    %v2476 = vmax.f32 %v1937, 0.0
    %v2477 = vmax.f32 %v1939, 0.0
    %v2478 = vmax.f32 %v2163, 0.0
    %v2479 = vmax.f32 %v2165, 0.0
    %v2480 = vmax.f32 %v2364, 0.0
    %v2481 = vmax.f32 %v1491, 0.0
    %v2482 = vmax.f32 %v1493, 0.0
    %v2483 = vmax.f32 %v1717, 0.0
    %v2484 = vmax.f32 %v1719, 0.0
    %v2485 = vmax.f32 %v1943, 0.0
    %v2486 = vmax.f32 %v1945, 0.0
    %v2487 = vmax.f32 %v2169, 0.0
    %v2488 = vmax.f32 %v2171, 0.0
    %v2489 = vmax.f32 %v2369, 0.0
    %v2490 = vmax.f32 %v1495, 0.0
    %v2491 = vmax.f32 %v1497, 0.0
    %v2492 = vmax.f32 %v1721, 0.0
    %v2493 = vmax.f32 %v1723, 0.0
    %v2494 = vmax.f32 %v1947, 0.0
    %v2495 = vmax.f32 %v1949, 0.0
    %v2496 = vmax.f32 %v2173, 0.0
    %v2497 = vmax.f32 %v2175, 0.0
    %v2498 = vmax.f32 %v2372, 0.0
    %v2499 = vmax.f32 %v1501, 0.0
    %v2500 = vmax.f32 %v1503, 0.0
    %v2501 = vmax.f32 %v1727, 0.0
    %v2502 = vmax.f32 %v1729, 0.0
    %v2503 = vmax.f32 %v1953, 0.0
    %v2504 = vmax.f32 %v1955, 0.0
    %v2505 = vmax.f32 %v2179, 0.0
    %v2506 = vmax.f32 %v2181, 0.0
    %v2507 = vmax.f32 %v2377, 0.0
    %v2508 = vmax.f32 %v1505, 0.0
    %v2509 = vmax.f32 %v1507, 0.0
    %v2510 = vmax.f32 %v1731, 0.0
    %v2511 = vmax.f32 %v1733, 0.0
    %v2512 = vmax.f32 %v1957, 0.0
    %v2513 = vmax.f32 %v1959, 0.0
    %v2514 = vmax.f32 %v2183, 0.0
    %v2515 = vmax.f32 %v2185, 0.0
    %v2516 = vmax.f32 %v2380, 0.0
    %v2517 = vmax.f32 %v1511, 0.0
    %v2518 = vmax.f32 %v1513, 0.0
    %v2519 = vmax.f32 %v1737, 0.0
    %v2520 = vmax.f32 %v1739, 0.0
    %v2521 = vmax.f32 %v1963, 0.0
    %v2522 = vmax.f32 %v1965, 0.0
    %v2523 = vmax.f32 %v2189, 0.0
    %v2524 = vmax.f32 %v2191, 0.0
    %v2525 = vmax.f32 %v2385, 0.0
    %v2526 = vmax.f32 %v1515, 0.0
    %v2527 = vmax.f32 %v1517, 0.0
    %v2528 = vmax.f32 %v1741, 0.0
    %v2529 = vmax.f32 %v1743, 0.0
    %v2530 = vmax.f32 %v1967, 0.0
    %v2531 = vmax.f32 %v1969, 0.0
    %v2532 = vmax.f32 %v2193, 0.0
    %v2533 = vmax.f32 %v2195, 0.0
    %v2534 = vmax.f32 %v2388, 0.0
    %v2535 = vpack.c.bf16 %v2400, %v2391
    %v2536 = vpack.c.bf16 %v2401, %v2392
    %v2537 = vpack.c.bf16 %v2402, %v2393
    %v2538 = vpack.c.bf16 %v2403, %v2394
    %v2539 = vpack.c.bf16 %v2404, %v2395
    %v2540 = vpack.c.bf16 %v2405, %v2396
    %v2541 = vpack.c.bf16 %v2406, %v2397
    %v2542 = vpack.c.bf16 %v2407, %v2398
    %v2543 = vpack.c.bf16 %v2408, %v2399
    %v2544 = vpack.c.bf16 %v2418, %v2409
    %v2545 = vpack.c.bf16 %v2419, %v2410
    %v2546 = vpack.c.bf16 %v2420, %v2411
    %v2547 = vpack.c.bf16 %v2421, %v2412
    %v2548 = vpack.c.bf16 %v2422, %v2413
    %v2549 = vpack.c.bf16 %v2423, %v2414
    %v2550 = vpack.c.bf16 %v2424, %v2415
    %v2551 = vpack.c.bf16 %v2425, %v2416
    %v2552 = vpack.c.bf16 %v2426, %v2417
    %v2553 = vpack.c.bf16 %v2436, %v2427
    %v2554 = vpack.c.bf16 %v2437, %v2428
    %v2555 = vpack.c.bf16 %v2438, %v2429
    %v2556 = vpack.c.bf16 %v2439, %v2430
    %v2557 = vpack.c.bf16 %v2440, %v2431
    %v2558 = vpack.c.bf16 %v2441, %v2432
    %v2559 = vpack.c.bf16 %v2442, %v2433
    %v2560 = vpack.c.bf16 %v2443, %v2434
    %v2561 = vpack.c.bf16 %v2444, %v2435
    %v2562 = vpack.c.bf16 %v2454, %v2445
    %v2563 = vpack.c.bf16 %v2455, %v2446
    %v2564 = vpack.c.bf16 %v2456, %v2447
    %v2565 = vpack.c.bf16 %v2457, %v2448
    %v2566 = vpack.c.bf16 %v2458, %v2449
    %v2567 = vpack.c.bf16 %v2459, %v2450
    %v2568 = vpack.c.bf16 %v2460, %v2451
    %v2569 = vpack.c.bf16 %v2461, %v2452
    %v2570 = vpack.c.bf16 %v2462, %v2453
    %v2571 = vpack.c.bf16 %v2472, %v2463
    %v2572 = vpack.c.bf16 %v2473, %v2464
    %v2573 = vpack.c.bf16 %v2474, %v2465
    %v2574 = vpack.c.bf16 %v2475, %v2466
    %v2575 = vpack.c.bf16 %v2476, %v2467
    %v2576 = vpack.c.bf16 %v2477, %v2468
    %v2577 = vpack.c.bf16 %v2478, %v2469
    %v2578 = vpack.c.bf16 %v2479, %v2470
    %v2579 = vpack.c.bf16 %v2480, %v2471
    %v2580 = vpack.c.bf16 %v2490, %v2481
    %v2581 = vpack.c.bf16 %v2491, %v2482
    %v2582 = vpack.c.bf16 %v2492, %v2483
    %v2583 = vpack.c.bf16 %v2493, %v2484
    %v2584 = vpack.c.bf16 %v2494, %v2485
    %v2585 = vpack.c.bf16 %v2495, %v2486
    %v2586 = vpack.c.bf16 %v2496, %v2487
    %v2587 = vpack.c.bf16 %v2497, %v2488
    %v2588 = vpack.c.bf16 %v2498, %v2489
    %v2589 = vpack.c.bf16 %v2508, %v2499
    %v2590 = vpack.c.bf16 %v2509, %v2500
    %v2591 = vpack.c.bf16 %v2510, %v2501
    %v2592 = vpack.c.bf16 %v2511, %v2502
    %v2593 = vpack.c.bf16 %v2512, %v2503
    %v2594 = vpack.c.bf16 %v2513, %v2504
    %v2595 = vpack.c.bf16 %v2514, %v2505
    %v2596 = vpack.c.bf16 %v2515, %v2506
    %v2597 = vpack.c.bf16 %v2516, %v2507
    %v2598 = vpack.c.bf16 %v2526, %v2517
    %v2599 = vpack.c.bf16 %v2527, %v2518
    %v2600 = vpack.c.bf16 %v2528, %v2519
    %v2601 = vpack.c.bf16 %v2529, %v2520
    %v2602 = vpack.c.bf16 %v2530, %v2521
    %v2603 = vpack.c.bf16 %v2531, %v2522
    %v2604 = vpack.c.bf16 %v2532, %v2523
    %v2605 = vpack.c.bf16 %v2533, %v2524
    %v2606 = vpack.c.bf16 %v2534, %v2525
    %v2607 = vld [vmem:[%s1] sm:$0xf]
    %v2608 = vld [vmem:[%s1 + $0x4] sm:$0xf]
    %v2609 = vld [vmem:[%s1 + $0x8] sm:$0xf]
    %v2610 = vld [vmem:[%s1 + $0xc] sm:$0xf]
    %v2611 = vld [vmem:[%s1 + $0x10] sm:$0xf]
    %v2612 = vld [vmem:[%s1 + $0x14] sm:$0xf]
    %v2613 = vld [vmem:[%s1 + $0x18] sm:$0xf]
    %v2614 = vld [vmem:[%s1 + $0x1c] sm:$0xf]
    %v2615 = vld [vmem:[%s1 + $0x20] sm:$0xf]
    %v2616 = vld [vmem:[%s1 + $0x24] sm:$0xf]
    %v2617 = vld [vmem:[%s1 + $0x28] sm:$0xf]
    %v2618 = vld [vmem:[%s1 + $0x2c] sm:$0xf]
    %v2619 = vld [vmem:[%s1 + $0x30] sm:$0xf]
    %v2620 = vld [vmem:[%s1 + $0x34] sm:$0xf]
    %v2621 = vld [vmem:[%s1 + $0x38] sm:$0xf]
    %v2622 = vld [vmem:[%s1 + $0x3c] sm:$0xf]
    %v2623 = vld [vmem:[%s6] sm:$0xf]
    %v2624 = vld [vmem:[%s7] sm:$0x1]
    %v2626 = vlaneseq
    %v2627 = vshrl.u32 %v2626, 7
    %v2628 = vsub.s32 0, %v2627
    %v2629 = vrot.slane %v2624, %v2628
    %v2647 = vunpack.c.l.b16 %v2607
    %v2648 = vunpack.c.l.b16 %v2608
    %v2649 = vunpack.c.l.b16 %v2609
    %v2650 = vunpack.c.l.b16 %v2610
    %v2651 = vunpack.c.l.b16 %v2611
    %v2652 = vunpack.c.l.b16 %v2612
    %v2653 = vunpack.c.l.b16 %v2613
    %v2654 = vunpack.c.l.b16 %v2614
    %v2655 = vunpack.c.l.b16 %v2615
    %v2656 = vunpack.c.l.b16 %v2616
    %v2657 = vunpack.c.l.b16 %v2617
    %v2658 = vunpack.c.l.b16 %v2618
    %v2659 = vunpack.c.l.b16 %v2619
    %v2660 = vunpack.c.l.b16 %v2620
    %v2661 = vunpack.c.l.b16 %v2621
    %v2662 = vunpack.c.l.b16 %v2622
    %v2663 = vpack.c.b16 %v2648, %v2647
    %v2664 = vpack.c.b16 %v2650, %v2649
    %v2665 = vpack.c.b16 %v2652, %v2651
    %v2666 = vpack.c.b16 %v2654, %v2653
    %v2667 = vpack.c.b16 %v2656, %v2655
    %v2668 = vpack.c.b16 %v2658, %v2657
    %v2669 = vpack.c.b16 %v2660, %v2659
    %v2670 = vpack.c.b16 %v2662, %v2661
    %vm2671 = vcmask 64512
    %v2673 = vsel %vm2671, %v2663, 0
    %v2676 = vsel %vm2671, %v2664, 0
    %v2679 = vsel %vm2671, %v2665, 0
    %v2682 = vsel %vm2671, %v2666, 0
    %v2685 = vsel %vm2671, %v2667, 0
    %v2688 = vsel %vm2671, %v2668, 0
    %v2691 = vsel %vm2671, %v2669, 0
    %v2694 = vsel %vm2671, %v2670, 0
    %v2697 = vsel %vm1265, %v2623, 0
    %2699 = vmatprep.subr.bf16.mxu0 0
    %2700 = vmatpush1.bf16.msra.mxu0 %v2697
    %2701 = vmatprep.subr.bf16.mxu0 0
    %2702 = vmatpush1.bf16.msra.mxu0 0
    %2703 = vmatprep.subr.bf16.mxu0 0
    %2704 = vmatpush1.bf16.msra.mxu0 0
    %2705 = vmatprep.subr.bf16.mxu0 0
    %2706 = vmatpush1.bf16.msra.mxu0 0
    %2707 = vmatprep.subr.bf16.mxu0 0
    %2708 = vmatpush1.bf16.msra.mxu0 0
    %2709 = vmatprep.subr.bf16.mxu0 0
    %2710 = vmatpush1.bf16.msra.mxu0 0
    %2711 = vmatprep.subr.bf16.mxu0 0
    %2712 = vmatpush1.bf16.msra.mxu0 0
    %2713 = vmatprep.subr.bf16.mxu0 0
    %2714 = vmatpush1.bf16.msra.mxu0 0
    %2715 = vmatprep.subr.bf16.mxu0 0
    %2716 = vmatpush1.bf16.msra.mxu0 0
    %2717 = vmatprep.subr.bf16.mxu0 0
    %2718 = vmatpush1.bf16.msra.mxu0 0
    %2719 = vmatprep.subr.bf16.mxu0 0
    %2720 = vmatpush1.bf16.msra.mxu0 0
    %2721 = vmatprep.subr.bf16.mxu0 0
    %2722 = vmatpush1.bf16.msra.mxu0 0
    %2723 = vmatprep.subr.bf16.mxu0 0
    %2724 = vmatpush1.bf16.msra.mxu0 0
    %2725 = vmatprep.subr.bf16.mxu0 0
    %2726 = vmatpush1.bf16.msra.mxu0 0
    %2727 = vmatprep.subr.bf16.mxu0 0
    %2728 = vmatpush1.bf16.msra.mxu0 0
    %2729 = vmatprep.subr.bf16.mxu0 0
    %2730 = vmatpush1.bf16.msra.mxu0 0
    %2731 = vmatprep.mubr.bf16.mxu0 0
    %2732 = vmatmul.mubr.bf16.gmra.mrb[0].mxu0 %v2673
    %v2733 = vpop.f32.mrb[0].mxu0
    %v2734 = vadd.f32 %v2629, %v2733
    %v2735 = vpop.f32.mrb[0].mxu0
    %v2736 = vpop.f32.mrb[0].mxu0
    %v2737 = vadd.f32 %v2629, %v2736
    %v2738 = vpop.f32.mrb[0].mxu0
    %2739 = vmatprep.mubr.bf16.mxu0 0
    %2740 = vmatmul.mubr.bf16.gmra.mrb[0].mxu0 %v2676
    %v2741 = vpop.f32.mrb[0].mxu0
    %v2742 = vadd.f32 %v2629, %v2741
    %v2743 = vpop.f32.mrb[0].mxu0
    %v2744 = vpop.f32.mrb[0].mxu0
    %v2745 = vadd.f32 %v2629, %v2744
    %v2746 = vpop.f32.mrb[0].mxu0
    %2747 = vmatprep.mubr.bf16.mxu0 0
    %2748 = vmatmul.mubr.bf16.gmra.mrb[0].mxu0 %v2679
    %v2749 = vpop.f32.mrb[0].mxu0
    %v2750 = vadd.f32 %v2629, %v2749
    %v2751 = vpop.f32.mrb[0].mxu0
    %v2752 = vpop.f32.mrb[0].mxu0
    %v2753 = vadd.f32 %v2629, %v2752
    %v2754 = vpop.f32.mrb[0].mxu0
    %2755 = vmatprep.mubr.bf16.mxu0 0
    %2756 = vmatmul.mubr.bf16.gmra.mrb[0].mxu0 %v2682
    %v2757 = vpop.f32.mrb[0].mxu0
    %v2758 = vadd.f32 %v2629, %v2757
    %v2759 = vpop.f32.mrb[0].mxu0
    %v2760 = vpop.f32.mrb[0].mxu0
    %v2761 = vadd.f32 %v2629, %v2760
    %v2762 = vpop.f32.mrb[0].mxu0
    %2763 = vmatprep.mubr.bf16.mxu0 0
    %2764 = vmatmul.mubr.bf16.gmra.mrb[0].mxu0 %v2685
    %v2765 = vpop.f32.mrb[0].mxu0
    %v2766 = vadd.f32 %v2629, %v2765
    %v2767 = vpop.f32.mrb[0].mxu0
    %v2768 = vpop.f32.mrb[0].mxu0
    %v2769 = vadd.f32 %v2629, %v2768
    %v2770 = vpop.f32.mrb[0].mxu0
    %2771 = vmatprep.mubr.bf16.mxu0 0
    %2772 = vmatmul.mubr.bf16.gmra.mrb[0].mxu0 %v2688
    %v2773 = vpop.f32.mrb[0].mxu0
    %v2774 = vadd.f32 %v2629, %v2773
    %v2775 = vpop.f32.mrb[0].mxu0
    %v2776 = vpop.f32.mrb[0].mxu0
    %v2777 = vadd.f32 %v2629, %v2776
    %v2778 = vpop.f32.mrb[0].mxu0
    %2779 = vmatprep.mubr.bf16.mxu0 0
    %2780 = vmatmul.mubr.bf16.gmra.mrb[0].mxu0 %v2691
    %v2781 = vpop.f32.mrb[0].mxu0
    %v2782 = vadd.f32 %v2629, %v2781
    %v2783 = vpop.f32.mrb[0].mxu0
    %v2784 = vpop.f32.mrb[0].mxu0
    %v2785 = vadd.f32 %v2629, %v2784
    %v2786 = vpop.f32.mrb[0].mxu0
    %2787 = vmatprep.mubr.bf16.mxu0 0
    %2788 = vmatmul.mubr.bf16.gmra.mrb[0].mxu0 %v2694
    %v2789 = vpop.f32.mrb[0].mxu0
    %v2790 = vadd.f32 %v2629, %v2789
    %v2791 = vpop.f32.mrb[0].mxu0
    %v2792 = vpop.f32.mrb[0].mxu0
    %v2793 = vadd.f32 %v2629, %v2792
    %v2794 = vpop.f32.mrb[0].mxu0
    %2795 = vdwg.mxu0
    %v2796 = vmax.f32 %v2734, 0.0
    %v2797 = vmax.f32 %v2737, 0.0
    %v2798 = vmax.f32 %v2742, 0.0
    %v2799 = vmax.f32 %v2745, 0.0
    %v2800 = vmax.f32 %v2750, 0.0
    %v2801 = vmax.f32 %v2753, 0.0
    %v2802 = vmax.f32 %v2758, 0.0
    %v2803 = vmax.f32 %v2761, 0.0
    %v2804 = vmax.f32 %v2766, 0.0
    %v2805 = vmax.f32 %v2769, 0.0
    %v2806 = vmax.f32 %v2774, 0.0
    %v2807 = vmax.f32 %v2777, 0.0
    %v2808 = vmax.f32 %v2782, 0.0
    %v2809 = vmax.f32 %v2785, 0.0
    %v2810 = vmax.f32 %v2790, 0.0
    %v2811 = vmax.f32 %v2793, 0.0
    %v2812 = vpack.c.bf16 %v2797, %v2796
    %v2813 = vpack.c.bf16 %v2799, %v2798
    %v2814 = vpack.c.bf16 %v2801, %v2800
    %v2815 = vpack.c.bf16 %v2803, %v2802
    %v2816 = vpack.c.bf16 %v2805, %v2804
    %v2817 = vpack.c.bf16 %v2807, %v2806
    %v2818 = vpack.c.bf16 %v2809, %v2808
    %v2819 = vpack.c.bf16 %v2811, %v2810
    %v2820 = vld [vmem:[%s9] sm:$0xf]
    %v2821 = vld [vmem:[%s9 + $0x4] sm:$0xf]
    %v2822 = vld [vmem:[%s9 + $0x8] sm:$0xf]
    %v2823 = vld [vmem:[%s9 + $0xc] sm:$0xf]
    %v2824 = vld [vmem:[%s9 + $0x10] sm:$0xf]
    %v2825 = vld [vmem:[%s9 + $0x14] sm:$0xf]
    %v2826 = vld [vmem:[%s9 + $0x18] sm:$0xf]
    %v2827 = vld [vmem:[%s9 + $0x1c] sm:$0xf]
    %v2828 = vld [vmem:[%s10] sm:$0x1]
    %v2830 = vlaneseq
    %v2831 = vshrl.u32 %v2830, 7
    %v2832 = vsub.s32 0, %v2831
    %v2833 = vrot.slane %v2828, %v2832
    %v2843 = vunpack.c.l.b16 %v2820
    %v2844 = vunpack.c.l.b16 %v2821
    %v2845 = vunpack.c.l.b16 %v2822
    %v2846 = vunpack.c.l.b16 %v2823
    %v2847 = vunpack.c.l.b16 %v2824
    %v2848 = vunpack.c.l.b16 %v2825
    %v2849 = vunpack.c.l.b16 %v2826
    %v2850 = vunpack.c.l.b16 %v2827
    %v2851 = vpack.c.b16 %v2844, %v2843
    %v2852 = vpack.c.b16 %v2846, %v2845
    %v2853 = vpack.c.b16 %v2848, %v2847
    %v2854 = vpack.c.b16 %v2850, %v2849
    %vm2859 = vcmask 523264
    %v2861 = vsel %vm2859, %v2812, 0
    %v2864 = vsel %vm2859, %v2813, 0
    %v2867 = vsel %vm2859, %v2814, 0
    %v2870 = vsel %vm2859, %v2815, 0
    %v2873 = vsel %vm2859, %v2816, 0
    %v2876 = vsel %vm2859, %v2817, 0
    %v2879 = vsel %vm2859, %v2818, 0
    %v2882 = vsel %vm2859, %v2819, 0
    %2884 = vmatprep.subr.bf16.mxu0 0
    %2885 = vmatpush1.bf16.msra.mxu0 %v2851
    %2886 = vmatprep.subr.bf16.mxu0 0
    %2887 = vmatpush1.bf16.msra.mxu0 %v2852
    %2888 = vmatprep.subr.bf16.mxu0 0
    %2889 = vmatpush1.bf16.msra.mxu0 %v2853
    %2890 = vmatprep.subr.bf16.mxu0 0
    %2891 = vmatpush1.bf16.msra.mxu0 %v2854
    %2892 = vmatprep.subr.bf16.mxu0 0
    %2893 = vmatpush1.bf16.msra.mxu0 0
    %2894 = vmatprep.subr.bf16.mxu0 0
    %2895 = vmatpush1.bf16.msra.mxu0 0
    %2896 = vmatprep.subr.bf16.mxu0 0
    %2897 = vmatpush1.bf16.msra.mxu0 0
    %2898 = vmatprep.subr.bf16.mxu0 0
    %2899 = vmatpush1.bf16.msra.mxu0 0
    %2900 = vmatprep.subr.bf16.mxu0 0
    %2901 = vmatpush1.bf16.msra.mxu0 0
    %2902 = vmatprep.subr.bf16.mxu0 0
    %2903 = vmatpush1.bf16.msra.mxu0 0
    %2904 = vmatprep.subr.bf16.mxu0 0
    %2905 = vmatpush1.bf16.msra.mxu0 0
    %2906 = vmatprep.subr.bf16.mxu0 0
    %2907 = vmatpush1.bf16.msra.mxu0 0
    %2908 = vmatprep.subr.bf16.mxu0 0
    %2909 = vmatpush1.bf16.msra.mxu0 0
    %2910 = vmatprep.subr.bf16.mxu0 0
    %2911 = vmatpush1.bf16.msra.mxu0 0
    %2912 = vmatprep.subr.bf16.mxu0 0
    %2913 = vmatpush1.bf16.msra.mxu0 0
    %2914 = vmatprep.subr.bf16.mxu0 0
    %2915 = vmatpush1.bf16.msra.mxu0 0
    %2916 = vmatprep.mubr.bf16.mxu0 0
    %2917 = vmatmul.mubr.bf16.gmra.mrb[0].mxu0 %v2861
    %v2918 = vpop.f32.mrb[0].mxu0
    %v2919 = vadd.f32 %v2833, %v2918
    %v2920 = vpop.f32.mrb[0].mxu0
    %v2921 = vpop.f32.mrb[0].mxu0
    %v2922 = vadd.f32 %v2833, %v2921
    %v2923 = vpop.f32.mrb[0].mxu0
    %2924 = vmatprep.mubr.bf16.mxu0 0
    %2925 = vmatmul.mubr.bf16.gmra.mrb[0].mxu0 %v2864
    %v2926 = vpop.f32.mrb[0].mxu0
    %v2927 = vadd.f32 %v2833, %v2926
    %v2928 = vpop.f32.mrb[0].mxu0
    %v2929 = vpop.f32.mrb[0].mxu0
    %v2930 = vadd.f32 %v2833, %v2929
    %v2931 = vpop.f32.mrb[0].mxu0
    %2932 = vmatprep.mubr.bf16.mxu0 0
    %2933 = vmatmul.mubr.bf16.gmra.mrb[0].mxu0 %v2867
    %v2934 = vpop.f32.mrb[0].mxu0
    %v2935 = vadd.f32 %v2833, %v2934
    %v2936 = vpop.f32.mrb[0].mxu0
    %v2937 = vpop.f32.mrb[0].mxu0
    %v2938 = vadd.f32 %v2833, %v2937
    %v2939 = vpop.f32.mrb[0].mxu0
    %2940 = vmatprep.mubr.bf16.mxu0 0
    %2941 = vmatmul.mubr.bf16.gmra.mrb[0].mxu0 %v2870
    %v2942 = vpop.f32.mrb[0].mxu0
    %v2943 = vadd.f32 %v2833, %v2942
    %v2944 = vpop.f32.mrb[0].mxu0
    %v2945 = vpop.f32.mrb[0].mxu0
    %v2946 = vadd.f32 %v2833, %v2945
    %v2947 = vpop.f32.mrb[0].mxu0
    %2948 = vmatprep.mubr.bf16.mxu0 0
    %2949 = vmatmul.mubr.bf16.gmra.mrb[0].mxu0 %v2873
    %v2950 = vpop.f32.mrb[0].mxu0
    %v2951 = vadd.f32 %v2833, %v2950
    %v2952 = vpop.f32.mrb[0].mxu0
    %v2953 = vpop.f32.mrb[0].mxu0
    %v2954 = vadd.f32 %v2833, %v2953
    %v2955 = vpop.f32.mrb[0].mxu0
    %2956 = vmatprep.mubr.bf16.mxu0 0
    %2957 = vmatmul.mubr.bf16.gmra.mrb[0].mxu0 %v2876
    %v2958 = vpop.f32.mrb[0].mxu0
    %v2959 = vadd.f32 %v2833, %v2958
    %v2960 = vpop.f32.mrb[0].mxu0
    %v2961 = vpop.f32.mrb[0].mxu0
    %v2962 = vadd.f32 %v2833, %v2961
    %v2963 = vpop.f32.mrb[0].mxu0
    %2964 = vmatprep.mubr.bf16.mxu0 0
    %2965 = vmatmul.mubr.bf16.gmra.mrb[0].mxu0 %v2879
    %v2966 = vpop.f32.mrb[0].mxu0
    %v2967 = vadd.f32 %v2833, %v2966
    %v2968 = vpop.f32.mrb[0].mxu0
    %v2969 = vpop.f32.mrb[0].mxu0
    %v2970 = vadd.f32 %v2833, %v2969
    %v2971 = vpop.f32.mrb[0].mxu0
    %2972 = vmatprep.mubr.bf16.mxu0 0
    %2973 = vmatmul.mubr.bf16.gmra.mrb[0].mxu0 %v2882
    %v2974 = vpop.f32.mrb[0].mxu0
    %v2975 = vadd.f32 %v2833, %v2974
    %v2976 = vpop.f32.mrb[0].mxu0
    %v2977 = vpop.f32.mrb[0].mxu0
    %v2978 = vadd.f32 %v2833, %v2977
    %v2979 = vpop.f32.mrb[0].mxu0
    %2980 = vdwg.mxu0
    %v2981 = vld [vmem:[%s4] sm:$0xff]
    %v2982 = vld [vmem:[%s4 + $0x8] sm:$0xff]
    %v2983 = vld [vmem:[%s4 + $0x10] sm:$0xff]
    %v2984 = vld [vmem:[%s4 + $0x18] sm:$0xff]
    %v2985 = vld [vmem:[%s4 + $0x20] sm:$0xff]
    %v2986 = vld [vmem:[%s4 + $0x28] sm:$0xff]
    %v2987 = vld [vmem:[%s4 + $0x30] sm:$0xff]
    %v2988 = vld [vmem:[%s4 + $0x38] sm:$0xff]
    %v2989 = vld [vmem:[%s4 + $0x40] sm:$0xff]
    %v2990 = vld [vmem:[%s4 + $0x48] sm:$0xff]
    %v2991 = vld [vmem:[%s4 + $0x50] sm:$0xff]
    %v2992 = vld [vmem:[%s4 + $0x58] sm:$0xff]
    %v2993 = vld [vmem:[%s4 + $0x60] sm:$0xff]
    %v2994 = vld [vmem:[%s4 + $0x68] sm:$0xff]
    %v2995 = vld [vmem:[%s4 + $0x70] sm:$0xff]
    %v2996 = vld [vmem:[%s4 + $0x78] sm:$0xff]
    %v2997 = vld [vmem:[%s4 + $0x80] sm:$0xff]
    %v2998 = vld [vmem:[%s4 + $0x88] sm:$0xff]
    %v2999 = vld [vmem:[%s4 + $0x90] sm:$0xff]
    %v3000 = vld [vmem:[%s4 + $0x98] sm:$0xff]
    %v3001 = vld [vmem:[%s4 + $0xa0] sm:$0xff]
    %v3002 = vld [vmem:[%s4 + $0xa8] sm:$0xff]
    %v3003 = vld [vmem:[%s4 + $0xb0] sm:$0xff]
    %v3004 = vld [vmem:[%s4 + $0xb8] sm:$0xff]
    %v3005 = vld [vmem:[%s4 + $0xc0] sm:$0xff]
    %v3006 = vld [vmem:[%s4 + $0xc8] sm:$0xff]
    %v3007 = vld [vmem:[%s4 + $0xd0] sm:$0xff]
    %v3008 = vld [vmem:[%s4 + $0xd8] sm:$0xff]
    %v3009 = vld [vmem:[%s4 + $0xe0] sm:$0xff]
    %v3010 = vld [vmem:[%s4 + $0xe8] sm:$0xff]
    %v3011 = vld [vmem:[%s4 + $0xf0] sm:$0xff]
    %v3012 = vld [vmem:[%s4 + $0xf8] sm:$0xff]
    %v3013 = vld [vmem:[%s4 + $0x100] sm:$0xff]
    %v3014 = vld [vmem:[%s4 + $0x108] sm:$0xff]
    %v3015 = vld [vmem:[%s4 + $0x110] sm:$0xff]
    %v3016 = vld [vmem:[%s4 + $0x118] sm:$0xff]
    %v3017 = vld [vmem:[%s4 + $0x120] sm:$0xff]
    %v3018 = vld [vmem:[%s4 + $0x128] sm:$0xff]
    %v3019 = vld [vmem:[%s4 + $0x130] sm:$0xff]
    %v3020 = vld [vmem:[%s4 + $0x138] sm:$0xff]
    %v3021 = vld [vmem:[%s4 + $0x140] sm:$0xff]
    %v3022 = vld [vmem:[%s4 + $0x148] sm:$0xff]
    %v3023 = vld [vmem:[%s4 + $0x150] sm:$0xff]
    %v3024 = vld [vmem:[%s4 + $0x158] sm:$0xff]
    %v3025 = vld [vmem:[%s4 + $0x160] sm:$0xff]
    %v3026 = vld [vmem:[%s4 + $0x168] sm:$0xff]
    %v3027 = vld [vmem:[%s4 + $0x170] sm:$0xff]
    %v3028 = vld [vmem:[%s4 + $0x178] sm:$0xff]
    %v3029 = vld [vmem:[%s4 + $0x180] sm:$0xff]
    %v3030 = vld [vmem:[%s4 + $0x188] sm:$0xff]
    %v3031 = vld [vmem:[%s4 + $0x190] sm:$0xff]
    %v3032 = vld [vmem:[%s4 + $0x198] sm:$0xff]
    %v3033 = vld [vmem:[%s4 + $0x1a0] sm:$0xff]
    %v3034 = vld [vmem:[%s4 + $0x1a8] sm:$0xff]
    %v3035 = vld [vmem:[%s4 + $0x1b0] sm:$0xff]
    %v3036 = vld [vmem:[%s4 + $0x1b8] sm:$0xff]
    %v3037 = vld [vmem:[%s4 + $0x1c0] sm:$0xff]
    %v3038 = vld [vmem:[%s4 + $0x1c8] sm:$0xff]
    %v3039 = vld [vmem:[%s4 + $0x1d0] sm:$0xff]
    %v3040 = vld [vmem:[%s4 + $0x1d8] sm:$0xff]
    %v3041 = vld [vmem:[%s5] sm:$0x3]
    %v3043 = vlaneseq
    %v3044 = vshrl.u32 %v3043, 7
    %v3045 = vsub.s32 0, %v3044
    %v3046 = vrot.slane %v3041, %v3045
    %v3047 = vlaneseq
    %v3048 = vshrl.u32 %v3047, 7
    %v3049 = vsub.s32 1, %v3048
    %v3050 = vrot.slane %v3041, %v3049
    %v3113 = vunpack.c.l.b16 %v2981
    %v3114 = vunpack.c.h.b16 %v2981
    %v3115 = vunpack.c.l.b16 %v2982
    %v3116 = vunpack.c.h.b16 %v2982
    %v3117 = vunpack.c.l.b16 %v2983
    %v3118 = vunpack.c.h.b16 %v2983
    %v3119 = vunpack.c.l.b16 %v2984
    %v3120 = vunpack.c.h.b16 %v2984
    %v3121 = vunpack.c.l.b16 %v2985
    %v3122 = vunpack.c.h.b16 %v2985
    %v3123 = vunpack.c.l.b16 %v2986
    %v3124 = vunpack.c.h.b16 %v2986
    %v3125 = vunpack.c.l.b16 %v2987
    %v3126 = vunpack.c.h.b16 %v2987
    %v3127 = vunpack.c.l.b16 %v2988
    %v3128 = vunpack.c.h.b16 %v2988
    %v3129 = vunpack.c.l.b16 %v2989
    %v3130 = vunpack.c.h.b16 %v2989
    %v3131 = vunpack.c.l.b16 %v2990
    %v3132 = vunpack.c.h.b16 %v2990
    %v3133 = vunpack.c.l.b16 %v2991
    %v3134 = vunpack.c.h.b16 %v2991
    %v3135 = vunpack.c.l.b16 %v2992
    %v3136 = vunpack.c.h.b16 %v2992
    %v3137 = vunpack.c.l.b16 %v2993
    %v3138 = vunpack.c.h.b16 %v2993
    %v3139 = vunpack.c.l.b16 %v2994
    %v3140 = vunpack.c.h.b16 %v2994
    %v3141 = vunpack.c.l.b16 %v2995
    %v3142 = vunpack.c.h.b16 %v2995
    %v3143 = vunpack.c.l.b16 %v2996
    %v3144 = vunpack.c.h.b16 %v2996
    %v3145 = vunpack.c.l.b16 %v2997
    %v3146 = vunpack.c.h.b16 %v2997
    %v3147 = vunpack.c.l.b16 %v2998
    %v3148 = vunpack.c.h.b16 %v2998
    %v3149 = vunpack.c.l.b16 %v2999
    %v3150 = vunpack.c.h.b16 %v2999
    %v3151 = vunpack.c.l.b16 %v3000
    %v3152 = vunpack.c.h.b16 %v3000
    %v3153 = vunpack.c.l.b16 %v3001
    %v3154 = vunpack.c.h.b16 %v3001
    %v3155 = vunpack.c.l.b16 %v3002
    %v3156 = vunpack.c.h.b16 %v3002
    %v3157 = vunpack.c.l.b16 %v3003
    %v3158 = vunpack.c.h.b16 %v3003
    %v3159 = vunpack.c.l.b16 %v3004
    %v3160 = vunpack.c.h.b16 %v3004
    %v3161 = vunpack.c.l.b16 %v3005
    %v3162 = vunpack.c.h.b16 %v3005
    %v3163 = vunpack.c.l.b16 %v3006
    %v3164 = vunpack.c.h.b16 %v3006
    %v3165 = vunpack.c.l.b16 %v3007
    %v3166 = vunpack.c.h.b16 %v3007
    %v3167 = vunpack.c.l.b16 %v3008
    %v3168 = vunpack.c.h.b16 %v3008
    %v3169 = vunpack.c.l.b16 %v3009
    %v3170 = vunpack.c.h.b16 %v3009
    %v3171 = vunpack.c.l.b16 %v3010
    %v3172 = vunpack.c.h.b16 %v3010
    %v3173 = vunpack.c.l.b16 %v3011
    %v3174 = vunpack.c.h.b16 %v3011
    %v3175 = vunpack.c.l.b16 %v3012
    %v3176 = vunpack.c.h.b16 %v3012
    %v3177 = vunpack.c.l.b16 %v3013
    %v3178 = vunpack.c.h.b16 %v3013
    %v3179 = vunpack.c.l.b16 %v3014
    %v3180 = vunpack.c.h.b16 %v3014
    %v3181 = vunpack.c.l.b16 %v3015
    %v3182 = vunpack.c.h.b16 %v3015
    %v3183 = vunpack.c.l.b16 %v3016
    %v3184 = vunpack.c.h.b16 %v3016
    %v3185 = vunpack.c.l.b16 %v3017
    %v3186 = vunpack.c.h.b16 %v3017
    %v3187 = vunpack.c.l.b16 %v3018
    %v3188 = vunpack.c.h.b16 %v3018
    %v3189 = vunpack.c.l.b16 %v3019
    %v3190 = vunpack.c.h.b16 %v3019
    %v3191 = vunpack.c.l.b16 %v3020
    %v3192 = vunpack.c.h.b16 %v3020
    %v3193 = vunpack.c.l.b16 %v3021
    %v3194 = vunpack.c.h.b16 %v3021
    %v3195 = vunpack.c.l.b16 %v3022
    %v3196 = vunpack.c.h.b16 %v3022
    %v3197 = vunpack.c.l.b16 %v3023
    %v3198 = vunpack.c.h.b16 %v3023
    %v3199 = vunpack.c.l.b16 %v3024
    %v3200 = vunpack.c.h.b16 %v3024
    %v3201 = vunpack.c.l.b16 %v3025
    %v3202 = vunpack.c.h.b16 %v3025
    %v3203 = vunpack.c.l.b16 %v3026
    %v3204 = vunpack.c.h.b16 %v3026
    %v3205 = vunpack.c.l.b16 %v3027
    %v3206 = vunpack.c.h.b16 %v3027
    %v3207 = vunpack.c.l.b16 %v3028
    %v3208 = vunpack.c.h.b16 %v3028
    %v3209 = vunpack.c.l.b16 %v3029
    %v3210 = vunpack.c.h.b16 %v3029
    %v3211 = vunpack.c.l.b16 %v3030
    %v3212 = vunpack.c.h.b16 %v3030
    %v3213 = vunpack.c.l.b16 %v3031
    %v3214 = vunpack.c.h.b16 %v3031
    %v3215 = vunpack.c.l.b16 %v3032
    %v3216 = vunpack.c.h.b16 %v3032
    %v3217 = vunpack.c.l.b16 %v3033
    %v3218 = vunpack.c.h.b16 %v3033
    %v3219 = vunpack.c.l.b16 %v3034
    %v3220 = vunpack.c.h.b16 %v3034
    %v3221 = vunpack.c.l.b16 %v3035
    %v3222 = vunpack.c.h.b16 %v3035
    %v3223 = vunpack.c.l.b16 %v3036
    %v3224 = vunpack.c.h.b16 %v3036
    %v3225 = vunpack.c.l.b16 %v3037
    %v3226 = vunpack.c.h.b16 %v3037
    %v3227 = vunpack.c.l.b16 %v3038
    %v3228 = vunpack.c.h.b16 %v3038
    %v3229 = vunpack.c.l.b16 %v3039
    %v3230 = vunpack.c.h.b16 %v3039
    %v3231 = vunpack.c.l.b16 %v3040
    %v3232 = vunpack.c.h.b16 %v3040
    %v3233 = vpack.c.b16 %v3115, %v3113
    %v3234 = vpack.c.b16 %v3116, %v3114
    %v3235 = vpack.c.b16 %v3119, %v3117
    %v3236 = vpack.c.b16 %v3120, %v3118
    %v3237 = vpack.c.b16 %v3123, %v3121
    %v3238 = vpack.c.b16 %v3124, %v3122
    %v3239 = vpack.c.b16 %v3127, %v3125
    %v3240 = vpack.c.b16 %v3128, %v3126
    %v3241 = vpack.c.b16 %v3131, %v3129
    %v3242 = vpack.c.b16 %v3132, %v3130
    %v3243 = vpack.c.b16 %v3135, %v3133
    %v3244 = vpack.c.b16 %v3136, %v3134
    %v3245 = vpack.c.b16 %v3139, %v3137
    %v3246 = vpack.c.b16 %v3140, %v3138
    %v3247 = vpack.c.b16 %v3143, %v3141
    %v3248 = vpack.c.b16 %v3144, %v3142
    %v3249 = vpack.c.b16 %v3147, %v3145
    %v3250 = vpack.c.b16 %v3148, %v3146
    %v3251 = vpack.c.b16 %v3151, %v3149
    %v3252 = vpack.c.b16 %v3152, %v3150
    %v3253 = vpack.c.b16 %v3155, %v3153
    %v3254 = vpack.c.b16 %v3156, %v3154
    %v3255 = vpack.c.b16 %v3159, %v3157
    %v3256 = vpack.c.b16 %v3160, %v3158
    %v3257 = vpack.c.b16 %v3163, %v3161
    %v3258 = vpack.c.b16 %v3164, %v3162
    %v3259 = vpack.c.b16 %v3167, %v3165
    %v3260 = vpack.c.b16 %v3168, %v3166
    %v3261 = vpack.c.b16 %v3171, %v3169
    %v3262 = vpack.c.b16 %v3172, %v3170
    %v3263 = vpack.c.b16 %v3175, %v3173
    %v3264 = vpack.c.b16 %v3176, %v3174
    %v3265 = vpack.c.b16 %v3179, %v3177
    %v3266 = vpack.c.b16 %v3180, %v3178
    %v3267 = vpack.c.b16 %v3183, %v3181
    %v3268 = vpack.c.b16 %v3184, %v3182
    %v3269 = vpack.c.b16 %v3187, %v3185
    %v3270 = vpack.c.b16 %v3188, %v3186
    %v3271 = vpack.c.b16 %v3191, %v3189
    %v3272 = vpack.c.b16 %v3192, %v3190
    %v3273 = vpack.c.b16 %v3195, %v3193
    %v3274 = vpack.c.b16 %v3196, %v3194
    %v3275 = vpack.c.b16 %v3199, %v3197
    %v3276 = vpack.c.b16 %v3200, %v3198
    %v3277 = vpack.c.b16 %v3203, %v3201
    %v3278 = vpack.c.b16 %v3204, %v3202
    %v3279 = vpack.c.b16 %v3207, %v3205
    %v3280 = vpack.c.b16 %v3208, %v3206
    %v3281 = vpack.c.b16 %v3211, %v3209
    %v3282 = vpack.c.b16 %v3212, %v3210
    %v3283 = vpack.c.b16 %v3215, %v3213
    %v3284 = vpack.c.b16 %v3216, %v3214
    %v3285 = vpack.c.b16 %v3219, %v3217
    %v3286 = vpack.c.b16 %v3220, %v3218
    %v3287 = vpack.c.b16 %v3223, %v3221
    %v3288 = vpack.c.b16 %v3224, %v3222
    %v3289 = vpack.c.b16 %v3227, %v3225
    %v3290 = vpack.c.b16 %v3228, %v3226
    %v3291 = vpack.c.b16 %v3231, %v3229
    %v3292 = vpack.c.b16 %v3232, %v3230
    %vm3353 = vcmask 785408
    %v3355 = vsel %vm3353, %v2538, 0
    %v3358 = vsel %vm3353, %v2547, 0
    %v3361 = vsel %vm3353, %v2556, 0
    %v3364 = vsel %vm3353, %v2565, 0
    %v3367 = vsel %vm3353, %v2574, 0
    %v3370 = vsel %vm3353, %v2583, 0
    %v3373 = vsel %vm3353, %v2592, 0
    %v3376 = vsel %vm3353, %v2601, 0
    %3378 = vmatprep.subr.bf16.mxu0 %v3234
    %3379 = vmatpush1.bf16.msra.mxu0 %v3233
    %3380 = vmatprep.subr.bf16.mxu0 %v3236
    %3381 = vmatpush1.bf16.msra.mxu0 %v3235
    %3382 = vmatprep.subr.bf16.mxu0 %v3238
    %3383 = vmatpush1.bf16.msra.mxu0 %v3237
    %3384 = vmatprep.subr.bf16.mxu0 %v3240
    %3385 = vmatpush1.bf16.msra.mxu0 %v3239
    %3386 = vmatprep.subr.bf16.mxu0 %v3242
    %3387 = vmatpush1.bf16.msra.mxu0 %v3241
    %3388 = vmatprep.subr.bf16.mxu0 %v3244
    %3389 = vmatpush1.bf16.msra.mxu0 %v3243
    %3390 = vmatprep.subr.bf16.mxu0 %v3246
    %3391 = vmatpush1.bf16.msra.mxu0 %v3245
    %3392 = vmatprep.subr.bf16.mxu0 %v3248
    %3393 = vmatpush1.bf16.msra.mxu0 %v3247
    %3394 = vmatprep.subr.bf16.mxu0 %v3250
    %3395 = vmatpush1.bf16.msra.mxu0 %v3249
    %3396 = vmatprep.subr.bf16.mxu0 %v3252
    %3397 = vmatpush1.bf16.msra.mxu0 %v3251
    %3398 = vmatprep.subr.bf16.mxu0 %v3254
    %3399 = vmatpush1.bf16.msra.mxu0 %v3253
    %3400 = vmatprep.subr.bf16.mxu0 %v3256
    %3401 = vmatpush1.bf16.msra.mxu0 %v3255
    %3402 = vmatprep.subr.bf16.mxu0 %v3258
    %3403 = vmatpush1.bf16.msra.mxu0 %v3257
    %3404 = vmatprep.subr.bf16.mxu0 %v3260
    %3405 = vmatpush1.bf16.msra.mxu0 %v3259
    %3406 = vmatprep.subr.bf16.mxu0 %v3262
    %3407 = vmatpush1.bf16.msra.mxu0 %v3261
    %3408 = vmatprep.subr.bf16.mxu0 %v3264
    %3409 = vmatpush1.bf16.msra.mxu0 %v3263
    %3410 = vmatprep.mubr.bf16.mxu0 %v2536
    %3411 = vmatmul.mubr.bf16.gmra.mrb[0].mxu0 %v2535
    %v3412 = vpop.f32.mrb[0].mxu0
    %v3413 = vadd.f32 %v3046, %v3412
    %v3414 = vpop.f32.mrb[0].mxu0
    %v3415 = vadd.f32 %v3050, %v3414
    %v3416 = vpop.f32.mrb[0].mxu0
    %v3417 = vadd.f32 %v3046, %v3416
    %v3418 = vpop.f32.mrb[0].mxu0
    %v3419 = vadd.f32 %v3050, %v3418
    %3420 = vmatprep.mubr.bf16.mxu0 %v2545
    %3421 = vmatmul.mubr.bf16.gmra.mrb[0].mxu0 %v2544
    %v3422 = vpop.f32.mrb[0].mxu0
    %v3423 = vadd.f32 %v3046, %v3422
    %v3424 = vpop.f32.mrb[0].mxu0
    %v3425 = vadd.f32 %v3050, %v3424
    %v3426 = vpop.f32.mrb[0].mxu0
    %v3427 = vadd.f32 %v3046, %v3426
    %v3428 = vpop.f32.mrb[0].mxu0
    %v3429 = vadd.f32 %v3050, %v3428
    %3430 = vmatprep.mubr.bf16.mxu0 %v2554
    %3431 = vmatmul.mubr.bf16.gmra.mrb[0].mxu0 %v2553
    %v3432 = vpop.f32.mrb[0].mxu0
    %v3433 = vadd.f32 %v3046, %v3432
    %v3434 = vpop.f32.mrb[0].mxu0
    %v3435 = vadd.f32 %v3050, %v3434
    %v3436 = vpop.f32.mrb[0].mxu0
    %v3437 = vadd.f32 %v3046, %v3436
    %v3438 = vpop.f32.mrb[0].mxu0
    %v3439 = vadd.f32 %v3050, %v3438
    %3440 = vmatprep.mubr.bf16.mxu0 %v2563
    %3441 = vmatmul.mubr.bf16.gmra.mrb[0].mxu0 %v2562
    %v3442 = vpop.f32.mrb[0].mxu0
    %v3443 = vadd.f32 %v3046, %v3442
    %v3444 = vpop.f32.mrb[0].mxu0
    %v3445 = vadd.f32 %v3050, %v3444
    %v3446 = vpop.f32.mrb[0].mxu0
    %v3447 = vadd.f32 %v3046, %v3446
    %v3448 = vpop.f32.mrb[0].mxu0
    %v3449 = vadd.f32 %v3050, %v3448
    %3450 = vmatprep.mubr.bf16.mxu0 %v2572
    %3451 = vmatmul.mubr.bf16.gmra.mrb[0].mxu0 %v2571
    %v3452 = vpop.f32.mrb[0].mxu0
    %v3453 = vadd.f32 %v3046, %v3452
    %v3454 = vpop.f32.mrb[0].mxu0
    %v3455 = vadd.f32 %v3050, %v3454
    %v3456 = vpop.f32.mrb[0].mxu0
    %v3457 = vadd.f32 %v3046, %v3456
    %v3458 = vpop.f32.mrb[0].mxu0
    %v3459 = vadd.f32 %v3050, %v3458
    %3460 = vmatprep.mubr.bf16.mxu0 %v2581
    %3461 = vmatmul.mubr.bf16.gmra.mrb[0].mxu0 %v2580
    %v3462 = vpop.f32.mrb[0].mxu0
    %v3463 = vadd.f32 %v3046, %v3462
    %v3464 = vpop.f32.mrb[0].mxu0
    %v3465 = vadd.f32 %v3050, %v3464
    %v3466 = vpop.f32.mrb[0].mxu0
    %v3467 = vadd.f32 %v3046, %v3466
    %v3468 = vpop.f32.mrb[0].mxu0
    %v3469 = vadd.f32 %v3050, %v3468
    %3470 = vmatprep.mubr.bf16.mxu0 %v2590
    %3471 = vmatmul.mubr.bf16.gmra.mrb[0].mxu0 %v2589
    %v3472 = vpop.f32.mrb[0].mxu0
    %v3473 = vadd.f32 %v3046, %v3472
    %v3474 = vpop.f32.mrb[0].mxu0
    %v3475 = vadd.f32 %v3050, %v3474
    %v3476 = vpop.f32.mrb[0].mxu0
    %v3477 = vadd.f32 %v3046, %v3476
    %v3478 = vpop.f32.mrb[0].mxu0
    %v3479 = vadd.f32 %v3050, %v3478
    %3480 = vmatprep.mubr.bf16.mxu0 %v2599
    %3481 = vmatmul.mubr.bf16.gmra.mrb[0].mxu0 %v2598
    %v3482 = vpop.f32.mrb[0].mxu0
    %v3483 = vadd.f32 %v3046, %v3482
    %v3484 = vpop.f32.mrb[0].mxu0
    %v3485 = vadd.f32 %v3050, %v3484
    %v3486 = vpop.f32.mrb[0].mxu0
    %v3487 = vadd.f32 %v3046, %v3486
    %v3488 = vpop.f32.mrb[0].mxu0
    %v3489 = vadd.f32 %v3050, %v3488
    %3490 = vdwg.mxu0
    %3491 = vmatprep.subr.bf16.mxu0 %v3266
    %3492 = vmatpush1.bf16.msra.mxu0 %v3265
    %3493 = vmatprep.subr.bf16.mxu0 %v3268
    %3494 = vmatpush1.bf16.msra.mxu0 %v3267
    %3495 = vmatprep.subr.bf16.mxu0 %v3270
    %3496 = vmatpush1.bf16.msra.mxu0 %v3269
    %3497 = vmatprep.subr.bf16.mxu0 %v3272
    %3498 = vmatpush1.bf16.msra.mxu0 %v3271
    %3499 = vmatprep.subr.bf16.mxu0 %v3274
    %3500 = vmatpush1.bf16.msra.mxu0 %v3273
    %3501 = vmatprep.subr.bf16.mxu0 %v3276
    %3502 = vmatpush1.bf16.msra.mxu0 %v3275
    %3503 = vmatprep.subr.bf16.mxu0 %v3278
    %3504 = vmatpush1.bf16.msra.mxu0 %v3277
    %3505 = vmatprep.subr.bf16.mxu0 %v3280
    %3506 = vmatpush1.bf16.msra.mxu0 %v3279
    %3507 = vmatprep.subr.bf16.mxu0 %v3282
    %3508 = vmatpush1.bf16.msra.mxu0 %v3281
    %3509 = vmatprep.subr.bf16.mxu0 %v3284
    %3510 = vmatpush1.bf16.msra.mxu0 %v3283
    %3511 = vmatprep.subr.bf16.mxu0 %v3286
    %3512 = vmatpush1.bf16.msra.mxu0 %v3285
    %3513 = vmatprep.subr.bf16.mxu0 %v3288
    %3514 = vmatpush1.bf16.msra.mxu0 %v3287
    %3515 = vmatprep.subr.bf16.mxu0 %v3290
    %3516 = vmatpush1.bf16.msra.mxu0 %v3289
    %3517 = vmatprep.subr.bf16.mxu0 %v3292
    %3518 = vmatpush1.bf16.msra.mxu0 %v3291
    %3519 = vmatprep.subr.bf16.mxu0 0
    %3520 = vmatpush1.bf16.msra.mxu0 0
    %3521 = vmatprep.subr.bf16.mxu0 0
    %3522 = vmatpush1.bf16.msra.mxu0 0
    %3523 = vmatprep.mubr.bf16.mxu0 %v3355
    %3524 = vmatmul.mubr.bf16.gmra.mrb[0].mxu0 %v2537
    %v3525 = vpop.f32.mrb[0].mxu0
    %v3526 = vadd.f32 %v3413, %v3525
    %v3527 = vpop.f32.mrb[0].mxu0
    %v3528 = vadd.f32 %v3415, %v3527
    %v3529 = vpop.f32.mrb[0].mxu0
    %v3530 = vadd.f32 %v3417, %v3529
    %v3531 = vpop.f32.mrb[0].mxu0
    %v3532 = vadd.f32 %v3419, %v3531
    %3533 = vmatprep.mubr.bf16.mxu0 %v3358
    %3534 = vmatmul.mubr.bf16.gmra.mrb[0].mxu0 %v2546
    %v3535 = vpop.f32.mrb[0].mxu0
    %v3536 = vadd.f32 %v3423, %v3535
    %v3537 = vpop.f32.mrb[0].mxu0
    %v3538 = vadd.f32 %v3425, %v3537
    %v3539 = vpop.f32.mrb[0].mxu0
    %v3540 = vadd.f32 %v3427, %v3539
    %v3541 = vpop.f32.mrb[0].mxu0
    %v3542 = vadd.f32 %v3429, %v3541
    %3543 = vmatprep.mubr.bf16.mxu0 %v3361
    %3544 = vmatmul.mubr.bf16.gmra.mrb[0].mxu0 %v2555
    %v3545 = vpop.f32.mrb[0].mxu0
    %v3546 = vadd.f32 %v3433, %v3545
    %v3547 = vpop.f32.mrb[0].mxu0
    %v3548 = vadd.f32 %v3435, %v3547
    %v3549 = vpop.f32.mrb[0].mxu0
    %v3550 = vadd.f32 %v3437, %v3549
    %v3551 = vpop.f32.mrb[0].mxu0
    %v3552 = vadd.f32 %v3439, %v3551
    %3553 = vmatprep.mubr.bf16.mxu0 %v3364
    %3554 = vmatmul.mubr.bf16.gmra.mrb[0].mxu0 %v2564
    %v3555 = vpop.f32.mrb[0].mxu0
    %v3556 = vadd.f32 %v3443, %v3555
    %v3557 = vpop.f32.mrb[0].mxu0
    %v3558 = vadd.f32 %v3445, %v3557
    %v3559 = vpop.f32.mrb[0].mxu0
    %v3560 = vadd.f32 %v3447, %v3559
    %v3561 = vpop.f32.mrb[0].mxu0
    %v3562 = vadd.f32 %v3449, %v3561
    %3563 = vmatprep.mubr.bf16.mxu0 %v3367
    %3564 = vmatmul.mubr.bf16.gmra.mrb[0].mxu0 %v2573
    %v3565 = vpop.f32.mrb[0].mxu0
    %v3566 = vadd.f32 %v3453, %v3565
    %v3567 = vpop.f32.mrb[0].mxu0
    %v3568 = vadd.f32 %v3455, %v3567
    %v3569 = vpop.f32.mrb[0].mxu0
    %v3570 = vadd.f32 %v3457, %v3569
    %v3571 = vpop.f32.mrb[0].mxu0
    %v3572 = vadd.f32 %v3459, %v3571
    %3573 = vmatprep.mubr.bf16.mxu0 %v3370
    %3574 = vmatmul.mubr.bf16.gmra.mrb[0].mxu0 %v2582
    %v3575 = vpop.f32.mrb[0].mxu0
    %v3576 = vadd.f32 %v3463, %v3575
    %v3577 = vpop.f32.mrb[0].mxu0
    %v3578 = vadd.f32 %v3465, %v3577
    %v3579 = vpop.f32.mrb[0].mxu0
    %v3580 = vadd.f32 %v3467, %v3579
    %v3581 = vpop.f32.mrb[0].mxu0
    %v3582 = vadd.f32 %v3469, %v3581
    %3583 = vmatprep.mubr.bf16.mxu0 %v3373
    %3584 = vmatmul.mubr.bf16.gmra.mrb[0].mxu0 %v2591
    %v3585 = vpop.f32.mrb[0].mxu0
    %v3586 = vadd.f32 %v3473, %v3585
    %v3587 = vpop.f32.mrb[0].mxu0
    %v3588 = vadd.f32 %v3475, %v3587
    %v3589 = vpop.f32.mrb[0].mxu0
    %v3590 = vadd.f32 %v3477, %v3589
    %v3591 = vpop.f32.mrb[0].mxu0
    %v3592 = vadd.f32 %v3479, %v3591
    %3593 = vmatprep.mubr.bf16.mxu0 %v3376
    %3594 = vmatmul.mubr.bf16.gmra.mrb[0].mxu0 %v2600
    %v3595 = vpop.f32.mrb[0].mxu0
    %v3596 = vadd.f32 %v3483, %v3595
    %v3597 = vpop.f32.mrb[0].mxu0
    %v3598 = vadd.f32 %v3485, %v3597
    %v3599 = vpop.f32.mrb[0].mxu0
    %v3600 = vadd.f32 %v3487, %v3599
    %v3601 = vpop.f32.mrb[0].mxu0
    %v3602 = vadd.f32 %v3489, %v3601
    %3603 = vdwg.mxu0
    %v3604 = vmax.f32 %v3526, 0.0
    %v3605 = vmax.f32 %v3528, 0.0
    %v3606 = vmax.f32 %v3530, 0.0
    %v3607 = vmax.f32 %v3532, 0.0
    %v3608 = vmax.f32 %v3536, 0.0
    %v3609 = vmax.f32 %v3538, 0.0
    %v3610 = vmax.f32 %v3540, 0.0
    %v3611 = vmax.f32 %v3542, 0.0
    %v3612 = vmax.f32 %v3546, 0.0
    %v3613 = vmax.f32 %v3548, 0.0
    %v3614 = vmax.f32 %v3550, 0.0
    %v3615 = vmax.f32 %v3552, 0.0
    %v3616 = vmax.f32 %v3556, 0.0
    %v3617 = vmax.f32 %v3558, 0.0
    %v3618 = vmax.f32 %v3560, 0.0
    %v3619 = vmax.f32 %v3562, 0.0
    %v3620 = vmax.f32 %v3566, 0.0
    %v3621 = vmax.f32 %v3568, 0.0
    %v3622 = vmax.f32 %v3570, 0.0
    %v3623 = vmax.f32 %v3572, 0.0
    %v3624 = vmax.f32 %v3576, 0.0
    %v3625 = vmax.f32 %v3578, 0.0
    %v3626 = vmax.f32 %v3580, 0.0
    %v3627 = vmax.f32 %v3582, 0.0
    %v3628 = vmax.f32 %v3586, 0.0
    %v3629 = vmax.f32 %v3588, 0.0
    %v3630 = vmax.f32 %v3590, 0.0
    %v3631 = vmax.f32 %v3592, 0.0
    %v3632 = vmax.f32 %v3596, 0.0
    %v3633 = vmax.f32 %v3598, 0.0
    %v3634 = vmax.f32 %v3600, 0.0
    %v3635 = vmax.f32 %v3602, 0.0
    %v3636 = vpack.c.bf16 %v3606, %v3604
    %v3637 = vpack.c.bf16 %v3607, %v3605
    %v3638 = vpack.c.bf16 %v3610, %v3608
    %v3639 = vpack.c.bf16 %v3611, %v3609
    %v3640 = vpack.c.bf16 %v3614, %v3612
    %v3641 = vpack.c.bf16 %v3615, %v3613
    %v3642 = vpack.c.bf16 %v3618, %v3616
    %v3643 = vpack.c.bf16 %v3619, %v3617
    %v3644 = vpack.c.bf16 %v3622, %v3620
    %v3645 = vpack.c.bf16 %v3623, %v3621
    %v3646 = vpack.c.bf16 %v3626, %v3624
    %v3647 = vpack.c.bf16 %v3627, %v3625
    %v3648 = vpack.c.bf16 %v3630, %v3628
    %v3649 = vpack.c.bf16 %v3631, %v3629
    %v3650 = vpack.c.bf16 %v3634, %v3632
    %v3651 = vpack.c.bf16 %v3635, %v3633
    %v3652 = vld [vmem:[#allocation2] sm:$0xf]
    %v3653 = vld [vmem:[#allocation2 + $0x4] sm:$0xf]
    %v3654 = vld [vmem:[#allocation2 + $0x8] sm:$0xf]
    %v3655 = vld [vmem:[#allocation2 + $0xc] sm:$0xf]
    %v3656 = vld [vmem:[#allocation2 + $0x10] sm:$0xf]
    %v3657 = vld [vmem:[#allocation2 + $0x14] sm:$0xf]
    %v3658 = vld [vmem:[#allocation2 + $0x18] sm:$0xf]
    %v3659 = vld [vmem:[#allocation2 + $0x1c] sm:$0xf]
    %v3660 = vld [vmem:[#allocation2 + $0x20] sm:$0xf]
    %v3661 = vld [vmem:[#allocation2 + $0x24] sm:$0xf]
    %v3662 = vld [vmem:[#allocation2 + $0x28] sm:$0xf]
    %v3663 = vld [vmem:[#allocation2 + $0x2c] sm:$0xf]
    %v3664 = vld [vmem:[#allocation2 + $0x30] sm:$0xf]
    %v3665 = vld [vmem:[#allocation2 + $0x34] sm:$0xf]
    %v3666 = vld [vmem:[#allocation2 + $0x38] sm:$0xf]
    %v3667 = vld [vmem:[#allocation2 + $0x3c] sm:$0xf]
    %v3668 = vld [vmem:[#allocation2 + $0x40] sm:$0xf]
    %v3669 = vld [vmem:[#allocation2 + $0x44] sm:$0xf]
    %v3670 = vld [vmem:[#allocation2 + $0x48] sm:$0xf]
    %v3671 = vld [vmem:[#allocation2 + $0x4c] sm:$0xf]
    %v3672 = vld [vmem:[#allocation2 + $0x50] sm:$0xf]
    %v3673 = vld [vmem:[#allocation2 + $0x54] sm:$0xf]
    %v3674 = vld [vmem:[#allocation2 + $0x58] sm:$0xf]
    %v3675 = vld [vmem:[#allocation2 + $0x5c] sm:$0xf]
    %v3700 = vunpack.c.l.b16 %v3652
    %v3701 = vunpack.c.l.b16 %v3653
    %v3702 = vunpack.c.l.b16 %v3654
    %v3703 = vunpack.c.l.b16 %v3655
    %v3704 = vunpack.c.l.b16 %v3656
    %v3705 = vunpack.c.l.b16 %v3657
    %v3706 = vunpack.c.l.b16 %v3658
    %v3707 = vunpack.c.l.b16 %v3659
    %v3708 = vunpack.c.l.b16 %v3660
    %v3709 = vunpack.c.l.b16 %v3661
    %v3710 = vunpack.c.l.b16 %v3662
    %v3711 = vunpack.c.l.b16 %v3663
    %v3712 = vunpack.c.l.b16 %v3664
    %v3713 = vunpack.c.l.b16 %v3665
    %v3714 = vunpack.c.l.b16 %v3666
    %v3715 = vunpack.c.l.b16 %v3667
    %v3716 = vunpack.c.l.b16 %v3668
    %v3717 = vunpack.c.l.b16 %v3669
    %v3718 = vunpack.c.l.b16 %v3670
    %v3719 = vunpack.c.l.b16 %v3671
    %v3720 = vunpack.c.l.b16 %v3672
    %v3721 = vunpack.c.l.b16 %v3673
    %v3722 = vunpack.c.l.b16 %v3674
    %v3723 = vunpack.c.l.b16 %v3675
    %v3724 = vpack.c.b16 %v3701, %v3700
    %v3725 = vpack.c.b16 %v3703, %v3702
    %v3726 = vpack.c.b16 %v3705, %v3704
    %v3727 = vpack.c.b16 %v3707, %v3706
    %v3728 = vpack.c.b16 %v3709, %v3708
    %v3729 = vpack.c.b16 %v3711, %v3710
    %v3730 = vpack.c.b16 %v3713, %v3712
    %v3731 = vpack.c.b16 %v3715, %v3714
    %v3732 = vpack.c.b16 %v3717, %v3716
    %v3733 = vpack.c.b16 %v3719, %v3718
    %v3734 = vpack.c.b16 %v3721, %v3720
    %v3735 = vpack.c.b16 %v3723, %v3722
    %v3749 = vsel %vm2859, %v3637, 0
    %v3752 = vsel %vm2859, %v3639, 0
    %v3755 = vsel %vm2859, %v3641, 0
    %v3758 = vsel %vm2859, %v3643, 0
    %v3761 = vsel %vm2859, %v3645, 0
    %v3764 = vsel %vm2859, %v3647, 0
    %v3767 = vsel %vm2859, %v3649, 0
    %v3770 = vsel %vm2859, %v3651, 0
    %3772 = vmatprep.subr.bf16.mxu0 0
    %3773 = vmatpush1.bf16.msra.mxu0 %v3724
    %3774 = vmatprep.subr.bf16.mxu0 0
    %3775 = vmatpush1.bf16.msra.mxu0 %v3725
    %3776 = vmatprep.subr.bf16.mxu0 0
    %3777 = vmatpush1.bf16.msra.mxu0 %v3726
    %3778 = vmatprep.subr.bf16.mxu0 0
    %3779 = vmatpush1.bf16.msra.mxu0 %v3727
    %3780 = vmatprep.subr.bf16.mxu0 0
    %3781 = vmatpush1.bf16.msra.mxu0 %v3728
    %3782 = vmatprep.subr.bf16.mxu0 0
    %3783 = vmatpush1.bf16.msra.mxu0 %v3729
    %3784 = vmatprep.subr.bf16.mxu0 0
    %3785 = vmatpush1.bf16.msra.mxu0 %v3730
    %3786 = vmatprep.subr.bf16.mxu0 0
    %3787 = vmatpush1.bf16.msra.mxu0 %v3731
    %3788 = vmatprep.subr.bf16.mxu0 0
    %3789 = vmatpush1.bf16.msra.mxu0 %v3732
    %3790 = vmatprep.subr.bf16.mxu0 0
    %3791 = vmatpush1.bf16.msra.mxu0 %v3733
    %3792 = vmatprep.subr.bf16.mxu0 0
    %3793 = vmatpush1.bf16.msra.mxu0 %v3734
    %3794 = vmatprep.subr.bf16.mxu0 0
    %3795 = vmatpush1.bf16.msra.mxu0 %v3735
    %3796 = vmatprep.subr.bf16.mxu0 0
    %3797 = vmatpush1.bf16.msra.mxu0 0
    %3798 = vmatprep.subr.bf16.mxu0 0
    %3799 = vmatpush1.bf16.msra.mxu0 0
    %3800 = vmatprep.subr.bf16.mxu0 0
    %3801 = vmatpush1.bf16.msra.mxu0 0
    %3802 = vmatprep.subr.bf16.mxu0 0
    %3803 = vmatpush1.bf16.msra.mxu0 0
    %3804 = vmatprep.mubr.bf16.mxu0 %v3749
    %3805 = vmatmul.mubr.bf16.gmra.mrb[0].mxu0 %v3636
    %v3806 = vpop.f32.mrb[0].mxu0
    %v3807 = vadd.f32 0.0, %v3806
    %v3808 = vpop.f32.mrb[0].mxu0
    %v3809 = vpop.f32.mrb[0].mxu0
    %v3810 = vadd.f32 0.0, %v3809
    %v3811 = vpop.f32.mrb[0].mxu0
    %3812 = vmatprep.mubr.bf16.mxu0 %v3752
    %3813 = vmatmul.mubr.bf16.gmra.mrb[0].mxu0 %v3638
    %v3814 = vpop.f32.mrb[0].mxu0
    %v3815 = vadd.f32 0.0, %v3814
    %v3816 = vpop.f32.mrb[0].mxu0
    %v3817 = vpop.f32.mrb[0].mxu0
    %v3818 = vadd.f32 0.0, %v3817
    %v3819 = vpop.f32.mrb[0].mxu0
    %3820 = vmatprep.mubr.bf16.mxu0 %v3755
    %3821 = vmatmul.mubr.bf16.gmra.mrb[0].mxu0 %v3640
    %v3822 = vpop.f32.mrb[0].mxu0
    %v3823 = vadd.f32 0.0, %v3822
    %v3824 = vpop.f32.mrb[0].mxu0
    %v3825 = vpop.f32.mrb[0].mxu0
    %v3826 = vadd.f32 0.0, %v3825
    %v3827 = vpop.f32.mrb[0].mxu0
    %3828 = vmatprep.mubr.bf16.mxu0 %v3758
    %3829 = vmatmul.mubr.bf16.gmra.mrb[0].mxu0 %v3642
    %v3830 = vpop.f32.mrb[0].mxu0
    %v3831 = vadd.f32 0.0, %v3830
    %v3832 = vpop.f32.mrb[0].mxu0
    %v3833 = vpop.f32.mrb[0].mxu0
    %v3834 = vadd.f32 0.0, %v3833
    %v3835 = vpop.f32.mrb[0].mxu0
    %3836 = vmatprep.mubr.bf16.mxu0 %v3761
    %3837 = vmatmul.mubr.bf16.gmra.mrb[0].mxu0 %v3644
    %v3838 = vpop.f32.mrb[0].mxu0
    %v3839 = vadd.f32 0.0, %v3838
    %v3840 = vpop.f32.mrb[0].mxu0
    %v3841 = vpop.f32.mrb[0].mxu0
    %v3842 = vadd.f32 0.0, %v3841
    %v3843 = vpop.f32.mrb[0].mxu0
    %3844 = vmatprep.mubr.bf16.mxu0 %v3764
    %3845 = vmatmul.mubr.bf16.gmra.mrb[0].mxu0 %v3646
    %v3846 = vpop.f32.mrb[0].mxu0
    %v3847 = vadd.f32 0.0, %v3846
    %v3848 = vpop.f32.mrb[0].mxu0
    %v3849 = vpop.f32.mrb[0].mxu0
    %v3850 = vadd.f32 0.0, %v3849
    %v3851 = vpop.f32.mrb[0].mxu0
    %3852 = vmatprep.mubr.bf16.mxu0 %v3767
    %3853 = vmatmul.mubr.bf16.gmra.mrb[0].mxu0 %v3648
    %v3854 = vpop.f32.mrb[0].mxu0
    %v3855 = vadd.f32 0.0, %v3854
    %v3856 = vpop.f32.mrb[0].mxu0
    %v3857 = vpop.f32.mrb[0].mxu0
    %v3858 = vadd.f32 0.0, %v3857
    %v3859 = vpop.f32.mrb[0].mxu0
    %3860 = vmatprep.mubr.bf16.mxu0 %v3770
    %3861 = vmatmul.mubr.bf16.gmra.mrb[0].mxu0 %v3650
    %v3862 = vpop.f32.mrb[0].mxu0
    %v3863 = vadd.f32 0.0, %v3862
    %v3864 = vpop.f32.mrb[0].mxu0
    %v3865 = vpop.f32.mrb[0].mxu0
    %v3866 = vadd.f32 0.0, %v3865
    %v3867 = vpop.f32.mrb[0].mxu0
    %3868 = vdwg.mxu0
    %v3869 = vadd.f32 %v2919, %v3807
    %v3870 = vadd.f32 %v2922, %v3810
    %v3871 = vadd.f32 %v2927, %v3815
    %v3872 = vadd.f32 %v2930, %v3818
    %v3873 = vadd.f32 %v2935, %v3823
    %v3874 = vadd.f32 %v2938, %v3826
    %v3875 = vadd.f32 %v2943, %v3831
    %v3876 = vadd.f32 %v2946, %v3834
    %v3877 = vadd.f32 %v2951, %v3839
    %v3878 = vadd.f32 %v2954, %v3842
    %v3879 = vadd.f32 %v2959, %v3847
    %v3880 = vadd.f32 %v2962, %v3850
    %v3881 = vadd.f32 %v2967, %v3855
    %v3882 = vadd.f32 %v2970, %v3858
    %v3883 = vadd.f32 %v2975, %v3863
    %v3884 = vadd.f32 %v2978, %v3866
    %3917 = vrot.lane.b32.xlu0 %v2536, 96
    %v3918 = vpop.permute.xlu0 %3917
    %3919 = vrot.lane.b32.xlu0 %v2537, 96
    %v3920 = vpop.permute.xlu0 %3919
    %3921 = vrot.lane.b32.xlu0 %v2538, 96
    %v3922 = vpop.permute.xlu0 %3921
    %3923 = vrot.lane.b32.xlu0 %v2539, 96
    %v3924 = vpop.permute.xlu0 %3923
    %3925 = vrot.lane.b32.xlu0 %v2545, 96
    %v3926 = vpop.permute.xlu0 %3925
    %3927 = vrot.lane.b32.xlu0 %v2546, 96
    %v3928 = vpop.permute.xlu0 %3927
    %3929 = vrot.lane.b32.xlu0 %v2547, 96
    %v3930 = vpop.permute.xlu0 %3929
    %3931 = vrot.lane.b32.xlu0 %v2548, 96
    %v3932 = vpop.permute.xlu0 %3931
    %3933 = vrot.lane.b32.xlu0 %v2554, 96
    %v3934 = vpop.permute.xlu0 %3933
    %3935 = vrot.lane.b32.xlu0 %v2555, 96
    %v3936 = vpop.permute.xlu0 %3935
    %3937 = vrot.lane.b32.xlu0 %v2556, 96
    %v3938 = vpop.permute.xlu0 %3937
    %3939 = vrot.lane.b32.xlu0 %v2557, 96
    %v3940 = vpop.permute.xlu0 %3939
    %3941 = vrot.lane.b32.xlu0 %v2563, 96
    %v3942 = vpop.permute.xlu0 %3941
    %3943 = vrot.lane.b32.xlu0 %v2564, 96
    %v3944 = vpop.permute.xlu0 %3943
    %3945 = vrot.lane.b32.xlu0 %v2565, 96
    %v3946 = vpop.permute.xlu0 %3945
    %3947 = vrot.lane.b32.xlu0 %v2566, 96
    %v3948 = vpop.permute.xlu0 %3947
    %3949 = vrot.lane.b32.xlu0 %v2572, 96
    %v3950 = vpop.permute.xlu0 %3949
    %3951 = vrot.lane.b32.xlu0 %v2573, 96
    %v3952 = vpop.permute.xlu0 %3951
    %3953 = vrot.lane.b32.xlu0 %v2574, 96
    %v3954 = vpop.permute.xlu0 %3953
    %3955 = vrot.lane.b32.xlu0 %v2575, 96
    %v3956 = vpop.permute.xlu0 %3955
    %3957 = vrot.lane.b32.xlu0 %v2581, 96
    %v3958 = vpop.permute.xlu0 %3957
    %3959 = vrot.lane.b32.xlu0 %v2582, 96
    %v3960 = vpop.permute.xlu0 %3959
    %3961 = vrot.lane.b32.xlu0 %v2583, 96
    %v3962 = vpop.permute.xlu0 %3961
    %3963 = vrot.lane.b32.xlu0 %v2584, 96
    %v3964 = vpop.permute.xlu0 %3963
    %3965 = vrot.lane.b32.xlu0 %v2590, 96
    %v3966 = vpop.permute.xlu0 %3965
    %3967 = vrot.lane.b32.xlu0 %v2591, 96
    %v3968 = vpop.permute.xlu0 %3967
    %3969 = vrot.lane.b32.xlu0 %v2592, 96
    %v3970 = vpop.permute.xlu0 %3969
    %3971 = vrot.lane.b32.xlu0 %v2593, 96
    %v3972 = vpop.permute.xlu0 %3971
    %3973 = vrot.lane.b32.xlu0 %v2599, 96
    %v3974 = vpop.permute.xlu0 %3973
    %3975 = vrot.lane.b32.xlu0 %v2600, 96
    %v3976 = vpop.permute.xlu0 %3975
    %3977 = vrot.lane.b32.xlu0 %v2601, 96
    %v3978 = vpop.permute.xlu0 %3977
    %3979 = vrot.lane.b32.xlu0 %v2602, 96
    %v3980 = vpop.permute.xlu0 %3979
    %vm3981 = vcmask 785408
    %v3982 = vsel %vm3981, %v3918, %v3920
    %v3983 = vsel %vm3981, %v3920, %v3922
    %v3984 = vsel %vm3981, %v3922, %v3924
    %v3985 = vsel %vm3981, %v3926, %v3928
    %v3986 = vsel %vm3981, %v3928, %v3930
    %v3987 = vsel %vm3981, %v3930, %v3932
    %v3988 = vsel %vm3981, %v3934, %v3936
    %v3989 = vsel %vm3981, %v3936, %v3938
    %v3990 = vsel %vm3981, %v3938, %v3940
    %v3991 = vsel %vm3981, %v3942, %v3944
    %v3992 = vsel %vm3981, %v3944, %v3946
    %v3993 = vsel %vm3981, %v3946, %v3948
    %v3994 = vsel %vm3981, %v3950, %v3952
    %v3995 = vsel %vm3981, %v3952, %v3954
    %v3996 = vsel %vm3981, %v3954, %v3956
    %v3997 = vsel %vm3981, %v3958, %v3960
    %v3998 = vsel %vm3981, %v3960, %v3962
    %v3999 = vsel %vm3981, %v3962, %v3964
    %v4000 = vsel %vm3981, %v3966, %v3968
    %v4001 = vsel %vm3981, %v3968, %v3970
    %v4002 = vsel %vm3981, %v3970, %v3972
    %v4003 = vsel %vm3981, %v3974, %v3976
    %v4004 = vsel %vm3981, %v3976, %v3978
    %v4005 = vsel %vm3981, %v3978, %v3980
    %v4031 = vsel %vm3353, %v3924, 0
    %v4034 = vsel %vm3353, %v3932, 0
    %v4037 = vsel %vm3353, %v3940, 0
    %v4040 = vsel %vm3353, %v3948, 0
    %v4043 = vsel %vm3353, %v3956, 0
    %v4046 = vsel %vm3353, %v3964, 0
    %v4049 = vsel %vm3353, %v3972, 0
    %v4052 = vsel %vm3353, %v3980, 0
    %4054 = vmatprep.subr.bf16.mxu0 %v3234
    %4055 = vmatpush1.bf16.msra.mxu0 %v3233
    %4056 = vmatprep.subr.bf16.mxu0 %v3236
    %4057 = vmatpush1.bf16.msra.mxu0 %v3235
    %4058 = vmatprep.subr.bf16.mxu0 %v3238
    %4059 = vmatpush1.bf16.msra.mxu0 %v3237
    %4060 = vmatprep.subr.bf16.mxu0 %v3240
    %4061 = vmatpush1.bf16.msra.mxu0 %v3239
    %4062 = vmatprep.subr.bf16.mxu0 %v3242
    %4063 = vmatpush1.bf16.msra.mxu0 %v3241
    %4064 = vmatprep.subr.bf16.mxu0 %v3244
    %4065 = vmatpush1.bf16.msra.mxu0 %v3243
    %4066 = vmatprep.subr.bf16.mxu0 %v3246
    %4067 = vmatpush1.bf16.msra.mxu0 %v3245
    %4068 = vmatprep.subr.bf16.mxu0 %v3248
    %4069 = vmatpush1.bf16.msra.mxu0 %v3247
    %4070 = vmatprep.subr.bf16.mxu0 %v3250
    %4071 = vmatpush1.bf16.msra.mxu0 %v3249
    %4072 = vmatprep.subr.bf16.mxu0 %v3252
    %4073 = vmatpush1.bf16.msra.mxu0 %v3251
    %4074 = vmatprep.subr.bf16.mxu0 %v3254
    %4075 = vmatpush1.bf16.msra.mxu0 %v3253
    %4076 = vmatprep.subr.bf16.mxu0 %v3256
    %4077 = vmatpush1.bf16.msra.mxu0 %v3255
    %4078 = vmatprep.subr.bf16.mxu0 %v3258
    %4079 = vmatpush1.bf16.msra.mxu0 %v3257
    %4080 = vmatprep.subr.bf16.mxu0 %v3260
    %4081 = vmatpush1.bf16.msra.mxu0 %v3259
    %4082 = vmatprep.subr.bf16.mxu0 %v3262
    %4083 = vmatpush1.bf16.msra.mxu0 %v3261
    %4084 = vmatprep.subr.bf16.mxu0 %v3264
    %4085 = vmatpush1.bf16.msra.mxu0 %v3263
    %4086 = vmatprep.mubr.bf16.mxu0 %v3983
    %4087 = vmatmul.mubr.bf16.gmra.mrb[0].mxu0 %v3982
    %v4088 = vpop.f32.mrb[0].mxu0
    %v4089 = vadd.f32 %v3046, %v4088
    %v4090 = vpop.f32.mrb[0].mxu0
    %v4091 = vadd.f32 %v3050, %v4090
    %v4092 = vpop.f32.mrb[0].mxu0
    %v4093 = vadd.f32 %v3046, %v4092
    %v4094 = vpop.f32.mrb[0].mxu0
    %v4095 = vadd.f32 %v3050, %v4094
    %4096 = vmatprep.mubr.bf16.mxu0 %v3986
    %4097 = vmatmul.mubr.bf16.gmra.mrb[0].mxu0 %v3985
    %v4098 = vpop.f32.mrb[0].mxu0
    %v4099 = vadd.f32 %v3046, %v4098
    %v4100 = vpop.f32.mrb[0].mxu0
    %v4101 = vadd.f32 %v3050, %v4100
    %v4102 = vpop.f32.mrb[0].mxu0
    %v4103 = vadd.f32 %v3046, %v4102
    %v4104 = vpop.f32.mrb[0].mxu0
    %v4105 = vadd.f32 %v3050, %v4104
    %4106 = vmatprep.mubr.bf16.mxu0 %v3989
    %4107 = vmatmul.mubr.bf16.gmra.mrb[0].mxu0 %v3988
    %v4108 = vpop.f32.mrb[0].mxu0
    %v4109 = vadd.f32 %v3046, %v4108
    %v4110 = vpop.f32.mrb[0].mxu0
    %v4111 = vadd.f32 %v3050, %v4110
    %v4112 = vpop.f32.mrb[0].mxu0
    %v4113 = vadd.f32 %v3046, %v4112
    %v4114 = vpop.f32.mrb[0].mxu0
    %v4115 = vadd.f32 %v3050, %v4114
    %4116 = vmatprep.mubr.bf16.mxu0 %v3992
    %4117 = vmatmul.mubr.bf16.gmra.mrb[0].mxu0 %v3991
    %v4118 = vpop.f32.mrb[0].mxu0
    %v4119 = vadd.f32 %v3046, %v4118
    %v4120 = vpop.f32.mrb[0].mxu0
    %v4121 = vadd.f32 %v3050, %v4120
    %v4122 = vpop.f32.mrb[0].mxu0
    %v4123 = vadd.f32 %v3046, %v4122
    %v4124 = vpop.f32.mrb[0].mxu0
    %v4125 = vadd.f32 %v3050, %v4124
    %4126 = vmatprep.mubr.bf16.mxu0 %v3995
    %4127 = vmatmul.mubr.bf16.gmra.mrb[0].mxu0 %v3994
    %v4128 = vpop.f32.mrb[0].mxu0
    %v4129 = vadd.f32 %v3046, %v4128
    %v4130 = vpop.f32.mrb[0].mxu0
    %v4131 = vadd.f32 %v3050, %v4130
    %v4132 = vpop.f32.mrb[0].mxu0
    %v4133 = vadd.f32 %v3046, %v4132
    %v4134 = vpop.f32.mrb[0].mxu0
    %v4135 = vadd.f32 %v3050, %v4134
    %4136 = vmatprep.mubr.bf16.mxu0 %v3998
    %4137 = vmatmul.mubr.bf16.gmra.mrb[0].mxu0 %v3997
    %v4138 = vpop.f32.mrb[0].mxu0
    %v4139 = vadd.f32 %v3046, %v4138
    %v4140 = vpop.f32.mrb[0].mxu0
    %v4141 = vadd.f32 %v3050, %v4140
    %v4142 = vpop.f32.mrb[0].mxu0
    %v4143 = vadd.f32 %v3046, %v4142
    %v4144 = vpop.f32.mrb[0].mxu0
    %v4145 = vadd.f32 %v3050, %v4144
    %4146 = vmatprep.mubr.bf16.mxu0 %v4001
    %4147 = vmatmul.mubr.bf16.gmra.mrb[0].mxu0 %v4000
    %v4148 = vpop.f32.mrb[0].mxu0
    %v4149 = vadd.f32 %v3046, %v4148
    %v4150 = vpop.f32.mrb[0].mxu0
    %v4151 = vadd.f32 %v3050, %v4150
    %v4152 = vpop.f32.mrb[0].mxu0
    %v4153 = vadd.f32 %v3046, %v4152
    %v4154 = vpop.f32.mrb[0].mxu0
    %v4155 = vadd.f32 %v3050, %v4154
    %4156 = vmatprep.mubr.bf16.mxu0 %v4004
    %4157 = vmatmul.mubr.bf16.gmra.mrb[0].mxu0 %v4003
    %v4158 = vpop.f32.mrb[0].mxu0
    %v4159 = vadd.f32 %v3046, %v4158
    %v4160 = vpop.f32.mrb[0].mxu0
    %v4161 = vadd.f32 %v3050, %v4160
    %v4162 = vpop.f32.mrb[0].mxu0
    %v4163 = vadd.f32 %v3046, %v4162
    %v4164 = vpop.f32.mrb[0].mxu0
    %v4165 = vadd.f32 %v3050, %v4164
    %4166 = vdwg.mxu0
    %4167 = vmatprep.subr.bf16.mxu0 %v3266
    %4168 = vmatpush1.bf16.msra.mxu0 %v3265
    %4169 = vmatprep.subr.bf16.mxu0 %v3268
    %4170 = vmatpush1.bf16.msra.mxu0 %v3267
    %4171 = vmatprep.subr.bf16.mxu0 %v3270
    %4172 = vmatpush1.bf16.msra.mxu0 %v3269
    %4173 = vmatprep.subr.bf16.mxu0 %v3272
    %4174 = vmatpush1.bf16.msra.mxu0 %v3271
    %4175 = vmatprep.subr.bf16.mxu0 %v3274
    %4176 = vmatpush1.bf16.msra.mxu0 %v3273
    %4177 = vmatprep.subr.bf16.mxu0 %v3276
    %4178 = vmatpush1.bf16.msra.mxu0 %v3275
    %4179 = vmatprep.subr.bf16.mxu0 %v3278
    %4180 = vmatpush1.bf16.msra.mxu0 %v3277
    %4181 = vmatprep.subr.bf16.mxu0 %v3280
    %4182 = vmatpush1.bf16.msra.mxu0 %v3279
    %4183 = vmatprep.subr.bf16.mxu0 %v3282
    %4184 = vmatpush1.bf16.msra.mxu0 %v3281
    %4185 = vmatprep.subr.bf16.mxu0 %v3284
    %4186 = vmatpush1.bf16.msra.mxu0 %v3283
    %4187 = vmatprep.subr.bf16.mxu0 %v3286
    %4188 = vmatpush1.bf16.msra.mxu0 %v3285
    %4189 = vmatprep.subr.bf16.mxu0 %v3288
    %4190 = vmatpush1.bf16.msra.mxu0 %v3287
    %4191 = vmatprep.subr.bf16.mxu0 %v3290
    %4192 = vmatpush1.bf16.msra.mxu0 %v3289
    %4193 = vmatprep.subr.bf16.mxu0 %v3292
    %4194 = vmatpush1.bf16.msra.mxu0 %v3291
    %4195 = vmatprep.subr.bf16.mxu0 0
    %4196 = vmatpush1.bf16.msra.mxu0 0
    %4197 = vmatprep.subr.bf16.mxu0 0
    %4198 = vmatpush1.bf16.msra.mxu0 0
    %4199 = vmatprep.mubr.bf16.mxu0 %v4031
    %4200 = vmatmul.mubr.bf16.gmra.mrb[0].mxu0 %v3984
    %v4201 = vpop.f32.mrb[0].mxu0
    %v4202 = vadd.f32 %v4089, %v4201
    %v4203 = vpop.f32.mrb[0].mxu0
    %v4204 = vadd.f32 %v4091, %v4203
    %v4205 = vpop.f32.mrb[0].mxu0
    %v4206 = vadd.f32 %v4093, %v4205
    %v4207 = vpop.f32.mrb[0].mxu0
    %v4208 = vadd.f32 %v4095, %v4207
    %4209 = vmatprep.mubr.bf16.mxu0 %v4034
    %4210 = vmatmul.mubr.bf16.gmra.mrb[0].mxu0 %v3987
    %v4211 = vpop.f32.mrb[0].mxu0
    %v4212 = vadd.f32 %v4099, %v4211
    %v4213 = vpop.f32.mrb[0].mxu0
    %v4214 = vadd.f32 %v4101, %v4213
    %v4215 = vpop.f32.mrb[0].mxu0
    %v4216 = vadd.f32 %v4103, %v4215
    %v4217 = vpop.f32.mrb[0].mxu0
    %v4218 = vadd.f32 %v4105, %v4217
    %4219 = vmatprep.mubr.bf16.mxu0 %v4037
    %4220 = vmatmul.mubr.bf16.gmra.mrb[0].mxu0 %v3990
    %v4221 = vpop.f32.mrb[0].mxu0
    %v4222 = vadd.f32 %v4109, %v4221
    %v4223 = vpop.f32.mrb[0].mxu0
    %v4224 = vadd.f32 %v4111, %v4223
    %v4225 = vpop.f32.mrb[0].mxu0
    %v4226 = vadd.f32 %v4113, %v4225
    %v4227 = vpop.f32.mrb[0].mxu0
    %v4228 = vadd.f32 %v4115, %v4227
    %4229 = vmatprep.mubr.bf16.mxu0 %v4040
    %4230 = vmatmul.mubr.bf16.gmra.mrb[0].mxu0 %v3993
    %v4231 = vpop.f32.mrb[0].mxu0
    %v4232 = vadd.f32 %v4119, %v4231
    %v4233 = vpop.f32.mrb[0].mxu0
    %v4234 = vadd.f32 %v4121, %v4233
    %v4235 = vpop.f32.mrb[0].mxu0
    %v4236 = vadd.f32 %v4123, %v4235
    %v4237 = vpop.f32.mrb[0].mxu0
    %v4238 = vadd.f32 %v4125, %v4237
    %4239 = vmatprep.mubr.bf16.mxu0 %v4043
    %4240 = vmatmul.mubr.bf16.gmra.mrb[0].mxu0 %v3996
    %v4241 = vpop.f32.mrb[0].mxu0
    %v4242 = vadd.f32 %v4129, %v4241
    %v4243 = vpop.f32.mrb[0].mxu0
    %v4244 = vadd.f32 %v4131, %v4243
    %v4245 = vpop.f32.mrb[0].mxu0
    %v4246 = vadd.f32 %v4133, %v4245
    %v4247 = vpop.f32.mrb[0].mxu0
    %v4248 = vadd.f32 %v4135, %v4247
    %4249 = vmatprep.mubr.bf16.mxu0 %v4046
    %4250 = vmatmul.mubr.bf16.gmra.mrb[0].mxu0 %v3999
    %v4251 = vpop.f32.mrb[0].mxu0
    %v4252 = vadd.f32 %v4139, %v4251
    %v4253 = vpop.f32.mrb[0].mxu0
    %v4254 = vadd.f32 %v4141, %v4253
    %v4255 = vpop.f32.mrb[0].mxu0
    %v4256 = vadd.f32 %v4143, %v4255
    %v4257 = vpop.f32.mrb[0].mxu0
    %v4258 = vadd.f32 %v4145, %v4257
    %4259 = vmatprep.mubr.bf16.mxu0 %v4049
    %4260 = vmatmul.mubr.bf16.gmra.mrb[0].mxu0 %v4002
    %v4261 = vpop.f32.mrb[0].mxu0
    %v4262 = vadd.f32 %v4149, %v4261
    %v4263 = vpop.f32.mrb[0].mxu0
    %v4264 = vadd.f32 %v4151, %v4263
    %v4265 = vpop.f32.mrb[0].mxu0
    %v4266 = vadd.f32 %v4153, %v4265
    %v4267 = vpop.f32.mrb[0].mxu0
    %v4268 = vadd.f32 %v4155, %v4267
    %4269 = vmatprep.mubr.bf16.mxu0 %v4052
    %4270 = vmatmul.mubr.bf16.gmra.mrb[0].mxu0 %v4005
    %v4271 = vpop.f32.mrb[0].mxu0
    %v4272 = vadd.f32 %v4159, %v4271
    %v4273 = vpop.f32.mrb[0].mxu0
    %v4274 = vadd.f32 %v4161, %v4273
    %v4275 = vpop.f32.mrb[0].mxu0
    %v4276 = vadd.f32 %v4163, %v4275
    %v4277 = vpop.f32.mrb[0].mxu0
    %v4278 = vadd.f32 %v4165, %v4277
    %4279 = vdwg.mxu0
    %v4280 = vmax.f32 %v4202, 0.0
    %v4281 = vmax.f32 %v4204, 0.0
    %v4282 = vmax.f32 %v4206, 0.0
    %v4283 = vmax.f32 %v4208, 0.0
    %v4284 = vmax.f32 %v4212, 0.0
    %v4285 = vmax.f32 %v4214, 0.0
    %v4286 = vmax.f32 %v4216, 0.0
    %v4287 = vmax.f32 %v4218, 0.0
    %v4288 = vmax.f32 %v4222, 0.0
    %v4289 = vmax.f32 %v4224, 0.0
    %v4290 = vmax.f32 %v4226, 0.0
    %v4291 = vmax.f32 %v4228, 0.0
    %v4292 = vmax.f32 %v4232, 0.0
    %v4293 = vmax.f32 %v4234, 0.0
    %v4294 = vmax.f32 %v4236, 0.0
    %v4295 = vmax.f32 %v4238, 0.0
    %v4296 = vmax.f32 %v4242, 0.0
    %v4297 = vmax.f32 %v4244, 0.0
    %v4298 = vmax.f32 %v4246, 0.0
    %v4299 = vmax.f32 %v4248, 0.0
    %v4300 = vmax.f32 %v4252, 0.0
    %v4301 = vmax.f32 %v4254, 0.0
    %v4302 = vmax.f32 %v4256, 0.0
    %v4303 = vmax.f32 %v4258, 0.0
    %v4304 = vmax.f32 %v4262, 0.0
    %v4305 = vmax.f32 %v4264, 0.0
    %v4306 = vmax.f32 %v4266, 0.0
    %v4307 = vmax.f32 %v4268, 0.0
    %v4308 = vmax.f32 %v4272, 0.0
    %v4309 = vmax.f32 %v4274, 0.0
    %v4310 = vmax.f32 %v4276, 0.0
    %v4311 = vmax.f32 %v4278, 0.0
    %v4312 = vpack.c.bf16 %v4282, %v4280
    %v4313 = vpack.c.bf16 %v4283, %v4281
    %v4314 = vpack.c.bf16 %v4286, %v4284
    %v4315 = vpack.c.bf16 %v4287, %v4285
    %v4316 = vpack.c.bf16 %v4290, %v4288
    %v4317 = vpack.c.bf16 %v4291, %v4289
    %v4318 = vpack.c.bf16 %v4294, %v4292
    %v4319 = vpack.c.bf16 %v4295, %v4293
    %v4320 = vpack.c.bf16 %v4298, %v4296
    %v4321 = vpack.c.bf16 %v4299, %v4297
    %v4322 = vpack.c.bf16 %v4302, %v4300
    %v4323 = vpack.c.bf16 %v4303, %v4301
    %v4324 = vpack.c.bf16 %v4306, %v4304
    %v4325 = vpack.c.bf16 %v4307, %v4305
    %v4326 = vpack.c.bf16 %v4310, %v4308
    %v4327 = vpack.c.bf16 %v4311, %v4309
    %s4328 = scalar_lea.vmem [#allocation2], 96
    %v4329 = vld [vmem:[%s4328] sm:$0xf]
    %v4330 = vld [vmem:[%s4328 + $0x4] sm:$0xf]
    %v4331 = vld [vmem:[%s4328 + $0x8] sm:$0xf]
    %v4332 = vld [vmem:[%s4328 + $0xc] sm:$0xf]
    %v4333 = vld [vmem:[%s4328 + $0x10] sm:$0xf]
    %v4334 = vld [vmem:[%s4328 + $0x14] sm:$0xf]
    %v4335 = vld [vmem:[%s4328 + $0x18] sm:$0xf]
    %v4336 = vld [vmem:[%s4328 + $0x1c] sm:$0xf]
    %v4337 = vld [vmem:[%s4328 + $0x20] sm:$0xf]
    %v4338 = vld [vmem:[%s4328 + $0x24] sm:$0xf]
    %v4339 = vld [vmem:[%s4328 + $0x28] sm:$0xf]
    %v4340 = vld [vmem:[%s4328 + $0x2c] sm:$0xf]
    %v4341 = vld [vmem:[%s4328 + $0x30] sm:$0xf]
    %v4342 = vld [vmem:[%s4328 + $0x34] sm:$0xf]
    %v4343 = vld [vmem:[%s4328 + $0x38] sm:$0xf]
    %v4344 = vld [vmem:[%s4328 + $0x3c] sm:$0xf]
    %v4345 = vld [vmem:[%s4328 + $0x40] sm:$0xf]
    %v4346 = vld [vmem:[%s4328 + $0x44] sm:$0xf]
    %v4347 = vld [vmem:[%s4328 + $0x48] sm:$0xf]
    %v4348 = vld [vmem:[%s4328 + $0x4c] sm:$0xf]
    %v4349 = vld [vmem:[%s4328 + $0x50] sm:$0xf]
    %v4350 = vld [vmem:[%s4328 + $0x54] sm:$0xf]
    %v4351 = vld [vmem:[%s4328 + $0x58] sm:$0xf]
    %v4352 = vld [vmem:[%s4328 + $0x5c] sm:$0xf]
    %v4377 = vunpack.c.l.b16 %v4329
    %v4378 = vunpack.c.l.b16 %v4330
    %v4379 = vunpack.c.l.b16 %v4331
    %v4380 = vunpack.c.l.b16 %v4332
    %v4381 = vunpack.c.l.b16 %v4333
    %v4382 = vunpack.c.l.b16 %v4334
    %v4383 = vunpack.c.l.b16 %v4335
    %v4384 = vunpack.c.l.b16 %v4336
    %v4385 = vunpack.c.l.b16 %v4337
    %v4386 = vunpack.c.l.b16 %v4338
    %v4387 = vunpack.c.l.b16 %v4339
    %v4388 = vunpack.c.l.b16 %v4340
    %v4389 = vunpack.c.l.b16 %v4341
    %v4390 = vunpack.c.l.b16 %v4342
    %v4391 = vunpack.c.l.b16 %v4343
    %v4392 = vunpack.c.l.b16 %v4344
    %v4393 = vunpack.c.l.b16 %v4345
    %v4394 = vunpack.c.l.b16 %v4346
    %v4395 = vunpack.c.l.b16 %v4347
    %v4396 = vunpack.c.l.b16 %v4348
    %v4397 = vunpack.c.l.b16 %v4349
    %v4398 = vunpack.c.l.b16 %v4350
    %v4399 = vunpack.c.l.b16 %v4351
    %v4400 = vunpack.c.l.b16 %v4352
    %v4401 = vpack.c.b16 %v4378, %v4377
    %v4402 = vpack.c.b16 %v4380, %v4379
    %v4403 = vpack.c.b16 %v4382, %v4381
    %v4404 = vpack.c.b16 %v4384, %v4383
    %v4405 = vpack.c.b16 %v4386, %v4385
    %v4406 = vpack.c.b16 %v4388, %v4387
    %v4407 = vpack.c.b16 %v4390, %v4389
    %v4408 = vpack.c.b16 %v4392, %v4391
    %v4409 = vpack.c.b16 %v4394, %v4393
    %v4410 = vpack.c.b16 %v4396, %v4395
    %v4411 = vpack.c.b16 %v4398, %v4397
    %v4412 = vpack.c.b16 %v4400, %v4399
    %v4426 = vsel %vm2859, %v4313, 0
    %v4429 = vsel %vm2859, %v4315, 0
    %v4432 = vsel %vm2859, %v4317, 0
    %v4435 = vsel %vm2859, %v4319, 0
    %v4438 = vsel %vm2859, %v4321, 0
    %v4441 = vsel %vm2859, %v4323, 0
    %v4444 = vsel %vm2859, %v4325, 0
    %v4447 = vsel %vm2859, %v4327, 0
    %4449 = vmatprep.subr.bf16.mxu0 0
    %4450 = vmatpush1.bf16.msra.mxu0 %v4401
    %4451 = vmatprep.subr.bf16.mxu0 0
    %4452 = vmatpush1.bf16.msra.mxu0 %v4402
    %4453 = vmatprep.subr.bf16.mxu0 0
    %4454 = vmatpush1.bf16.msra.mxu0 %v4403
    %4455 = vmatprep.subr.bf16.mxu0 0
    %4456 = vmatpush1.bf16.msra.mxu0 %v4404
    %4457 = vmatprep.subr.bf16.mxu0 0
    %4458 = vmatpush1.bf16.msra.mxu0 %v4405
    %4459 = vmatprep.subr.bf16.mxu0 0
    %4460 = vmatpush1.bf16.msra.mxu0 %v4406
    %4461 = vmatprep.subr.bf16.mxu0 0
    %4462 = vmatpush1.bf16.msra.mxu0 %v4407
    %4463 = vmatprep.subr.bf16.mxu0 0
    %4464 = vmatpush1.bf16.msra.mxu0 %v4408
    %4465 = vmatprep.subr.bf16.mxu0 0
    %4466 = vmatpush1.bf16.msra.mxu0 %v4409
    %4467 = vmatprep.subr.bf16.mxu0 0
    %4468 = vmatpush1.bf16.msra.mxu0 %v4410
    %4469 = vmatprep.subr.bf16.mxu0 0
    %4470 = vmatpush1.bf16.msra.mxu0 %v4411
    %4471 = vmatprep.subr.bf16.mxu0 0
    %4472 = vmatpush1.bf16.msra.mxu0 %v4412
    %4473 = vmatprep.subr.bf16.mxu0 0
    %4474 = vmatpush1.bf16.msra.mxu0 0
    %4475 = vmatprep.subr.bf16.mxu0 0
    %4476 = vmatpush1.bf16.msra.mxu0 0
    %4477 = vmatprep.subr.bf16.mxu0 0
    %4478 = vmatpush1.bf16.msra.mxu0 0
    %4479 = vmatprep.subr.bf16.mxu0 0
    %4480 = vmatpush1.bf16.msra.mxu0 0
    %4481 = vmatprep.mubr.bf16.mxu0 %v4426
    %4482 = vmatmul.mubr.bf16.gmra.mrb[0].mxu0 %v4312
    %v4483 = vpop.f32.mrb[0].mxu0
    %v4484 = vadd.f32 0.0, %v4483
    %v4485 = vpop.f32.mrb[0].mxu0
    %v4486 = vpop.f32.mrb[0].mxu0
    %v4487 = vadd.f32 0.0, %v4486
    %v4488 = vpop.f32.mrb[0].mxu0
    %4489 = vmatprep.mubr.bf16.mxu0 %v4429
    %4490 = vmatmul.mubr.bf16.gmra.mrb[0].mxu0 %v4314
    %v4491 = vpop.f32.mrb[0].mxu0
    %v4492 = vadd.f32 0.0, %v4491
    %v4493 = vpop.f32.mrb[0].mxu0
    %v4494 = vpop.f32.mrb[0].mxu0
    %v4495 = vadd.f32 0.0, %v4494
    %v4496 = vpop.f32.mrb[0].mxu0
    %4497 = vmatprep.mubr.bf16.mxu0 %v4432
    %4498 = vmatmul.mubr.bf16.gmra.mrb[0].mxu0 %v4316
    %v4499 = vpop.f32.mrb[0].mxu0
    %v4500 = vadd.f32 0.0, %v4499
    %v4501 = vpop.f32.mrb[0].mxu0
    %v4502 = vpop.f32.mrb[0].mxu0
    %v4503 = vadd.f32 0.0, %v4502
    %v4504 = vpop.f32.mrb[0].mxu0
    %4505 = vmatprep.mubr.bf16.mxu0 %v4435
    %4506 = vmatmul.mubr.bf16.gmra.mrb[0].mxu0 %v4318
    %v4507 = vpop.f32.mrb[0].mxu0
    %v4508 = vadd.f32 0.0, %v4507
    %v4509 = vpop.f32.mrb[0].mxu0
    %v4510 = vpop.f32.mrb[0].mxu0
    %v4511 = vadd.f32 0.0, %v4510
    %v4512 = vpop.f32.mrb[0].mxu0
    %4513 = vmatprep.mubr.bf16.mxu0 %v4438
    %4514 = vmatmul.mubr.bf16.gmra.mrb[0].mxu0 %v4320
    %v4515 = vpop.f32.mrb[0].mxu0
    %v4516 = vadd.f32 0.0, %v4515
    %v4517 = vpop.f32.mrb[0].mxu0
    %v4518 = vpop.f32.mrb[0].mxu0
    %v4519 = vadd.f32 0.0, %v4518
    %v4520 = vpop.f32.mrb[0].mxu0
    %4521 = vmatprep.mubr.bf16.mxu0 %v4441
    %4522 = vmatmul.mubr.bf16.gmra.mrb[0].mxu0 %v4322
    %v4523 = vpop.f32.mrb[0].mxu0
    %v4524 = vadd.f32 0.0, %v4523
    %v4525 = vpop.f32.mrb[0].mxu0
    %v4526 = vpop.f32.mrb[0].mxu0
    %v4527 = vadd.f32 0.0, %v4526
    %v4528 = vpop.f32.mrb[0].mxu0
    %4529 = vmatprep.mubr.bf16.mxu0 %v4444
    %4530 = vmatmul.mubr.bf16.gmra.mrb[0].mxu0 %v4324
    %v4531 = vpop.f32.mrb[0].mxu0
    %v4532 = vadd.f32 0.0, %v4531
    %v4533 = vpop.f32.mrb[0].mxu0
    %v4534 = vpop.f32.mrb[0].mxu0
    %v4535 = vadd.f32 0.0, %v4534
    %v4536 = vpop.f32.mrb[0].mxu0
    %4537 = vmatprep.mubr.bf16.mxu0 %v4447
    %4538 = vmatmul.mubr.bf16.gmra.mrb[0].mxu0 %v4326
    %v4539 = vpop.f32.mrb[0].mxu0
    %v4540 = vadd.f32 0.0, %v4539
    %v4541 = vpop.f32.mrb[0].mxu0
    %v4542 = vpop.f32.mrb[0].mxu0
    %v4543 = vadd.f32 0.0, %v4542
    %v4544 = vpop.f32.mrb[0].mxu0
    %4545 = vdwg.mxu0
    %v4546 = vadd.f32 %v3869, %v4484
    %v4547 = vadd.f32 %v3870, %v4487
    %v4548 = vadd.f32 %v3871, %v4492
    %v4549 = vadd.f32 %v3872, %v4495
    %v4550 = vadd.f32 %v3873, %v4500
    %v4551 = vadd.f32 %v3874, %v4503
    %v4552 = vadd.f32 %v3875, %v4508
    %v4553 = vadd.f32 %v3876, %v4511
    %v4554 = vadd.f32 %v3877, %v4516
    %v4555 = vadd.f32 %v3878, %v4519
    %v4556 = vadd.f32 %v3879, %v4524
    %v4557 = vadd.f32 %v3880, %v4527
    %v4558 = vadd.f32 %v3881, %v4532
    %v4559 = vadd.f32 %v3882, %v4535
    %v4560 = vadd.f32 %v3883, %v4540
    %v4561 = vadd.f32 %v3884, %v4543
    %4578 = vrot.lane.b32.xlu0 %v2537, 64
    %v4579 = vpop.permute.xlu0 %4578
    %4580 = vrot.lane.b32.xlu0 %v2538, 64
    %v4581 = vpop.permute.xlu0 %4580
    %4582 = vrot.lane.b32.xlu0 %v2539, 64
    %v4583 = vpop.permute.xlu0 %4582
    %4584 = vrot.lane.b32.xlu0 %v2540, 64
    %v4585 = vpop.permute.xlu0 %4584
    %4586 = vrot.lane.b32.xlu0 %v2541, 64
    %v4587 = vpop.permute.xlu0 %4586
    %4588 = vrot.lane.b32.xlu0 %v2546, 64
    %v4589 = vpop.permute.xlu0 %4588
    %4590 = vrot.lane.b32.xlu0 %v2547, 64
    %v4591 = vpop.permute.xlu0 %4590
    %4592 = vrot.lane.b32.xlu0 %v2548, 64
    %v4593 = vpop.permute.xlu0 %4592
    %4594 = vrot.lane.b32.xlu0 %v2549, 64
    %v4595 = vpop.permute.xlu0 %4594
    %4596 = vrot.lane.b32.xlu0 %v2550, 64
    %v4597 = vpop.permute.xlu0 %4596
    %4598 = vrot.lane.b32.xlu0 %v2555, 64
    %v4599 = vpop.permute.xlu0 %4598
    %4600 = vrot.lane.b32.xlu0 %v2556, 64
    %v4601 = vpop.permute.xlu0 %4600
    %4602 = vrot.lane.b32.xlu0 %v2557, 64
    %v4603 = vpop.permute.xlu0 %4602
    %4604 = vrot.lane.b32.xlu0 %v2558, 64
    %v4605 = vpop.permute.xlu0 %4604
    %4606 = vrot.lane.b32.xlu0 %v2559, 64
    %v4607 = vpop.permute.xlu0 %4606
    %4608 = vrot.lane.b32.xlu0 %v2564, 64
    %v4609 = vpop.permute.xlu0 %4608
    %4610 = vrot.lane.b32.xlu0 %v2565, 64
    %v4611 = vpop.permute.xlu0 %4610
    %4612 = vrot.lane.b32.xlu0 %v2566, 64
    %v4613 = vpop.permute.xlu0 %4612
    %4614 = vrot.lane.b32.xlu0 %v2567, 64
    %v4615 = vpop.permute.xlu0 %4614
    %4616 = vrot.lane.b32.xlu0 %v2568, 64
    %v4617 = vpop.permute.xlu0 %4616
    %4618 = vrot.lane.b32.xlu0 %v2573, 64
    %v4619 = vpop.permute.xlu0 %4618
    %4620 = vrot.lane.b32.xlu0 %v2574, 64
    %v4621 = vpop.permute.xlu0 %4620
    %4622 = vrot.lane.b32.xlu0 %v2575, 64
    %v4623 = vpop.permute.xlu0 %4622
    %4624 = vrot.lane.b32.xlu0 %v2576, 64
    %v4625 = vpop.permute.xlu0 %4624
    %4626 = vrot.lane.b32.xlu0 %v2577, 64
    %v4627 = vpop.permute.xlu0 %4626
    %4628 = vrot.lane.b32.xlu0 %v2582, 64
    %v4629 = vpop.permute.xlu0 %4628
    %4630 = vrot.lane.b32.xlu0 %v2583, 64
    %v4631 = vpop.permute.xlu0 %4630
    %4632 = vrot.lane.b32.xlu0 %v2584, 64
    %v4633 = vpop.permute.xlu0 %4632
    %4634 = vrot.lane.b32.xlu0 %v2585, 64
    %v4635 = vpop.permute.xlu0 %4634
    %4636 = vrot.lane.b32.xlu0 %v2586, 64
    %v4637 = vpop.permute.xlu0 %4636
    %4638 = vrot.lane.b32.xlu0 %v2591, 64
    %v4639 = vpop.permute.xlu0 %4638
    %4640 = vrot.lane.b32.xlu0 %v2592, 64
    %v4641 = vpop.permute.xlu0 %4640
    %4642 = vrot.lane.b32.xlu0 %v2593, 64
    %v4643 = vpop.permute.xlu0 %4642
    %4644 = vrot.lane.b32.xlu0 %v2594, 64
    %v4645 = vpop.permute.xlu0 %4644
    %4646 = vrot.lane.b32.xlu0 %v2595, 64
    %v4647 = vpop.permute.xlu0 %4646
    %4648 = vrot.lane.b32.xlu0 %v2600, 64
    %v4649 = vpop.permute.xlu0 %4648
    %4650 = vrot.lane.b32.xlu0 %v2601, 64
    %v4651 = vpop.permute.xlu0 %4650
    %4652 = vrot.lane.b32.xlu0 %v2602, 64
    %v4653 = vpop.permute.xlu0 %4652
    %4654 = vrot.lane.b32.xlu0 %v2603, 64
    %v4655 = vpop.permute.xlu0 %4654
    %4656 = vrot.lane.b32.xlu0 %v2604, 64
    %v4657 = vpop.permute.xlu0 %4656
    %vm4658 = vcmask 523264
    %v4659 = vsel %vm4658, %v4579, %v4581
    %v4660 = vsel %vm4658, %v4581, %v4583
    %v4661 = vsel %vm4658, %v4583, %v4585
    %v4662 = vsel %vm4658, %v4585, %v4587
    %v4663 = vsel %vm4658, %v4589, %v4591
    %v4664 = vsel %vm4658, %v4591, %v4593
    %v4665 = vsel %vm4658, %v4593, %v4595
    %v4666 = vsel %vm4658, %v4595, %v4597
    %v4667 = vsel %vm4658, %v4599, %v4601
    %v4668 = vsel %vm4658, %v4601, %v4603
    %v4669 = vsel %vm4658, %v4603, %v4605
    %v4670 = vsel %vm4658, %v4605, %v4607
    %v4671 = vsel %vm4658, %v4609, %v4611
    %v4672 = vsel %vm4658, %v4611, %v4613
    %v4673 = vsel %vm4658, %v4613, %v4615
    %v4674 = vsel %vm4658, %v4615, %v4617
    %v4675 = vsel %vm4658, %v4619, %v4621
    %v4676 = vsel %vm4658, %v4621, %v4623
    %v4677 = vsel %vm4658, %v4623, %v4625
    %v4678 = vsel %vm4658, %v4625, %v4627
    %v4679 = vsel %vm4658, %v4629, %v4631
    %v4680 = vsel %vm4658, %v4631, %v4633
    %v4681 = vsel %vm4658, %v4633, %v4635
    %v4682 = vsel %vm4658, %v4635, %v4637
    %v4683 = vsel %vm4658, %v4639, %v4641
    %v4684 = vsel %vm4658, %v4641, %v4643
    %v4685 = vsel %vm4658, %v4643, %v4645
    %v4686 = vsel %vm4658, %v4645, %v4647
    %v4687 = vsel %vm4658, %v4649, %v4651
    %v4688 = vsel %vm4658, %v4651, %v4653
    %v4689 = vsel %vm4658, %v4653, %v4655
    %v4690 = vsel %vm4658, %v4655, %v4657
    %v4716 = vsel %vm3353, %v4662, 0
    %v4719 = vsel %vm3353, %v4666, 0
    %v4722 = vsel %vm3353, %v4670, 0
    %v4725 = vsel %vm3353, %v4674, 0
    %v4728 = vsel %vm3353, %v4678, 0
    %v4731 = vsel %vm3353, %v4682, 0
    %v4734 = vsel %vm3353, %v4686, 0
    %v4737 = vsel %vm3353, %v4690, 0
    %4739 = vmatprep.subr.bf16.mxu0 %v3234
    %4740 = vmatpush1.bf16.msra.mxu0 %v3233
    %4741 = vmatprep.subr.bf16.mxu0 %v3236
    %4742 = vmatpush1.bf16.msra.mxu0 %v3235
    %4743 = vmatprep.subr.bf16.mxu0 %v3238
    %4744 = vmatpush1.bf16.msra.mxu0 %v3237
    %4745 = vmatprep.subr.bf16.mxu0 %v3240
    %4746 = vmatpush1.bf16.msra.mxu0 %v3239
    %4747 = vmatprep.subr.bf16.mxu0 %v3242
    %4748 = vmatpush1.bf16.msra.mxu0 %v3241
    %4749 = vmatprep.subr.bf16.mxu0 %v3244
    %4750 = vmatpush1.bf16.msra.mxu0 %v3243
    %4751 = vmatprep.subr.bf16.mxu0 %v3246
    %4752 = vmatpush1.bf16.msra.mxu0 %v3245
    %4753 = vmatprep.subr.bf16.mxu0 %v3248
    %4754 = vmatpush1.bf16.msra.mxu0 %v3247
    %4755 = vmatprep.subr.bf16.mxu0 %v3250
    %4756 = vmatpush1.bf16.msra.mxu0 %v3249
    %4757 = vmatprep.subr.bf16.mxu0 %v3252
    %4758 = vmatpush1.bf16.msra.mxu0 %v3251
    %4759 = vmatprep.subr.bf16.mxu0 %v3254
    %4760 = vmatpush1.bf16.msra.mxu0 %v3253
    %4761 = vmatprep.subr.bf16.mxu0 %v3256
    %4762 = vmatpush1.bf16.msra.mxu0 %v3255
    %4763 = vmatprep.subr.bf16.mxu0 %v3258
    %4764 = vmatpush1.bf16.msra.mxu0 %v3257
    %4765 = vmatprep.subr.bf16.mxu0 %v3260
    %4766 = vmatpush1.bf16.msra.mxu0 %v3259
    %4767 = vmatprep.subr.bf16.mxu0 %v3262
    %4768 = vmatpush1.bf16.msra.mxu0 %v3261
    %4769 = vmatprep.subr.bf16.mxu0 %v3264
    %4770 = vmatpush1.bf16.msra.mxu0 %v3263
    %4771 = vmatprep.mubr.bf16.mxu0 %v4660
    %4772 = vmatmul.mubr.bf16.gmra.mrb[0].mxu0 %v4659
    %v4773 = vpop.f32.mrb[0].mxu0
    %v4774 = vadd.f32 %v3046, %v4773
    %v4775 = vpop.f32.mrb[0].mxu0
    %v4776 = vadd.f32 %v3050, %v4775
    %v4777 = vpop.f32.mrb[0].mxu0
    %v4778 = vadd.f32 %v3046, %v4777
    %v4779 = vpop.f32.mrb[0].mxu0
    %v4780 = vadd.f32 %v3050, %v4779
    %4781 = vmatprep.mubr.bf16.mxu0 %v4664
    %4782 = vmatmul.mubr.bf16.gmra.mrb[0].mxu0 %v4663
    %v4783 = vpop.f32.mrb[0].mxu0
    %v4784 = vadd.f32 %v3046, %v4783
    %v4785 = vpop.f32.mrb[0].mxu0
    %v4786 = vadd.f32 %v3050, %v4785
    %v4787 = vpop.f32.mrb[0].mxu0
    %v4788 = vadd.f32 %v3046, %v4787
    %v4789 = vpop.f32.mrb[0].mxu0
    %v4790 = vadd.f32 %v3050, %v4789
    %4791 = vmatprep.mubr.bf16.mxu0 %v4668
    %4792 = vmatmul.mubr.bf16.gmra.mrb[0].mxu0 %v4667
    %v4793 = vpop.f32.mrb[0].mxu0
    %v4794 = vadd.f32 %v3046, %v4793
    %v4795 = vpop.f32.mrb[0].mxu0
    %v4796 = vadd.f32 %v3050, %v4795
    %v4797 = vpop.f32.mrb[0].mxu0
    %v4798 = vadd.f32 %v3046, %v4797
    %v4799 = vpop.f32.mrb[0].mxu0
    %v4800 = vadd.f32 %v3050, %v4799
    %4801 = vmatprep.mubr.bf16.mxu0 %v4672
    %4802 = vmatmul.mubr.bf16.gmra.mrb[0].mxu0 %v4671
    %v4803 = vpop.f32.mrb[0].mxu0
    %v4804 = vadd.f32 %v3046, %v4803
    %v4805 = vpop.f32.mrb[0].mxu0
    %v4806 = vadd.f32 %v3050, %v4805
    %v4807 = vpop.f32.mrb[0].mxu0
    %v4808 = vadd.f32 %v3046, %v4807
    %v4809 = vpop.f32.mrb[0].mxu0
    %v4810 = vadd.f32 %v3050, %v4809
    %4811 = vmatprep.mubr.bf16.mxu0 %v4676
    %4812 = vmatmul.mubr.bf16.gmra.mrb[0].mxu0 %v4675
    %v4813 = vpop.f32.mrb[0].mxu0
    %v4814 = vadd.f32 %v3046, %v4813
    %v4815 = vpop.f32.mrb[0].mxu0
    %v4816 = vadd.f32 %v3050, %v4815
    %v4817 = vpop.f32.mrb[0].mxu0
    %v4818 = vadd.f32 %v3046, %v4817
    %v4819 = vpop.f32.mrb[0].mxu0
    %v4820 = vadd.f32 %v3050, %v4819
    %4821 = vmatprep.mubr.bf16.mxu0 %v4680
    %4822 = vmatmul.mubr.bf16.gmra.mrb[0].mxu0 %v4679
    %v4823 = vpop.f32.mrb[0].mxu0
    %v4824 = vadd.f32 %v3046, %v4823
    %v4825 = vpop.f32.mrb[0].mxu0
    %v4826 = vadd.f32 %v3050, %v4825
    %v4827 = vpop.f32.mrb[0].mxu0
    %v4828 = vadd.f32 %v3046, %v4827
    %v4829 = vpop.f32.mrb[0].mxu0
    %v4830 = vadd.f32 %v3050, %v4829
    %4831 = vmatprep.mubr.bf16.mxu0 %v4684
    %4832 = vmatmul.mubr.bf16.gmra.mrb[0].mxu0 %v4683
    %v4833 = vpop.f32.mrb[0].mxu0
    %v4834 = vadd.f32 %v3046, %v4833
    %v4835 = vpop.f32.mrb[0].mxu0
    %v4836 = vadd.f32 %v3050, %v4835
    %v4837 = vpop.f32.mrb[0].mxu0
    %v4838 = vadd.f32 %v3046, %v4837
    %v4839 = vpop.f32.mrb[0].mxu0
    %v4840 = vadd.f32 %v3050, %v4839
    %4841 = vmatprep.mubr.bf16.mxu0 %v4688
    %4842 = vmatmul.mubr.bf16.gmra.mrb[0].mxu0 %v4687
    %v4843 = vpop.f32.mrb[0].mxu0
    %v4844 = vadd.f32 %v3046, %v4843
    %v4845 = vpop.f32.mrb[0].mxu0
    %v4846 = vadd.f32 %v3050, %v4845
    %v4847 = vpop.f32.mrb[0].mxu0
    %v4848 = vadd.f32 %v3046, %v4847
    %v4849 = vpop.f32.mrb[0].mxu0
    %v4850 = vadd.f32 %v3050, %v4849
    %4851 = vdwg.mxu0
    %4852 = vmatprep.subr.bf16.mxu0 %v3266
    %4853 = vmatpush1.bf16.msra.mxu0 %v3265
    %4854 = vmatprep.subr.bf16.mxu0 %v3268
    %4855 = vmatpush1.bf16.msra.mxu0 %v3267
    %4856 = vmatprep.subr.bf16.mxu0 %v3270
    %4857 = vmatpush1.bf16.msra.mxu0 %v3269
    %4858 = vmatprep.subr.bf16.mxu0 %v3272
    %4859 = vmatpush1.bf16.msra.mxu0 %v3271
    %4860 = vmatprep.subr.bf16.mxu0 %v3274
    %4861 = vmatpush1.bf16.msra.mxu0 %v3273
    %4862 = vmatprep.subr.bf16.mxu0 %v3276
    %4863 = vmatpush1.bf16.msra.mxu0 %v3275
    %4864 = vmatprep.subr.bf16.mxu0 %v3278
    %4865 = vmatpush1.bf16.msra.mxu0 %v3277
    %4866 = vmatprep.subr.bf16.mxu0 %v3280
    %4867 = vmatpush1.bf16.msra.mxu0 %v3279
    %4868 = vmatprep.subr.bf16.mxu0 %v3282
    %4869 = vmatpush1.bf16.msra.mxu0 %v3281
    %4870 = vmatprep.subr.bf16.mxu0 %v3284
    %4871 = vmatpush1.bf16.msra.mxu0 %v3283
    %4872 = vmatprep.subr.bf16.mxu0 %v3286
    %4873 = vmatpush1.bf16.msra.mxu0 %v3285
    %4874 = vmatprep.subr.bf16.mxu0 %v3288
    %4875 = vmatpush1.bf16.msra.mxu0 %v3287
    %4876 = vmatprep.subr.bf16.mxu0 %v3290
    %4877 = vmatpush1.bf16.msra.mxu0 %v3289
    %4878 = vmatprep.subr.bf16.mxu0 %v3292
    %4879 = vmatpush1.bf16.msra.mxu0 %v3291
    %4880 = vmatprep.subr.bf16.mxu0 0
    %4881 = vmatpush1.bf16.msra.mxu0 0
    %4882 = vmatprep.subr.bf16.mxu0 0
    %4883 = vmatpush1.bf16.msra.mxu0 0
    %4884 = vmatprep.mubr.bf16.mxu0 %v4716
    %4885 = vmatmul.mubr.bf16.gmra.mrb[0].mxu0 %v4661
    %v4886 = vpop.f32.mrb[0].mxu0
    %v4887 = vadd.f32 %v4774, %v4886
    %v4888 = vpop.f32.mrb[0].mxu0
    %v4889 = vadd.f32 %v4776, %v4888
    %v4890 = vpop.f32.mrb[0].mxu0
    %v4891 = vadd.f32 %v4778, %v4890
    %v4892 = vpop.f32.mrb[0].mxu0
    %v4893 = vadd.f32 %v4780, %v4892
    %4894 = vmatprep.mubr.bf16.mxu0 %v4719
    %4895 = vmatmul.mubr.bf16.gmra.mrb[0].mxu0 %v4665
    %v4896 = vpop.f32.mrb[0].mxu0
    %v4897 = vadd.f32 %v4784, %v4896
    %v4898 = vpop.f32.mrb[0].mxu0
    %v4899 = vadd.f32 %v4786, %v4898
    %v4900 = vpop.f32.mrb[0].mxu0
    %v4901 = vadd.f32 %v4788, %v4900
    %v4902 = vpop.f32.mrb[0].mxu0
    %v4903 = vadd.f32 %v4790, %v4902
    %4904 = vmatprep.mubr.bf16.mxu0 %v4722
    %4905 = vmatmul.mubr.bf16.gmra.mrb[0].mxu0 %v4669
    %v4906 = vpop.f32.mrb[0].mxu0
    %v4907 = vadd.f32 %v4794, %v4906
    %v4908 = vpop.f32.mrb[0].mxu0
    %v4909 = vadd.f32 %v4796, %v4908
    %v4910 = vpop.f32.mrb[0].mxu0
    %v4911 = vadd.f32 %v4798, %v4910
    %v4912 = vpop.f32.mrb[0].mxu0
    %v4913 = vadd.f32 %v4800, %v4912
    %4914 = vmatprep.mubr.bf16.mxu0 %v4725
    %4915 = vmatmul.mubr.bf16.gmra.mrb[0].mxu0 %v4673
    %v4916 = vpop.f32.mrb[0].mxu0
    %v4917 = vadd.f32 %v4804, %v4916
    %v4918 = vpop.f32.mrb[0].mxu0
    %v4919 = vadd.f32 %v4806, %v4918
    %v4920 = vpop.f32.mrb[0].mxu0
    %v4921 = vadd.f32 %v4808, %v4920
    %v4922 = vpop.f32.mrb[0].mxu0
    %v4923 = vadd.f32 %v4810, %v4922
    %4924 = vmatprep.mubr.bf16.mxu0 %v4728
    %4925 = vmatmul.mubr.bf16.gmra.mrb[0].mxu0 %v4677
    %v4926 = vpop.f32.mrb[0].mxu0
    %v4927 = vadd.f32 %v4814, %v4926
    %v4928 = vpop.f32.mrb[0].mxu0
    %v4929 = vadd.f32 %v4816, %v4928
    %v4930 = vpop.f32.mrb[0].mxu0
    %v4931 = vadd.f32 %v4818, %v4930
    %v4932 = vpop.f32.mrb[0].mxu0
    %v4933 = vadd.f32 %v4820, %v4932
    %4934 = vmatprep.mubr.bf16.mxu0 %v4731
    %4935 = vmatmul.mubr.bf16.gmra.mrb[0].mxu0 %v4681
    %v4936 = vpop.f32.mrb[0].mxu0
    %v4937 = vadd.f32 %v4824, %v4936
    %v4938 = vpop.f32.mrb[0].mxu0
    %v4939 = vadd.f32 %v4826, %v4938
    %v4940 = vpop.f32.mrb[0].mxu0
    %v4941 = vadd.f32 %v4828, %v4940
    %v4942 = vpop.f32.mrb[0].mxu0
    %v4943 = vadd.f32 %v4830, %v4942
    %4944 = vmatprep.mubr.bf16.mxu0 %v4734
    %4945 = vmatmul.mubr.bf16.gmra.mrb[0].mxu0 %v4685
    %v4946 = vpop.f32.mrb[0].mxu0
    %v4947 = vadd.f32 %v4834, %v4946
    %v4948 = vpop.f32.mrb[0].mxu0
    %v4949 = vadd.f32 %v4836, %v4948
    %v4950 = vpop.f32.mrb[0].mxu0
    %v4951 = vadd.f32 %v4838, %v4950
    %v4952 = vpop.f32.mrb[0].mxu0
    %v4953 = vadd.f32 %v4840, %v4952
    %4954 = vmatprep.mubr.bf16.mxu0 %v4737
    %4955 = vmatmul.mubr.bf16.gmra.mrb[0].mxu0 %v4689
    %v4956 = vpop.f32.mrb[0].mxu0
    %v4957 = vadd.f32 %v4844, %v4956
    %v4958 = vpop.f32.mrb[0].mxu0
    %v4959 = vadd.f32 %v4846, %v4958
    %v4960 = vpop.f32.mrb[0].mxu0
    %v4961 = vadd.f32 %v4848, %v4960
    %v4962 = vpop.f32.mrb[0].mxu0
    %v4963 = vadd.f32 %v4850, %v4962
    %4964 = vdwg.mxu0
    %v4965 = vmax.f32 %v4887, 0.0
    %v4966 = vmax.f32 %v4889, 0.0
    %v4967 = vmax.f32 %v4891, 0.0
    %v4968 = vmax.f32 %v4893, 0.0
    %v4969 = vmax.f32 %v4897, 0.0
    %v4970 = vmax.f32 %v4899, 0.0
    %v4971 = vmax.f32 %v4901, 0.0
    %v4972 = vmax.f32 %v4903, 0.0
    %v4973 = vmax.f32 %v4907, 0.0
    %v4974 = vmax.f32 %v4909, 0.0
    %v4975 = vmax.f32 %v4911, 0.0
    %v4976 = vmax.f32 %v4913, 0.0
    %v4977 = vmax.f32 %v4917, 0.0
    %v4978 = vmax.f32 %v4919, 0.0
    %v4979 = vmax.f32 %v4921, 0.0
    %v4980 = vmax.f32 %v4923, 0.0
    %v4981 = vmax.f32 %v4927, 0.0
    %v4982 = vmax.f32 %v4929, 0.0
    %v4983 = vmax.f32 %v4931, 0.0
    %v4984 = vmax.f32 %v4933, 0.0
    %v4985 = vmax.f32 %v4937, 0.0
    %v4986 = vmax.f32 %v4939, 0.0
    %v4987 = vmax.f32 %v4941, 0.0
    %v4988 = vmax.f32 %v4943, 0.0
    %v4989 = vmax.f32 %v4947, 0.0
    %v4990 = vmax.f32 %v4949, 0.0
    %v4991 = vmax.f32 %v4951, 0.0
    %v4992 = vmax.f32 %v4953, 0.0
    %v4993 = vmax.f32 %v4957, 0.0
    %v4994 = vmax.f32 %v4959, 0.0
    %v4995 = vmax.f32 %v4961, 0.0
    %v4996 = vmax.f32 %v4963, 0.0
    %v4997 = vpack.c.bf16 %v4967, %v4965
    %v4998 = vpack.c.bf16 %v4968, %v4966
    %v4999 = vpack.c.bf16 %v4971, %v4969
    %v5000 = vpack.c.bf16 %v4972, %v4970
    %v5001 = vpack.c.bf16 %v4975, %v4973
    %v5002 = vpack.c.bf16 %v4976, %v4974
    %v5003 = vpack.c.bf16 %v4979, %v4977
    %v5004 = vpack.c.bf16 %v4980, %v4978
    %v5005 = vpack.c.bf16 %v4983, %v4981
    %v5006 = vpack.c.bf16 %v4984, %v4982
    %v5007 = vpack.c.bf16 %v4987, %v4985
    %v5008 = vpack.c.bf16 %v4988, %v4986
    %v5009 = vpack.c.bf16 %v4991, %v4989
    %v5010 = vpack.c.bf16 %v4992, %v4990
    %v5011 = vpack.c.bf16 %v4995, %v4993
    %v5012 = vpack.c.bf16 %v4996, %v4994
    %s5013 = scalar_lea.vmem [#allocation2], 192
    %v5014 = vld [vmem:[%s5013] sm:$0xf]
    %v5015 = vld [vmem:[%s5013 + $0x4] sm:$0xf]
    %v5016 = vld [vmem:[%s5013 + $0x8] sm:$0xf]
    %v5017 = vld [vmem:[%s5013 + $0xc] sm:$0xf]
    %v5018 = vld [vmem:[%s5013 + $0x10] sm:$0xf]
    %v5019 = vld [vmem:[%s5013 + $0x14] sm:$0xf]
    %v5020 = vld [vmem:[%s5013 + $0x18] sm:$0xf]
    %v5021 = vld [vmem:[%s5013 + $0x1c] sm:$0xf]
    %v5022 = vld [vmem:[%s5013 + $0x20] sm:$0xf]
    %v5023 = vld [vmem:[%s5013 + $0x24] sm:$0xf]
    %v5024 = vld [vmem:[%s5013 + $0x28] sm:$0xf]
    %v5025 = vld [vmem:[%s5013 + $0x2c] sm:$0xf]
    %v5026 = vld [vmem:[%s5013 + $0x30] sm:$0xf]
    %v5027 = vld [vmem:[%s5013 + $0x34] sm:$0xf]
    %v5028 = vld [vmem:[%s5013 + $0x38] sm:$0xf]
    %v5029 = vld [vmem:[%s5013 + $0x3c] sm:$0xf]
    %v5030 = vld [vmem:[%s5013 + $0x40] sm:$0xf]
    %v5031 = vld [vmem:[%s5013 + $0x44] sm:$0xf]
    %v5032 = vld [vmem:[%s5013 + $0x48] sm:$0xf]
    %v5033 = vld [vmem:[%s5013 + $0x4c] sm:$0xf]
    %v5034 = vld [vmem:[%s5013 + $0x50] sm:$0xf]
    %v5035 = vld [vmem:[%s5013 + $0x54] sm:$0xf]
    %v5036 = vld [vmem:[%s5013 + $0x58] sm:$0xf]
    %v5037 = vld [vmem:[%s5013 + $0x5c] sm:$0xf]
    %v5062 = vunpack.c.l.b16 %v5014
    %v5063 = vunpack.c.l.b16 %v5015
    %v5064 = vunpack.c.l.b16 %v5016
    %v5065 = vunpack.c.l.b16 %v5017
    %v5066 = vunpack.c.l.b16 %v5018
    %v5067 = vunpack.c.l.b16 %v5019
    %v5068 = vunpack.c.l.b16 %v5020
    %v5069 = vunpack.c.l.b16 %v5021
    %v5070 = vunpack.c.l.b16 %v5022
    %v5071 = vunpack.c.l.b16 %v5023
    %v5072 = vunpack.c.l.b16 %v5024
    %v5073 = vunpack.c.l.b16 %v5025
    %v5074 = vunpack.c.l.b16 %v5026
    %v5075 = vunpack.c.l.b16 %v5027
    %v5076 = vunpack.c.l.b16 %v5028
    %v5077 = vunpack.c.l.b16 %v5029
    %v5078 = vunpack.c.l.b16 %v5030
    %v5079 = vunpack.c.l.b16 %v5031
    %v5080 = vunpack.c.l.b16 %v5032
    %v5081 = vunpack.c.l.b16 %v5033
    %v5082 = vunpack.c.l.b16 %v5034
    %v5083 = vunpack.c.l.b16 %v5035
    %v5084 = vunpack.c.l.b16 %v5036
    %v5085 = vunpack.c.l.b16 %v5037
    %v5086 = vpack.c.b16 %v5063, %v5062
    %v5087 = vpack.c.b16 %v5065, %v5064
    %v5088 = vpack.c.b16 %v5067, %v5066
    %v5089 = vpack.c.b16 %v5069, %v5068
    %v5090 = vpack.c.b16 %v5071, %v5070
    %v5091 = vpack.c.b16 %v5073, %v5072
    %v5092 = vpack.c.b16 %v5075, %v5074
    %v5093 = vpack.c.b16 %v5077, %v5076
    %v5094 = vpack.c.b16 %v5079, %v5078
    %v5095 = vpack.c.b16 %v5081, %v5080
    %v5096 = vpack.c.b16 %v5083, %v5082
    %v5097 = vpack.c.b16 %v5085, %v5084
    %v5111 = vsel %vm2859, %v4998, 0
    %v5114 = vsel %vm2859, %v5000, 0
    %v5117 = vsel %vm2859, %v5002, 0
    %v5120 = vsel %vm2859, %v5004, 0
    %v5123 = vsel %vm2859, %v5006, 0
    %v5126 = vsel %vm2859, %v5008, 0
    %v5129 = vsel %vm2859, %v5010, 0
    %v5132 = vsel %vm2859, %v5012, 0
    %5134 = vmatprep.subr.bf16.mxu0 0
    %5135 = vmatpush1.bf16.msra.mxu0 %v5086
    %5136 = vmatprep.subr.bf16.mxu0 0
    %5137 = vmatpush1.bf16.msra.mxu0 %v5087
    %5138 = vmatprep.subr.bf16.mxu0 0
    %5139 = vmatpush1.bf16.msra.mxu0 %v5088
    %5140 = vmatprep.subr.bf16.mxu0 0
    %5141 = vmatpush1.bf16.msra.mxu0 %v5089
    %5142 = vmatprep.subr.bf16.mxu0 0
    %5143 = vmatpush1.bf16.msra.mxu0 %v5090
    %5144 = vmatprep.subr.bf16.mxu0 0
    %5145 = vmatpush1.bf16.msra.mxu0 %v5091
    %5146 = vmatprep.subr.bf16.mxu0 0
    %5147 = vmatpush1.bf16.msra.mxu0 %v5092
    %5148 = vmatprep.subr.bf16.mxu0 0
    %5149 = vmatpush1.bf16.msra.mxu0 %v5093
    %5150 = vmatprep.subr.bf16.mxu0 0
    %5151 = vmatpush1.bf16.msra.mxu0 %v5094
    %5152 = vmatprep.subr.bf16.mxu0 0
    %5153 = vmatpush1.bf16.msra.mxu0 %v5095
    %5154 = vmatprep.subr.bf16.mxu0 0
    %5155 = vmatpush1.bf16.msra.mxu0 %v5096
    %5156 = vmatprep.subr.bf16.mxu0 0
    %5157 = vmatpush1.bf16.msra.mxu0 %v5097
    %5158 = vmatprep.subr.bf16.mxu0 0
    %5159 = vmatpush1.bf16.msra.mxu0 0
    %5160 = vmatprep.subr.bf16.mxu0 0
    %5161 = vmatpush1.bf16.msra.mxu0 0
    %5162 = vmatprep.subr.bf16.mxu0 0
    %5163 = vmatpush1.bf16.msra.mxu0 0
    %5164 = vmatprep.subr.bf16.mxu0 0
    %5165 = vmatpush1.bf16.msra.mxu0 0
    %5166 = vmatprep.mubr.bf16.mxu0 %v5111
    %5167 = vmatmul.mubr.bf16.gmra.mrb[0].mxu0 %v4997
    %v5168 = vpop.f32.mrb[0].mxu0
    %v5169 = vadd.f32 0.0, %v5168
    %v5170 = vpop.f32.mrb[0].mxu0
    %v5171 = vpop.f32.mrb[0].mxu0
    %v5172 = vadd.f32 0.0, %v5171
    %v5173 = vpop.f32.mrb[0].mxu0
    %5174 = vmatprep.mubr.bf16.mxu0 %v5114
    %5175 = vmatmul.mubr.bf16.gmra.mrb[0].mxu0 %v4999
    %v5176 = vpop.f32.mrb[0].mxu0
    %v5177 = vadd.f32 0.0, %v5176
    %v5178 = vpop.f32.mrb[0].mxu0
    %v5179 = vpop.f32.mrb[0].mxu0
    %v5180 = vadd.f32 0.0, %v5179
    %v5181 = vpop.f32.mrb[0].mxu0
    %5182 = vmatprep.mubr.bf16.mxu0 %v5117
    %5183 = vmatmul.mubr.bf16.gmra.mrb[0].mxu0 %v5001
    %v5184 = vpop.f32.mrb[0].mxu0
    %v5185 = vadd.f32 0.0, %v5184
    %v5186 = vpop.f32.mrb[0].mxu0
    %v5187 = vpop.f32.mrb[0].mxu0
    %v5188 = vadd.f32 0.0, %v5187
    %v5189 = vpop.f32.mrb[0].mxu0
    %5190 = vmatprep.mubr.bf16.mxu0 %v5120
    %5191 = vmatmul.mubr.bf16.gmra.mrb[0].mxu0 %v5003
    %v5192 = vpop.f32.mrb[0].mxu0
    %v5193 = vadd.f32 0.0, %v5192
    %v5194 = vpop.f32.mrb[0].mxu0
    %v5195 = vpop.f32.mrb[0].mxu0
    %v5196 = vadd.f32 0.0, %v5195
    %v5197 = vpop.f32.mrb[0].mxu0
    %5198 = vmatprep.mubr.bf16.mxu0 %v5123
    %5199 = vmatmul.mubr.bf16.gmra.mrb[0].mxu0 %v5005
    %v5200 = vpop.f32.mrb[0].mxu0
    %v5201 = vadd.f32 0.0, %v5200
    %v5202 = vpop.f32.mrb[0].mxu0
    %v5203 = vpop.f32.mrb[0].mxu0
    %v5204 = vadd.f32 0.0, %v5203
    %v5205 = vpop.f32.mrb[0].mxu0
    %5206 = vmatprep.mubr.bf16.mxu0 %v5126
    %5207 = vmatmul.mubr.bf16.gmra.mrb[0].mxu0 %v5007
    %v5208 = vpop.f32.mrb[0].mxu0
    %v5209 = vadd.f32 0.0, %v5208
    %v5210 = vpop.f32.mrb[0].mxu0
    %v5211 = vpop.f32.mrb[0].mxu0
    %v5212 = vadd.f32 0.0, %v5211
    %v5213 = vpop.f32.mrb[0].mxu0
    %5214 = vmatprep.mubr.bf16.mxu0 %v5129
    %5215 = vmatmul.mubr.bf16.gmra.mrb[0].mxu0 %v5009
    %v5216 = vpop.f32.mrb[0].mxu0
    %v5217 = vadd.f32 0.0, %v5216
    %v5218 = vpop.f32.mrb[0].mxu0
    %v5219 = vpop.f32.mrb[0].mxu0
    %v5220 = vadd.f32 0.0, %v5219
    %v5221 = vpop.f32.mrb[0].mxu0
    %5222 = vmatprep.mubr.bf16.mxu0 %v5132
    %5223 = vmatmul.mubr.bf16.gmra.mrb[0].mxu0 %v5011
    %v5224 = vpop.f32.mrb[0].mxu0
    %v5225 = vadd.f32 0.0, %v5224
    %v5226 = vpop.f32.mrb[0].mxu0
    %v5227 = vpop.f32.mrb[0].mxu0
    %v5228 = vadd.f32 0.0, %v5227
    %v5229 = vpop.f32.mrb[0].mxu0
    %5230 = vdwg.mxu0
    %v5231 = vadd.f32 %v4546, %v5169
    %v5232 = vadd.f32 %v4547, %v5172
    %v5233 = vadd.f32 %v4548, %v5177
    %v5234 = vadd.f32 %v4549, %v5180
    %v5235 = vadd.f32 %v4550, %v5185
    %v5236 = vadd.f32 %v4551, %v5188
    %v5237 = vadd.f32 %v4552, %v5193
    %v5238 = vadd.f32 %v4553, %v5196
    %v5239 = vadd.f32 %v4554, %v5201
    %v5240 = vadd.f32 %v4555, %v5204
    %v5241 = vadd.f32 %v4556, %v5209
    %v5242 = vadd.f32 %v4557, %v5212
    %v5243 = vadd.f32 %v4558, %v5217
    %v5244 = vadd.f32 %v4559, %v5220
    %v5245 = vadd.f32 %v4560, %v5225
    %v5246 = vadd.f32 %v4561, %v5228
    %5255 = vrot.lane.b32.xlu0 %v2538, 32
    %v5256 = vpop.permute.xlu0 %5255
    %5257 = vrot.lane.b32.xlu0 %v2539, 32
    %v5258 = vpop.permute.xlu0 %5257
    %5259 = vrot.lane.b32.xlu0 %v2540, 32
    %v5260 = vpop.permute.xlu0 %5259
    %5261 = vrot.lane.b32.xlu0 %v2541, 32
    %v5262 = vpop.permute.xlu0 %5261
    %5263 = vrot.lane.b32.xlu0 %v2542, 32
    %v5264 = vpop.permute.xlu0 %5263
    %5265 = vrot.lane.b32.xlu0 %v2547, 32
    %v5266 = vpop.permute.xlu0 %5265
    %5267 = vrot.lane.b32.xlu0 %v2548, 32
    %v5268 = vpop.permute.xlu0 %5267
    %5269 = vrot.lane.b32.xlu0 %v2549, 32
    %v5270 = vpop.permute.xlu0 %5269
    %5271 = vrot.lane.b32.xlu0 %v2550, 32
    %v5272 = vpop.permute.xlu0 %5271
    %5273 = vrot.lane.b32.xlu0 %v2551, 32
    %v5274 = vpop.permute.xlu0 %5273
    %5275 = vrot.lane.b32.xlu0 %v2556, 32
    %v5276 = vpop.permute.xlu0 %5275
    %5277 = vrot.lane.b32.xlu0 %v2557, 32
    %v5278 = vpop.permute.xlu0 %5277
    %5279 = vrot.lane.b32.xlu0 %v2558, 32
    %v5280 = vpop.permute.xlu0 %5279
    %5281 = vrot.lane.b32.xlu0 %v2559, 32
    %v5282 = vpop.permute.xlu0 %5281
    %5283 = vrot.lane.b32.xlu0 %v2560, 32
    %v5284 = vpop.permute.xlu0 %5283
    %5285 = vrot.lane.b32.xlu0 %v2565, 32
    %v5286 = vpop.permute.xlu0 %5285
    %5287 = vrot.lane.b32.xlu0 %v2566, 32
    %v5288 = vpop.permute.xlu0 %5287
    %5289 = vrot.lane.b32.xlu0 %v2567, 32
    %v5290 = vpop.permute.xlu0 %5289
    %5291 = vrot.lane.b32.xlu0 %v2568, 32
    %v5292 = vpop.permute.xlu0 %5291
    %5293 = vrot.lane.b32.xlu0 %v2569, 32
    %v5294 = vpop.permute.xlu0 %5293
    %5295 = vrot.lane.b32.xlu0 %v2574, 32
    %v5296 = vpop.permute.xlu0 %5295
    %5297 = vrot.lane.b32.xlu0 %v2575, 32
    %v5298 = vpop.permute.xlu0 %5297
    %5299 = vrot.lane.b32.xlu0 %v2576, 32
    %v5300 = vpop.permute.xlu0 %5299
    %5301 = vrot.lane.b32.xlu0 %v2577, 32
    %v5302 = vpop.permute.xlu0 %5301
    %5303 = vrot.lane.b32.xlu0 %v2578, 32
    %v5304 = vpop.permute.xlu0 %5303
    %5305 = vrot.lane.b32.xlu0 %v2583, 32
    %v5306 = vpop.permute.xlu0 %5305
    %5307 = vrot.lane.b32.xlu0 %v2584, 32
    %v5308 = vpop.permute.xlu0 %5307
    %5309 = vrot.lane.b32.xlu0 %v2585, 32
    %v5310 = vpop.permute.xlu0 %5309
    %5311 = vrot.lane.b32.xlu0 %v2586, 32
    %v5312 = vpop.permute.xlu0 %5311
    %5313 = vrot.lane.b32.xlu0 %v2587, 32
    %v5314 = vpop.permute.xlu0 %5313
    %5315 = vrot.lane.b32.xlu0 %v2592, 32
    %v5316 = vpop.permute.xlu0 %5315
    %5317 = vrot.lane.b32.xlu0 %v2593, 32
    %v5318 = vpop.permute.xlu0 %5317
    %5319 = vrot.lane.b32.xlu0 %v2594, 32
    %v5320 = vpop.permute.xlu0 %5319
    %5321 = vrot.lane.b32.xlu0 %v2595, 32
    %v5322 = vpop.permute.xlu0 %5321
    %5323 = vrot.lane.b32.xlu0 %v2596, 32
    %v5324 = vpop.permute.xlu0 %5323
    %5325 = vrot.lane.b32.xlu0 %v2601, 32
    %v5326 = vpop.permute.xlu0 %5325
    %5327 = vrot.lane.b32.xlu0 %v2602, 32
    %v5328 = vpop.permute.xlu0 %5327
    %5329 = vrot.lane.b32.xlu0 %v2603, 32
    %v5330 = vpop.permute.xlu0 %5329
    %5331 = vrot.lane.b32.xlu0 %v2604, 32
    %v5332 = vpop.permute.xlu0 %5331
    %5333 = vrot.lane.b32.xlu0 %v2605, 32
    %v5334 = vpop.permute.xlu0 %5333
    %vm5335 = vcmask 261120
    %v5336 = vsel %vm5335, %v5256, %v5258
    %v5337 = vsel %vm5335, %v5258, %v5260
    %v5338 = vsel %vm5335, %v5260, %v5262
    %v5339 = vsel %vm5335, %v5262, %v5264
    %v5340 = vsel %vm5335, %v5266, %v5268
    %v5341 = vsel %vm5335, %v5268, %v5270
    %v5342 = vsel %vm5335, %v5270, %v5272
    %v5343 = vsel %vm5335, %v5272, %v5274
    %v5344 = vsel %vm5335, %v5276, %v5278
    %v5345 = vsel %vm5335, %v5278, %v5280
    %v5346 = vsel %vm5335, %v5280, %v5282
    %v5347 = vsel %vm5335, %v5282, %v5284
    %v5348 = vsel %vm5335, %v5286, %v5288
    %v5349 = vsel %vm5335, %v5288, %v5290
    %v5350 = vsel %vm5335, %v5290, %v5292
    %v5351 = vsel %vm5335, %v5292, %v5294
    %v5352 = vsel %vm5335, %v5296, %v5298
    %v5353 = vsel %vm5335, %v5298, %v5300
    %v5354 = vsel %vm5335, %v5300, %v5302
    %v5355 = vsel %vm5335, %v5302, %v5304
    %v5356 = vsel %vm5335, %v5306, %v5308
    %v5357 = vsel %vm5335, %v5308, %v5310
    %v5358 = vsel %vm5335, %v5310, %v5312
    %v5359 = vsel %vm5335, %v5312, %v5314
    %v5360 = vsel %vm5335, %v5316, %v5318
    %v5361 = vsel %vm5335, %v5318, %v5320
    %v5362 = vsel %vm5335, %v5320, %v5322
    %v5363 = vsel %vm5335, %v5322, %v5324
    %v5364 = vsel %vm5335, %v5326, %v5328
    %v5365 = vsel %vm5335, %v5328, %v5330
    %v5366 = vsel %vm5335, %v5330, %v5332
    %v5367 = vsel %vm5335, %v5332, %v5334
    %v5393 = vsel %vm3353, %v5339, 0
    %v5396 = vsel %vm3353, %v5343, 0
    %v5399 = vsel %vm3353, %v5347, 0
    %v5402 = vsel %vm3353, %v5351, 0
    %v5405 = vsel %vm3353, %v5355, 0
    %v5408 = vsel %vm3353, %v5359, 0
    %v5411 = vsel %vm3353, %v5363, 0
    %v5414 = vsel %vm3353, %v5367, 0
    %5416 = vmatprep.subr.bf16.mxu0 %v3234
    %5417 = vmatpush1.bf16.msra.mxu0 %v3233
    %5418 = vmatprep.subr.bf16.mxu0 %v3236
    %5419 = vmatpush1.bf16.msra.mxu0 %v3235
    %5420 = vmatprep.subr.bf16.mxu0 %v3238
    %5421 = vmatpush1.bf16.msra.mxu0 %v3237
    %5422 = vmatprep.subr.bf16.mxu0 %v3240
    %5423 = vmatpush1.bf16.msra.mxu0 %v3239
    %5424 = vmatprep.subr.bf16.mxu0 %v3242
    %5425 = vmatpush1.bf16.msra.mxu0 %v3241
    %5426 = vmatprep.subr.bf16.mxu0 %v3244
    %5427 = vmatpush1.bf16.msra.mxu0 %v3243
    %5428 = vmatprep.subr.bf16.mxu0 %v3246
    %5429 = vmatpush1.bf16.msra.mxu0 %v3245
    %5430 = vmatprep.subr.bf16.mxu0 %v3248
    %5431 = vmatpush1.bf16.msra.mxu0 %v3247
    %5432 = vmatprep.subr.bf16.mxu0 %v3250
    %5433 = vmatpush1.bf16.msra.mxu0 %v3249
    %5434 = vmatprep.subr.bf16.mxu0 %v3252
    %5435 = vmatpush1.bf16.msra.mxu0 %v3251
    %5436 = vmatprep.subr.bf16.mxu0 %v3254
    %5437 = vmatpush1.bf16.msra.mxu0 %v3253
    %5438 = vmatprep.subr.bf16.mxu0 %v3256
    %5439 = vmatpush1.bf16.msra.mxu0 %v3255
    %5440 = vmatprep.subr.bf16.mxu0 %v3258
    %5441 = vmatpush1.bf16.msra.mxu0 %v3257
    %5442 = vmatprep.subr.bf16.mxu0 %v3260
    %5443 = vmatpush1.bf16.msra.mxu0 %v3259
    %5444 = vmatprep.subr.bf16.mxu0 %v3262
    %5445 = vmatpush1.bf16.msra.mxu0 %v3261
    %5446 = vmatprep.subr.bf16.mxu0 %v3264
    %5447 = vmatpush1.bf16.msra.mxu0 %v3263
    %5448 = vmatprep.mubr.bf16.mxu0 %v5337
    %5449 = vmatmul.mubr.bf16.gmra.mrb[0].mxu0 %v5336
    %v5450 = vpop.f32.mrb[0].mxu0
    %v5451 = vadd.f32 %v3046, %v5450
    %v5452 = vpop.f32.mrb[0].mxu0
    %v5453 = vadd.f32 %v3050, %v5452
    %v5454 = vpop.f32.mrb[0].mxu0
    %v5455 = vadd.f32 %v3046, %v5454
    %v5456 = vpop.f32.mrb[0].mxu0
    %v5457 = vadd.f32 %v3050, %v5456
    %5458 = vmatprep.mubr.bf16.mxu0 %v5341
    %5459 = vmatmul.mubr.bf16.gmra.mrb[0].mxu0 %v5340
    %v5460 = vpop.f32.mrb[0].mxu0
    %v5461 = vadd.f32 %v3046, %v5460
    %v5462 = vpop.f32.mrb[0].mxu0
    %v5463 = vadd.f32 %v3050, %v5462
    %v5464 = vpop.f32.mrb[0].mxu0
    %v5465 = vadd.f32 %v3046, %v5464
    %v5466 = vpop.f32.mrb[0].mxu0
    %v5467 = vadd.f32 %v3050, %v5466
    %5468 = vmatprep.mubr.bf16.mxu0 %v5345
    %5469 = vmatmul.mubr.bf16.gmra.mrb[0].mxu0 %v5344
    %v5470 = vpop.f32.mrb[0].mxu0
    %v5471 = vadd.f32 %v3046, %v5470
    %v5472 = vpop.f32.mrb[0].mxu0
    %v5473 = vadd.f32 %v3050, %v5472
    %v5474 = vpop.f32.mrb[0].mxu0
    %v5475 = vadd.f32 %v3046, %v5474
    %v5476 = vpop.f32.mrb[0].mxu0
    %v5477 = vadd.f32 %v3050, %v5476
    %5478 = vmatprep.mubr.bf16.mxu0 %v5349
    %5479 = vmatmul.mubr.bf16.gmra.mrb[0].mxu0 %v5348
    %v5480 = vpop.f32.mrb[0].mxu0
    %v5481 = vadd.f32 %v3046, %v5480
    %v5482 = vpop.f32.mrb[0].mxu0
    %v5483 = vadd.f32 %v3050, %v5482
    %v5484 = vpop.f32.mrb[0].mxu0
    %v5485 = vadd.f32 %v3046, %v5484
    %v5486 = vpop.f32.mrb[0].mxu0
    %v5487 = vadd.f32 %v3050, %v5486
    %5488 = vmatprep.mubr.bf16.mxu0 %v5353
    %5489 = vmatmul.mubr.bf16.gmra.mrb[0].mxu0 %v5352
    %v5490 = vpop.f32.mrb[0].mxu0
    %v5491 = vadd.f32 %v3046, %v5490
    %v5492 = vpop.f32.mrb[0].mxu0
    %v5493 = vadd.f32 %v3050, %v5492
    %v5494 = vpop.f32.mrb[0].mxu0
    %v5495 = vadd.f32 %v3046, %v5494
    %v5496 = vpop.f32.mrb[0].mxu0
    %v5497 = vadd.f32 %v3050, %v5496
    %5498 = vmatprep.mubr.bf16.mxu0 %v5357
    %5499 = vmatmul.mubr.bf16.gmra.mrb[0].mxu0 %v5356
    %v5500 = vpop.f32.mrb[0].mxu0
    %v5501 = vadd.f32 %v3046, %v5500
    %v5502 = vpop.f32.mrb[0].mxu0
    %v5503 = vadd.f32 %v3050, %v5502
    %v5504 = vpop.f32.mrb[0].mxu0
    %v5505 = vadd.f32 %v3046, %v5504
    %v5506 = vpop.f32.mrb[0].mxu0
    %v5507 = vadd.f32 %v3050, %v5506
    %5508 = vmatprep.mubr.bf16.mxu0 %v5361
    %5509 = vmatmul.mubr.bf16.gmra.mrb[0].mxu0 %v5360
    %v5510 = vpop.f32.mrb[0].mxu0
    %v5511 = vadd.f32 %v3046, %v5510
    %v5512 = vpop.f32.mrb[0].mxu0
    %v5513 = vadd.f32 %v3050, %v5512
    %v5514 = vpop.f32.mrb[0].mxu0
    %v5515 = vadd.f32 %v3046, %v5514
    %v5516 = vpop.f32.mrb[0].mxu0
    %v5517 = vadd.f32 %v3050, %v5516
    %5518 = vmatprep.mubr.bf16.mxu0 %v5365
    %5519 = vmatmul.mubr.bf16.gmra.mrb[0].mxu0 %v5364
    %v5520 = vpop.f32.mrb[0].mxu0
    %v5521 = vadd.f32 %v3046, %v5520
    %v5522 = vpop.f32.mrb[0].mxu0
    %v5523 = vadd.f32 %v3050, %v5522
    %v5524 = vpop.f32.mrb[0].mxu0
    %v5525 = vadd.f32 %v3046, %v5524
    %v5526 = vpop.f32.mrb[0].mxu0
    %v5527 = vadd.f32 %v3050, %v5526
    %5528 = vdwg.mxu0
    %5529 = vmatprep.subr.bf16.mxu0 %v3266
    %5530 = vmatpush1.bf16.msra.mxu0 %v3265
    %5531 = vmatprep.subr.bf16.mxu0 %v3268
    %5532 = vmatpush1.bf16.msra.mxu0 %v3267
    %5533 = vmatprep.subr.bf16.mxu0 %v3270
    %5534 = vmatpush1.bf16.msra.mxu0 %v3269
    %5535 = vmatprep.subr.bf16.mxu0 %v3272
    %5536 = vmatpush1.bf16.msra.mxu0 %v3271
    %5537 = vmatprep.subr.bf16.mxu0 %v3274
    %5538 = vmatpush1.bf16.msra.mxu0 %v3273
    %5539 = vmatprep.subr.bf16.mxu0 %v3276
    %5540 = vmatpush1.bf16.msra.mxu0 %v3275
    %5541 = vmatprep.subr.bf16.mxu0 %v3278
    %5542 = vmatpush1.bf16.msra.mxu0 %v3277
    %5543 = vmatprep.subr.bf16.mxu0 %v3280
    %5544 = vmatpush1.bf16.msra.mxu0 %v3279
    %5545 = vmatprep.subr.bf16.mxu0 %v3282
    %5546 = vmatpush1.bf16.msra.mxu0 %v3281
    %5547 = vmatprep.subr.bf16.mxu0 %v3284
    %5548 = vmatpush1.bf16.msra.mxu0 %v3283
    %5549 = vmatprep.subr.bf16.mxu0 %v3286
    %5550 = vmatpush1.bf16.msra.mxu0 %v3285
    %5551 = vmatprep.subr.bf16.mxu0 %v3288
    %5552 = vmatpush1.bf16.msra.mxu0 %v3287
    %5553 = vmatprep.subr.bf16.mxu0 %v3290
    %5554 = vmatpush1.bf16.msra.mxu0 %v3289
    %5555 = vmatprep.subr.bf16.mxu0 %v3292
    %5556 = vmatpush1.bf16.msra.mxu0 %v3291
    %5557 = vmatprep.subr.bf16.mxu0 0
    %5558 = vmatpush1.bf16.msra.mxu0 0
    %5559 = vmatprep.subr.bf16.mxu0 0
    %5560 = vmatpush1.bf16.msra.mxu0 0
    %5561 = vmatprep.mubr.bf16.mxu0 %v5393
    %5562 = vmatmul.mubr.bf16.gmra.mrb[0].mxu0 %v5338
    %v5563 = vpop.f32.mrb[0].mxu0
    %v5564 = vadd.f32 %v5451, %v5563
    %v5565 = vpop.f32.mrb[0].mxu0
    %v5566 = vadd.f32 %v5453, %v5565
    %v5567 = vpop.f32.mrb[0].mxu0
    %v5568 = vadd.f32 %v5455, %v5567
    %v5569 = vpop.f32.mrb[0].mxu0
    %v5570 = vadd.f32 %v5457, %v5569
    %5571 = vmatprep.mubr.bf16.mxu0 %v5396
    %5572 = vmatmul.mubr.bf16.gmra.mrb[0].mxu0 %v5342
    %v5573 = vpop.f32.mrb[0].mxu0
    %v5574 = vadd.f32 %v5461, %v5573
    %v5575 = vpop.f32.mrb[0].mxu0
    %v5576 = vadd.f32 %v5463, %v5575
    %v5577 = vpop.f32.mrb[0].mxu0
    %v5578 = vadd.f32 %v5465, %v5577
    %v5579 = vpop.f32.mrb[0].mxu0
    %v5580 = vadd.f32 %v5467, %v5579
    %5581 = vmatprep.mubr.bf16.mxu0 %v5399
    %5582 = vmatmul.mubr.bf16.gmra.mrb[0].mxu0 %v5346
    %v5583 = vpop.f32.mrb[0].mxu0
    %v5584 = vadd.f32 %v5471, %v5583
    %v5585 = vpop.f32.mrb[0].mxu0
    %v5586 = vadd.f32 %v5473, %v5585
    %v5587 = vpop.f32.mrb[0].mxu0
    %v5588 = vadd.f32 %v5475, %v5587
    %v5589 = vpop.f32.mrb[0].mxu0
    %v5590 = vadd.f32 %v5477, %v5589
    %5591 = vmatprep.mubr.bf16.mxu0 %v5402
    %5592 = vmatmul.mubr.bf16.gmra.mrb[0].mxu0 %v5350
    %v5593 = vpop.f32.mrb[0].mxu0
    %v5594 = vadd.f32 %v5481, %v5593
    %v5595 = vpop.f32.mrb[0].mxu0
    %v5596 = vadd.f32 %v5483, %v5595
    %v5597 = vpop.f32.mrb[0].mxu0
    %v5598 = vadd.f32 %v5485, %v5597
    %v5599 = vpop.f32.mrb[0].mxu0
    %v5600 = vadd.f32 %v5487, %v5599
    %5601 = vmatprep.mubr.bf16.mxu0 %v5405
    %5602 = vmatmul.mubr.bf16.gmra.mrb[0].mxu0 %v5354
    %v5603 = vpop.f32.mrb[0].mxu0
    %v5604 = vadd.f32 %v5491, %v5603
    %v5605 = vpop.f32.mrb[0].mxu0
    %v5606 = vadd.f32 %v5493, %v5605
    %v5607 = vpop.f32.mrb[0].mxu0
    %v5608 = vadd.f32 %v5495, %v5607
    %v5609 = vpop.f32.mrb[0].mxu0
    %v5610 = vadd.f32 %v5497, %v5609
    %5611 = vmatprep.mubr.bf16.mxu0 %v5408
    %5612 = vmatmul.mubr.bf16.gmra.mrb[0].mxu0 %v5358
    %v5613 = vpop.f32.mrb[0].mxu0
    %v5614 = vadd.f32 %v5501, %v5613
    %v5615 = vpop.f32.mrb[0].mxu0
    %v5616 = vadd.f32 %v5503, %v5615
    %v5617 = vpop.f32.mrb[0].mxu0
    %v5618 = vadd.f32 %v5505, %v5617
    %v5619 = vpop.f32.mrb[0].mxu0
    %v5620 = vadd.f32 %v5507, %v5619
    %5621 = vmatprep.mubr.bf16.mxu0 %v5411
    %5622 = vmatmul.mubr.bf16.gmra.mrb[0].mxu0 %v5362
    %v5623 = vpop.f32.mrb[0].mxu0
    %v5624 = vadd.f32 %v5511, %v5623
    %v5625 = vpop.f32.mrb[0].mxu0
    %v5626 = vadd.f32 %v5513, %v5625
    %v5627 = vpop.f32.mrb[0].mxu0
    %v5628 = vadd.f32 %v5515, %v5627
    %v5629 = vpop.f32.mrb[0].mxu0
    %v5630 = vadd.f32 %v5517, %v5629
    %5631 = vmatprep.mubr.bf16.mxu0 %v5414
    %5632 = vmatmul.mubr.bf16.gmra.mrb[0].mxu0 %v5366
    %v5633 = vpop.f32.mrb[0].mxu0
    %v5634 = vadd.f32 %v5521, %v5633
    %v5635 = vpop.f32.mrb[0].mxu0
    %v5636 = vadd.f32 %v5523, %v5635
    %v5637 = vpop.f32.mrb[0].mxu0
    %v5638 = vadd.f32 %v5525, %v5637
    %v5639 = vpop.f32.mrb[0].mxu0
    %v5640 = vadd.f32 %v5527, %v5639
    %5641 = vdwg.mxu0
    %v5642 = vmax.f32 %v5564, 0.0
    %v5643 = vmax.f32 %v5566, 0.0
    %v5644 = vmax.f32 %v5568, 0.0
    %v5645 = vmax.f32 %v5570, 0.0
    %v5646 = vmax.f32 %v5574, 0.0
    %v5647 = vmax.f32 %v5576, 0.0
    %v5648 = vmax.f32 %v5578, 0.0
    %v5649 = vmax.f32 %v5580, 0.0
    %v5650 = vmax.f32 %v5584, 0.0
    %v5651 = vmax.f32 %v5586, 0.0
    %v5652 = vmax.f32 %v5588, 0.0
    %v5653 = vmax.f32 %v5590, 0.0
    %v5654 = vmax.f32 %v5594, 0.0
    %v5655 = vmax.f32 %v5596, 0.0
    %v5656 = vmax.f32 %v5598, 0.0
    %v5657 = vmax.f32 %v5600, 0.0
    %v5658 = vmax.f32 %v5604, 0.0
    %v5659 = vmax.f32 %v5606, 0.0
    %v5660 = vmax.f32 %v5608, 0.0
    %v5661 = vmax.f32 %v5610, 0.0
    %v5662 = vmax.f32 %v5614, 0.0
    %v5663 = vmax.f32 %v5616, 0.0
    %v5664 = vmax.f32 %v5618, 0.0
    %v5665 = vmax.f32 %v5620, 0.0
    %v5666 = vmax.f32 %v5624, 0.0
    %v5667 = vmax.f32 %v5626, 0.0
    %v5668 = vmax.f32 %v5628, 0.0
    %v5669 = vmax.f32 %v5630, 0.0
    %v5670 = vmax.f32 %v5634, 0.0
    %v5671 = vmax.f32 %v5636, 0.0
    %v5672 = vmax.f32 %v5638, 0.0
    %v5673 = vmax.f32 %v5640, 0.0
    %v5674 = vpack.c.bf16 %v5644, %v5642
    %v5675 = vpack.c.bf16 %v5645, %v5643
    %v5676 = vpack.c.bf16 %v5648, %v5646
    %v5677 = vpack.c.bf16 %v5649, %v5647
    %v5678 = vpack.c.bf16 %v5652, %v5650
    %v5679 = vpack.c.bf16 %v5653, %v5651
    %v5680 = vpack.c.bf16 %v5656, %v5654
    %v5681 = vpack.c.bf16 %v5657, %v5655
    %v5682 = vpack.c.bf16 %v5660, %v5658
    %v5683 = vpack.c.bf16 %v5661, %v5659
    %v5684 = vpack.c.bf16 %v5664, %v5662
    %v5685 = vpack.c.bf16 %v5665, %v5663
    %v5686 = vpack.c.bf16 %v5668, %v5666
    %v5687 = vpack.c.bf16 %v5669, %v5667
    %v5688 = vpack.c.bf16 %v5672, %v5670
    %v5689 = vpack.c.bf16 %v5673, %v5671
    %s5690 = scalar_lea.vmem [#allocation2], 288
    %v5691 = vld [vmem:[%s5690] sm:$0xf]
    %v5692 = vld [vmem:[%s5690 + $0x4] sm:$0xf]
    %v5693 = vld [vmem:[%s5690 + $0x8] sm:$0xf]
    %v5694 = vld [vmem:[%s5690 + $0xc] sm:$0xf]
    %v5695 = vld [vmem:[%s5690 + $0x10] sm:$0xf]
    %v5696 = vld [vmem:[%s5690 + $0x14] sm:$0xf]
    %v5697 = vld [vmem:[%s5690 + $0x18] sm:$0xf]
    %v5698 = vld [vmem:[%s5690 + $0x1c] sm:$0xf]
    %v5699 = vld [vmem:[%s5690 + $0x20] sm:$0xf]
    %v5700 = vld [vmem:[%s5690 + $0x24] sm:$0xf]
    %v5701 = vld [vmem:[%s5690 + $0x28] sm:$0xf]
    %v5702 = vld [vmem:[%s5690 + $0x2c] sm:$0xf]
    %v5703 = vld [vmem:[%s5690 + $0x30] sm:$0xf]
    %v5704 = vld [vmem:[%s5690 + $0x34] sm:$0xf]
    %v5705 = vld [vmem:[%s5690 + $0x38] sm:$0xf]
    %v5706 = vld [vmem:[%s5690 + $0x3c] sm:$0xf]
    %v5707 = vld [vmem:[%s5690 + $0x40] sm:$0xf]
    %v5708 = vld [vmem:[%s5690 + $0x44] sm:$0xf]
    %v5709 = vld [vmem:[%s5690 + $0x48] sm:$0xf]
    %v5710 = vld [vmem:[%s5690 + $0x4c] sm:$0xf]
    %v5711 = vld [vmem:[%s5690 + $0x50] sm:$0xf]
    %v5712 = vld [vmem:[%s5690 + $0x54] sm:$0xf]
    %v5713 = vld [vmem:[%s5690 + $0x58] sm:$0xf]
    %v5714 = vld [vmem:[%s5690 + $0x5c] sm:$0xf]
    %v5739 = vunpack.c.l.b16 %v5691
    %v5740 = vunpack.c.l.b16 %v5692
    %v5741 = vunpack.c.l.b16 %v5693
    %v5742 = vunpack.c.l.b16 %v5694
    %v5743 = vunpack.c.l.b16 %v5695
    %v5744 = vunpack.c.l.b16 %v5696
    %v5745 = vunpack.c.l.b16 %v5697
    %v5746 = vunpack.c.l.b16 %v5698
    %v5747 = vunpack.c.l.b16 %v5699
    %v5748 = vunpack.c.l.b16 %v5700
    %v5749 = vunpack.c.l.b16 %v5701
    %v5750 = vunpack.c.l.b16 %v5702
    %v5751 = vunpack.c.l.b16 %v5703
    %v5752 = vunpack.c.l.b16 %v5704
    %v5753 = vunpack.c.l.b16 %v5705
    %v5754 = vunpack.c.l.b16 %v5706
    %v5755 = vunpack.c.l.b16 %v5707
    %v5756 = vunpack.c.l.b16 %v5708
    %v5757 = vunpack.c.l.b16 %v5709
    %v5758 = vunpack.c.l.b16 %v5710
    %v5759 = vunpack.c.l.b16 %v5711
    %v5760 = vunpack.c.l.b16 %v5712
    %v5761 = vunpack.c.l.b16 %v5713
    %v5762 = vunpack.c.l.b16 %v5714
    %v5763 = vpack.c.b16 %v5740, %v5739
    %v5764 = vpack.c.b16 %v5742, %v5741
    %v5765 = vpack.c.b16 %v5744, %v5743
    %v5766 = vpack.c.b16 %v5746, %v5745
    %v5767 = vpack.c.b16 %v5748, %v5747
    %v5768 = vpack.c.b16 %v5750, %v5749
    %v5769 = vpack.c.b16 %v5752, %v5751
    %v5770 = vpack.c.b16 %v5754, %v5753
    %v5771 = vpack.c.b16 %v5756, %v5755
    %v5772 = vpack.c.b16 %v5758, %v5757
    %v5773 = vpack.c.b16 %v5760, %v5759
    %v5774 = vpack.c.b16 %v5762, %v5761
    %v5788 = vsel %vm2859, %v5675, 0
    %v5791 = vsel %vm2859, %v5677, 0
    %v5794 = vsel %vm2859, %v5679, 0
    %v5797 = vsel %vm2859, %v5681, 0
    %v5800 = vsel %vm2859, %v5683, 0
    %v5803 = vsel %vm2859, %v5685, 0
    %v5806 = vsel %vm2859, %v5687, 0
    %v5809 = vsel %vm2859, %v5689, 0
    %5811 = vmatprep.subr.bf16.mxu0 0
    %5812 = vmatpush1.bf16.msra.mxu0 %v5763
    %5813 = vmatprep.subr.bf16.mxu0 0
    %5814 = vmatpush1.bf16.msra.mxu0 %v5764
    %5815 = vmatprep.subr.bf16.mxu0 0
    %5816 = vmatpush1.bf16.msra.mxu0 %v5765
    %5817 = vmatprep.subr.bf16.mxu0 0
    %5818 = vmatpush1.bf16.msra.mxu0 %v5766
    %5819 = vmatprep.subr.bf16.mxu0 0
    %5820 = vmatpush1.bf16.msra.mxu0 %v5767
    %5821 = vmatprep.subr.bf16.mxu0 0
    %5822 = vmatpush1.bf16.msra.mxu0 %v5768
    %5823 = vmatprep.subr.bf16.mxu0 0
    %5824 = vmatpush1.bf16.msra.mxu0 %v5769
    %5825 = vmatprep.subr.bf16.mxu0 0
    %5826 = vmatpush1.bf16.msra.mxu0 %v5770
    %5827 = vmatprep.subr.bf16.mxu0 0
    %5828 = vmatpush1.bf16.msra.mxu0 %v5771
    %5829 = vmatprep.subr.bf16.mxu0 0
    %5830 = vmatpush1.bf16.msra.mxu0 %v5772
    %5831 = vmatprep.subr.bf16.mxu0 0
    %5832 = vmatpush1.bf16.msra.mxu0 %v5773
    %5833 = vmatprep.subr.bf16.mxu0 0
    %5834 = vmatpush1.bf16.msra.mxu0 %v5774
    %5835 = vmatprep.subr.bf16.mxu0 0
    %5836 = vmatpush1.bf16.msra.mxu0 0
    %5837 = vmatprep.subr.bf16.mxu0 0
    %5838 = vmatpush1.bf16.msra.mxu0 0
    %5839 = vmatprep.subr.bf16.mxu0 0
    %5840 = vmatpush1.bf16.msra.mxu0 0
    %5841 = vmatprep.subr.bf16.mxu0 0
    %5842 = vmatpush1.bf16.msra.mxu0 0
    %5843 = vmatprep.mubr.bf16.mxu0 %v5788
    %5844 = vmatmul.mubr.bf16.gmra.mrb[0].mxu0 %v5674
    %v5845 = vpop.f32.mrb[0].mxu0
    %v5846 = vadd.f32 0.0, %v5845
    %v5847 = vpop.f32.mrb[0].mxu0
    %v5848 = vpop.f32.mrb[0].mxu0
    %v5849 = vadd.f32 0.0, %v5848
    %v5850 = vpop.f32.mrb[0].mxu0
    %5851 = vmatprep.mubr.bf16.mxu0 %v5791
    %5852 = vmatmul.mubr.bf16.gmra.mrb[0].mxu0 %v5676
    %v5853 = vpop.f32.mrb[0].mxu0
    %v5854 = vadd.f32 0.0, %v5853
    %v5855 = vpop.f32.mrb[0].mxu0
    %v5856 = vpop.f32.mrb[0].mxu0
    %v5857 = vadd.f32 0.0, %v5856
    %v5858 = vpop.f32.mrb[0].mxu0
    %5859 = vmatprep.mubr.bf16.mxu0 %v5794
    %5860 = vmatmul.mubr.bf16.gmra.mrb[0].mxu0 %v5678
    %v5861 = vpop.f32.mrb[0].mxu0
    %v5862 = vadd.f32 0.0, %v5861
    %v5863 = vpop.f32.mrb[0].mxu0
    %v5864 = vpop.f32.mrb[0].mxu0
    %v5865 = vadd.f32 0.0, %v5864
    %v5866 = vpop.f32.mrb[0].mxu0
    %5867 = vmatprep.mubr.bf16.mxu0 %v5797
    %5868 = vmatmul.mubr.bf16.gmra.mrb[0].mxu0 %v5680
    %v5869 = vpop.f32.mrb[0].mxu0
    %v5870 = vadd.f32 0.0, %v5869
    %v5871 = vpop.f32.mrb[0].mxu0
    %v5872 = vpop.f32.mrb[0].mxu0
    %v5873 = vadd.f32 0.0, %v5872
    %v5874 = vpop.f32.mrb[0].mxu0
    %5875 = vmatprep.mubr.bf16.mxu0 %v5800
    %5876 = vmatmul.mubr.bf16.gmra.mrb[0].mxu0 %v5682
    %v5877 = vpop.f32.mrb[0].mxu0
    %v5878 = vadd.f32 0.0, %v5877
    %v5879 = vpop.f32.mrb[0].mxu0
    %v5880 = vpop.f32.mrb[0].mxu0
    %v5881 = vadd.f32 0.0, %v5880
    %v5882 = vpop.f32.mrb[0].mxu0
    %5883 = vmatprep.mubr.bf16.mxu0 %v5803
    %5884 = vmatmul.mubr.bf16.gmra.mrb[0].mxu0 %v5684
    %v5885 = vpop.f32.mrb[0].mxu0
    %v5886 = vadd.f32 0.0, %v5885
    %v5887 = vpop.f32.mrb[0].mxu0
    %v5888 = vpop.f32.mrb[0].mxu0
    %v5889 = vadd.f32 0.0, %v5888
    %v5890 = vpop.f32.mrb[0].mxu0
    %5891 = vmatprep.mubr.bf16.mxu0 %v5806
    %5892 = vmatmul.mubr.bf16.gmra.mrb[0].mxu0 %v5686
    %v5893 = vpop.f32.mrb[0].mxu0
    %v5894 = vadd.f32 0.0, %v5893
    %v5895 = vpop.f32.mrb[0].mxu0
    %v5896 = vpop.f32.mrb[0].mxu0
    %v5897 = vadd.f32 0.0, %v5896
    %v5898 = vpop.f32.mrb[0].mxu0
    %5899 = vmatprep.mubr.bf16.mxu0 %v5809
    %5900 = vmatmul.mubr.bf16.gmra.mrb[0].mxu0 %v5688
    %v5901 = vpop.f32.mrb[0].mxu0
    %v5902 = vadd.f32 0.0, %v5901
    %v5903 = vpop.f32.mrb[0].mxu0
    %v5904 = vpop.f32.mrb[0].mxu0
    %v5905 = vadd.f32 0.0, %v5904
    %v5906 = vpop.f32.mrb[0].mxu0
    %5907 = vdwg.mxu0
    %v5908 = vadd.f32 %v5231, %v5846
    %v5909 = vadd.f32 %v5232, %v5849
    %v5910 = vadd.f32 %v5233, %v5854
    %v5911 = vadd.f32 %v5234, %v5857
    %v5912 = vadd.f32 %v5235, %v5862
    %v5913 = vadd.f32 %v5236, %v5865
    %v5914 = vadd.f32 %v5237, %v5870
    %v5915 = vadd.f32 %v5238, %v5873
    %v5916 = vadd.f32 %v5239, %v5878
    %v5917 = vadd.f32 %v5240, %v5881
    %v5918 = vadd.f32 %v5241, %v5886
    %v5919 = vadd.f32 %v5242, %v5889
    %v5920 = vadd.f32 %v5243, %v5894
    %v5921 = vadd.f32 %v5244, %v5897
    %v5922 = vadd.f32 %v5245, %v5902
    %v5923 = vadd.f32 %v5246, %v5905
    %v5925 = vsel %vm3353, %v2543, 0
    %v5928 = vsel %vm3353, %v2552, 0
    %v5931 = vsel %vm3353, %v2561, 0
    %v5934 = vsel %vm3353, %v2570, 0
    %v5937 = vsel %vm3353, %v2579, 0
    %v5940 = vsel %vm3353, %v2588, 0
    %v5943 = vsel %vm3353, %v2597, 0
    %v5946 = vsel %vm3353, %v2606, 0
    %5948 = vmatprep.subr.bf16.mxu0 %v3234
    %5949 = vmatpush1.bf16.msra.mxu0 %v3233
    %5950 = vmatprep.subr.bf16.mxu0 %v3236
    %5951 = vmatpush1.bf16.msra.mxu0 %v3235
    %5952 = vmatprep.subr.bf16.mxu0 %v3238
    %5953 = vmatpush1.bf16.msra.mxu0 %v3237
    %5954 = vmatprep.subr.bf16.mxu0 %v3240
    %5955 = vmatpush1.bf16.msra.mxu0 %v3239
    %5956 = vmatprep.subr.bf16.mxu0 %v3242
    %5957 = vmatpush1.bf16.msra.mxu0 %v3241
    %5958 = vmatprep.subr.bf16.mxu0 %v3244
    %5959 = vmatpush1.bf16.msra.mxu0 %v3243
    %5960 = vmatprep.subr.bf16.mxu0 %v3246
    %5961 = vmatpush1.bf16.msra.mxu0 %v3245
    %5962 = vmatprep.subr.bf16.mxu0 %v3248
    %5963 = vmatpush1.bf16.msra.mxu0 %v3247
    %5964 = vmatprep.subr.bf16.mxu0 %v3250
    %5965 = vmatpush1.bf16.msra.mxu0 %v3249
    %5966 = vmatprep.subr.bf16.mxu0 %v3252
    %5967 = vmatpush1.bf16.msra.mxu0 %v3251
    %5968 = vmatprep.subr.bf16.mxu0 %v3254
    %5969 = vmatpush1.bf16.msra.mxu0 %v3253
    %5970 = vmatprep.subr.bf16.mxu0 %v3256
    %5971 = vmatpush1.bf16.msra.mxu0 %v3255
    %5972 = vmatprep.subr.bf16.mxu0 %v3258
    %5973 = vmatpush1.bf16.msra.mxu0 %v3257
    %5974 = vmatprep.subr.bf16.mxu0 %v3260
    %5975 = vmatpush1.bf16.msra.mxu0 %v3259
    %5976 = vmatprep.subr.bf16.mxu0 %v3262
    %5977 = vmatpush1.bf16.msra.mxu0 %v3261
    %5978 = vmatprep.subr.bf16.mxu0 %v3264
    %5979 = vmatpush1.bf16.msra.mxu0 %v3263
    %5980 = vmatprep.mubr.bf16.mxu0 %v2541
    %5981 = vmatmul.mubr.bf16.gmra.mrb[0].mxu0 %v2540
    %v5982 = vpop.f32.mrb[0].mxu0
    %v5983 = vadd.f32 %v3046, %v5982
    %v5984 = vpop.f32.mrb[0].mxu0
    %v5985 = vadd.f32 %v3050, %v5984
    %v5986 = vpop.f32.mrb[0].mxu0
    %v5987 = vadd.f32 %v3046, %v5986
    %v5988 = vpop.f32.mrb[0].mxu0
    %v5989 = vadd.f32 %v3050, %v5988
    %5990 = vmatprep.mubr.bf16.mxu0 %v2550
    %5991 = vmatmul.mubr.bf16.gmra.mrb[0].mxu0 %v2549
    %v5992 = vpop.f32.mrb[0].mxu0
    %v5993 = vadd.f32 %v3046, %v5992
    %v5994 = vpop.f32.mrb[0].mxu0
    %v5995 = vadd.f32 %v3050, %v5994
    %v5996 = vpop.f32.mrb[0].mxu0
    %v5997 = vadd.f32 %v3046, %v5996
    %v5998 = vpop.f32.mrb[0].mxu0
    %v5999 = vadd.f32 %v3050, %v5998
    %6000 = vmatprep.mubr.bf16.mxu0 %v2559
    %6001 = vmatmul.mubr.bf16.gmra.mrb[0].mxu0 %v2558
    %v6002 = vpop.f32.mrb[0].mxu0
    %v6003 = vadd.f32 %v3046, %v6002
    %v6004 = vpop.f32.mrb[0].mxu0
    %v6005 = vadd.f32 %v3050, %v6004
    %v6006 = vpop.f32.mrb[0].mxu0
    %v6007 = vadd.f32 %v3046, %v6006
    %v6008 = vpop.f32.mrb[0].mxu0
    %v6009 = vadd.f32 %v3050, %v6008
    %6010 = vmatprep.mubr.bf16.mxu0 %v2568
    %6011 = vmatmul.mubr.bf16.gmra.mrb[0].mxu0 %v2567
    %v6012 = vpop.f32.mrb[0].mxu0
    %v6013 = vadd.f32 %v3046, %v6012
    %v6014 = vpop.f32.mrb[0].mxu0
    %v6015 = vadd.f32 %v3050, %v6014
    %v6016 = vpop.f32.mrb[0].mxu0
    %v6017 = vadd.f32 %v3046, %v6016
    %v6018 = vpop.f32.mrb[0].mxu0
    %v6019 = vadd.f32 %v3050, %v6018
    %6020 = vmatprep.mubr.bf16.mxu0 %v2577
    %6021 = vmatmul.mubr.bf16.gmra.mrb[0].mxu0 %v2576
    %v6022 = vpop.f32.mrb[0].mxu0
    %v6023 = vadd.f32 %v3046, %v6022
    %v6024 = vpop.f32.mrb[0].mxu0
    %v6025 = vadd.f32 %v3050, %v6024
    %v6026 = vpop.f32.mrb[0].mxu0
    %v6027 = vadd.f32 %v3046, %v6026
    %v6028 = vpop.f32.mrb[0].mxu0
    %v6029 = vadd.f32 %v3050, %v6028
    %6030 = vmatprep.mubr.bf16.mxu0 %v2586
    %6031 = vmatmul.mubr.bf16.gmra.mrb[0].mxu0 %v2585
    %v6032 = vpop.f32.mrb[0].mxu0
    %v6033 = vadd.f32 %v3046, %v6032
    %v6034 = vpop.f32.mrb[0].mxu0
    %v6035 = vadd.f32 %v3050, %v6034
    %v6036 = vpop.f32.mrb[0].mxu0
    %v6037 = vadd.f32 %v3046, %v6036
    %v6038 = vpop.f32.mrb[0].mxu0
    %v6039 = vadd.f32 %v3050, %v6038
    %6040 = vmatprep.mubr.bf16.mxu0 %v2595
    %6041 = vmatmul.mubr.bf16.gmra.mrb[0].mxu0 %v2594
    %v6042 = vpop.f32.mrb[0].mxu0
    %v6043 = vadd.f32 %v3046, %v6042
    %v6044 = vpop.f32.mrb[0].mxu0
    %v6045 = vadd.f32 %v3050, %v6044
    %v6046 = vpop.f32.mrb[0].mxu0
    %v6047 = vadd.f32 %v3046, %v6046
    %v6048 = vpop.f32.mrb[0].mxu0
    %v6049 = vadd.f32 %v3050, %v6048
    %6050 = vmatprep.mubr.bf16.mxu0 %v2604
    %6051 = vmatmul.mubr.bf16.gmra.mrb[0].mxu0 %v2603
    %v6052 = vpop.f32.mrb[0].mxu0
    %v6053 = vadd.f32 %v3046, %v6052
    %v6054 = vpop.f32.mrb[0].mxu0
    %v6055 = vadd.f32 %v3050, %v6054
    %v6056 = vpop.f32.mrb[0].mxu0
    %v6057 = vadd.f32 %v3046, %v6056
    %v6058 = vpop.f32.mrb[0].mxu0
    %v6059 = vadd.f32 %v3050, %v6058
    %6060 = vdwg.mxu0
    %6061 = vmatprep.subr.bf16.mxu0 %v3266
    %6062 = vmatpush1.bf16.msra.mxu0 %v3265
    %6063 = vmatprep.subr.bf16.mxu0 %v3268
    %6064 = vmatpush1.bf16.msra.mxu0 %v3267
    %6065 = vmatprep.subr.bf16.mxu0 %v3270
    %6066 = vmatpush1.bf16.msra.mxu0 %v3269
    %6067 = vmatprep.subr.bf16.mxu0 %v3272
    %6068 = vmatpush1.bf16.msra.mxu0 %v3271
    %6069 = vmatprep.subr.bf16.mxu0 %v3274
    %6070 = vmatpush1.bf16.msra.mxu0 %v3273
    %6071 = vmatprep.subr.bf16.mxu0 %v3276
    %6072 = vmatpush1.bf16.msra.mxu0 %v3275
    %6073 = vmatprep.subr.bf16.mxu0 %v3278
    %6074 = vmatpush1.bf16.msra.mxu0 %v3277
    %6075 = vmatprep.subr.bf16.mxu0 %v3280
    %6076 = vmatpush1.bf16.msra.mxu0 %v3279
    %6077 = vmatprep.subr.bf16.mxu0 %v3282
    %6078 = vmatpush1.bf16.msra.mxu0 %v3281
    %6079 = vmatprep.subr.bf16.mxu0 %v3284
    %6080 = vmatpush1.bf16.msra.mxu0 %v3283
    %6081 = vmatprep.subr.bf16.mxu0 %v3286
    %6082 = vmatpush1.bf16.msra.mxu0 %v3285
    %6083 = vmatprep.subr.bf16.mxu0 %v3288
    %6084 = vmatpush1.bf16.msra.mxu0 %v3287
    %6085 = vmatprep.subr.bf16.mxu0 %v3290
    %6086 = vmatpush1.bf16.msra.mxu0 %v3289
    %6087 = vmatprep.subr.bf16.mxu0 %v3292
    %6088 = vmatpush1.bf16.msra.mxu0 %v3291
    %6089 = vmatprep.subr.bf16.mxu0 0
    %6090 = vmatpush1.bf16.msra.mxu0 0
    %6091 = vmatprep.subr.bf16.mxu0 0
    %6092 = vmatpush1.bf16.msra.mxu0 0
    %6093 = vmatprep.mubr.bf16.mxu0 %v5925
    %6094 = vmatmul.mubr.bf16.gmra.mrb[0].mxu0 %v2542
    %v6095 = vpop.f32.mrb[0].mxu0
    %v6096 = vadd.f32 %v5983, %v6095
    %v6097 = vpop.f32.mrb[0].mxu0
    %v6098 = vadd.f32 %v5985, %v6097
    %v6099 = vpop.f32.mrb[0].mxu0
    %v6100 = vadd.f32 %v5987, %v6099
    %v6101 = vpop.f32.mrb[0].mxu0
    %v6102 = vadd.f32 %v5989, %v6101
    %6103 = vmatprep.mubr.bf16.mxu0 %v5928
    %6104 = vmatmul.mubr.bf16.gmra.mrb[0].mxu0 %v2551
    %v6105 = vpop.f32.mrb[0].mxu0
    %v6106 = vadd.f32 %v5993, %v6105
    %v6107 = vpop.f32.mrb[0].mxu0
    %v6108 = vadd.f32 %v5995, %v6107
    %v6109 = vpop.f32.mrb[0].mxu0
    %v6110 = vadd.f32 %v5997, %v6109
    %v6111 = vpop.f32.mrb[0].mxu0
    %v6112 = vadd.f32 %v5999, %v6111
    %6113 = vmatprep.mubr.bf16.mxu0 %v5931
    %6114 = vmatmul.mubr.bf16.gmra.mrb[0].mxu0 %v2560
    %v6115 = vpop.f32.mrb[0].mxu0
    %v6116 = vadd.f32 %v6003, %v6115
    %v6117 = vpop.f32.mrb[0].mxu0
    %v6118 = vadd.f32 %v6005, %v6117
    %v6119 = vpop.f32.mrb[0].mxu0
    %v6120 = vadd.f32 %v6007, %v6119
    %v6121 = vpop.f32.mrb[0].mxu0
    %v6122 = vadd.f32 %v6009, %v6121
    %6123 = vmatprep.mubr.bf16.mxu0 %v5934
    %6124 = vmatmul.mubr.bf16.gmra.mrb[0].mxu0 %v2569
    %v6125 = vpop.f32.mrb[0].mxu0
    %v6126 = vadd.f32 %v6013, %v6125
    %v6127 = vpop.f32.mrb[0].mxu0
    %v6128 = vadd.f32 %v6015, %v6127
    %v6129 = vpop.f32.mrb[0].mxu0
    %v6130 = vadd.f32 %v6017, %v6129
    %v6131 = vpop.f32.mrb[0].mxu0
    %v6132 = vadd.f32 %v6019, %v6131
    %6133 = vmatprep.mubr.bf16.mxu0 %v5937
    %6134 = vmatmul.mubr.bf16.gmra.mrb[0].mxu0 %v2578
    %v6135 = vpop.f32.mrb[0].mxu0
    %v6136 = vadd.f32 %v6023, %v6135
    %v6137 = vpop.f32.mrb[0].mxu0
    %v6138 = vadd.f32 %v6025, %v6137
    %v6139 = vpop.f32.mrb[0].mxu0
    %v6140 = vadd.f32 %v6027, %v6139
    %v6141 = vpop.f32.mrb[0].mxu0
    %v6142 = vadd.f32 %v6029, %v6141
    %6143 = vmatprep.mubr.bf16.mxu0 %v5940
    %6144 = vmatmul.mubr.bf16.gmra.mrb[0].mxu0 %v2587
    %v6145 = vpop.f32.mrb[0].mxu0
    %v6146 = vadd.f32 %v6033, %v6145
    %v6147 = vpop.f32.mrb[0].mxu0
    %v6148 = vadd.f32 %v6035, %v6147
    %v6149 = vpop.f32.mrb[0].mxu0
    %v6150 = vadd.f32 %v6037, %v6149
    %v6151 = vpop.f32.mrb[0].mxu0
    %v6152 = vadd.f32 %v6039, %v6151
    %6153 = vmatprep.mubr.bf16.mxu0 %v5943
    %6154 = vmatmul.mubr.bf16.gmra.mrb[0].mxu0 %v2596
    %v6155 = vpop.f32.mrb[0].mxu0
    %v6156 = vadd.f32 %v6043, %v6155
    %v6157 = vpop.f32.mrb[0].mxu0
    %v6158 = vadd.f32 %v6045, %v6157
    %v6159 = vpop.f32.mrb[0].mxu0
    %v6160 = vadd.f32 %v6047, %v6159
    %v6161 = vpop.f32.mrb[0].mxu0
    %v6162 = vadd.f32 %v6049, %v6161
    %6163 = vmatprep.mubr.bf16.mxu0 %v5946
    %6164 = vmatmul.mubr.bf16.gmra.mrb[0].mxu0 %v2605
    %v6165 = vpop.f32.mrb[0].mxu0
    %v6166 = vadd.f32 %v6053, %v6165
    %v6167 = vpop.f32.mrb[0].mxu0
    %v6168 = vadd.f32 %v6055, %v6167
    %v6169 = vpop.f32.mrb[0].mxu0
    %v6170 = vadd.f32 %v6057, %v6169
    %v6171 = vpop.f32.mrb[0].mxu0
    %v6172 = vadd.f32 %v6059, %v6171
    %6173 = vdwg.mxu0
    %v6174 = vmax.f32 %v6096, 0.0
    %v6175 = vmax.f32 %v6098, 0.0
    %v6176 = vmax.f32 %v6100, 0.0
    %v6177 = vmax.f32 %v6102, 0.0
    %v6178 = vmax.f32 %v6106, 0.0
    %v6179 = vmax.f32 %v6108, 0.0
    %v6180 = vmax.f32 %v6110, 0.0
    %v6181 = vmax.f32 %v6112, 0.0
    %v6182 = vmax.f32 %v6116, 0.0
    %v6183 = vmax.f32 %v6118, 0.0
    %v6184 = vmax.f32 %v6120, 0.0
    %v6185 = vmax.f32 %v6122, 0.0
    %v6186 = vmax.f32 %v6126, 0.0
    %v6187 = vmax.f32 %v6128, 0.0
    %v6188 = vmax.f32 %v6130, 0.0
    %v6189 = vmax.f32 %v6132, 0.0
    %v6190 = vmax.f32 %v6136, 0.0
    %v6191 = vmax.f32 %v6138, 0.0
    %v6192 = vmax.f32 %v6140, 0.0
    %v6193 = vmax.f32 %v6142, 0.0
    %v6194 = vmax.f32 %v6146, 0.0
    %v6195 = vmax.f32 %v6148, 0.0
    %v6196 = vmax.f32 %v6150, 0.0
    %v6197 = vmax.f32 %v6152, 0.0
    %v6198 = vmax.f32 %v6156, 0.0
    %v6199 = vmax.f32 %v6158, 0.0
    %v6200 = vmax.f32 %v6160, 0.0
    %v6201 = vmax.f32 %v6162, 0.0
    %v6202 = vmax.f32 %v6166, 0.0
    %v6203 = vmax.f32 %v6168, 0.0
    %v6204 = vmax.f32 %v6170, 0.0
    %v6205 = vmax.f32 %v6172, 0.0
    %v6206 = vpack.c.bf16 %v6176, %v6174
    %v6207 = vpack.c.bf16 %v6177, %v6175
    %v6208 = vpack.c.bf16 %v6180, %v6178
    %v6209 = vpack.c.bf16 %v6181, %v6179
    %v6210 = vpack.c.bf16 %v6184, %v6182
    %v6211 = vpack.c.bf16 %v6185, %v6183
    %v6212 = vpack.c.bf16 %v6188, %v6186
    %v6213 = vpack.c.bf16 %v6189, %v6187
    %v6214 = vpack.c.bf16 %v6192, %v6190
    %v6215 = vpack.c.bf16 %v6193, %v6191
    %v6216 = vpack.c.bf16 %v6196, %v6194
    %v6217 = vpack.c.bf16 %v6197, %v6195
    %v6218 = vpack.c.bf16 %v6200, %v6198
    %v6219 = vpack.c.bf16 %v6201, %v6199
    %v6220 = vpack.c.bf16 %v6204, %v6202
    %v6221 = vpack.c.bf16 %v6205, %v6203
    %s6222 = scalar_lea.vmem [#allocation2], 384
    %v6223 = vld [vmem:[%s6222] sm:$0xf]
    %v6224 = vld [vmem:[%s6222 + $0x4] sm:$0xf]
    %v6225 = vld [vmem:[%s6222 + $0x8] sm:$0xf]
    %v6226 = vld [vmem:[%s6222 + $0xc] sm:$0xf]
    %v6227 = vld [vmem:[%s6222 + $0x10] sm:$0xf]
    %v6228 = vld [vmem:[%s6222 + $0x14] sm:$0xf]
    %v6229 = vld [vmem:[%s6222 + $0x18] sm:$0xf]
    %v6230 = vld [vmem:[%s6222 + $0x1c] sm:$0xf]
    %v6231 = vld [vmem:[%s6222 + $0x20] sm:$0xf]
    %v6232 = vld [vmem:[%s6222 + $0x24] sm:$0xf]
    %v6233 = vld [vmem:[%s6222 + $0x28] sm:$0xf]
    %v6234 = vld [vmem:[%s6222 + $0x2c] sm:$0xf]
    %v6235 = vld [vmem:[%s6222 + $0x30] sm:$0xf]
    %v6236 = vld [vmem:[%s6222 + $0x34] sm:$0xf]
    %v6237 = vld [vmem:[%s6222 + $0x38] sm:$0xf]
    %v6238 = vld [vmem:[%s6222 + $0x3c] sm:$0xf]
    %v6239 = vld [vmem:[%s6222 + $0x40] sm:$0xf]
    %v6240 = vld [vmem:[%s6222 + $0x44] sm:$0xf]
    %v6241 = vld [vmem:[%s6222 + $0x48] sm:$0xf]
    %v6242 = vld [vmem:[%s6222 + $0x4c] sm:$0xf]
    %v6243 = vld [vmem:[%s6222 + $0x50] sm:$0xf]
    %v6244 = vld [vmem:[%s6222 + $0x54] sm:$0xf]
    %v6245 = vld [vmem:[%s6222 + $0x58] sm:$0xf]
    %v6246 = vld [vmem:[%s6222 + $0x5c] sm:$0xf]
    %v6271 = vunpack.c.l.b16 %v6223
    %v6272 = vunpack.c.l.b16 %v6224
    %v6273 = vunpack.c.l.b16 %v6225
    %v6274 = vunpack.c.l.b16 %v6226
    %v6275 = vunpack.c.l.b16 %v6227
    %v6276 = vunpack.c.l.b16 %v6228
    %v6277 = vunpack.c.l.b16 %v6229
    %v6278 = vunpack.c.l.b16 %v6230
    %v6279 = vunpack.c.l.b16 %v6231
    %v6280 = vunpack.c.l.b16 %v6232
    %v6281 = vunpack.c.l.b16 %v6233
    %v6282 = vunpack.c.l.b16 %v6234
    %v6283 = vunpack.c.l.b16 %v6235
    %v6284 = vunpack.c.l.b16 %v6236
    %v6285 = vunpack.c.l.b16 %v6237
    %v6286 = vunpack.c.l.b16 %v6238
    %v6287 = vunpack.c.l.b16 %v6239
    %v6288 = vunpack.c.l.b16 %v6240
    %v6289 = vunpack.c.l.b16 %v6241
    %v6290 = vunpack.c.l.b16 %v6242
    %v6291 = vunpack.c.l.b16 %v6243
    %v6292 = vunpack.c.l.b16 %v6244
    %v6293 = vunpack.c.l.b16 %v6245
    %v6294 = vunpack.c.l.b16 %v6246
    %v6295 = vpack.c.b16 %v6272, %v6271
    %v6296 = vpack.c.b16 %v6274, %v6273
    %v6297 = vpack.c.b16 %v6276, %v6275
    %v6298 = vpack.c.b16 %v6278, %v6277
    %v6299 = vpack.c.b16 %v6280, %v6279
    %v6300 = vpack.c.b16 %v6282, %v6281
    %v6301 = vpack.c.b16 %v6284, %v6283
    %v6302 = vpack.c.b16 %v6286, %v6285
    %v6303 = vpack.c.b16 %v6288, %v6287
    %v6304 = vpack.c.b16 %v6290, %v6289
    %v6305 = vpack.c.b16 %v6292, %v6291
    %v6306 = vpack.c.b16 %v6294, %v6293
    %v6320 = vsel %vm2859, %v6207, 0
    %v6323 = vsel %vm2859, %v6209, 0
    %v6326 = vsel %vm2859, %v6211, 0
    %v6329 = vsel %vm2859, %v6213, 0
    %v6332 = vsel %vm2859, %v6215, 0
    %v6335 = vsel %vm2859, %v6217, 0
    %v6338 = vsel %vm2859, %v6219, 0
    %v6341 = vsel %vm2859, %v6221, 0
    %6343 = vmatprep.subr.bf16.mxu0 0
    %6344 = vmatpush1.bf16.msra.mxu0 %v6295
    %6345 = vmatprep.subr.bf16.mxu0 0
    %6346 = vmatpush1.bf16.msra.mxu0 %v6296
    %6347 = vmatprep.subr.bf16.mxu0 0
    %6348 = vmatpush1.bf16.msra.mxu0 %v6297
    %6349 = vmatprep.subr.bf16.mxu0 0
    %6350 = vmatpush1.bf16.msra.mxu0 %v6298
    %6351 = vmatprep.subr.bf16.mxu0 0
    %6352 = vmatpush1.bf16.msra.mxu0 %v6299
    %6353 = vmatprep.subr.bf16.mxu0 0
    %6354 = vmatpush1.bf16.msra.mxu0 %v6300
    %6355 = vmatprep.subr.bf16.mxu0 0
    %6356 = vmatpush1.bf16.msra.mxu0 %v6301
    %6357 = vmatprep.subr.bf16.mxu0 0
    %6358 = vmatpush1.bf16.msra.mxu0 %v6302
    %6359 = vmatprep.subr.bf16.mxu0 0
    %6360 = vmatpush1.bf16.msra.mxu0 %v6303
    %6361 = vmatprep.subr.bf16.mxu0 0
    %6362 = vmatpush1.bf16.msra.mxu0 %v6304
    %6363 = vmatprep.subr.bf16.mxu0 0
    %6364 = vmatpush1.bf16.msra.mxu0 %v6305
    %6365 = vmatprep.subr.bf16.mxu0 0
    %6366 = vmatpush1.bf16.msra.mxu0 %v6306
    %6367 = vmatprep.subr.bf16.mxu0 0
    %6368 = vmatpush1.bf16.msra.mxu0 0
    %6369 = vmatprep.subr.bf16.mxu0 0
    %6370 = vmatpush1.bf16.msra.mxu0 0
    %6371 = vmatprep.subr.bf16.mxu0 0
    %6372 = vmatpush1.bf16.msra.mxu0 0
    %6373 = vmatprep.subr.bf16.mxu0 0
    %6374 = vmatpush1.bf16.msra.mxu0 0
    %6375 = vmatprep.mubr.bf16.mxu0 %v6320
    %6376 = vmatmul.mubr.bf16.gmra.mrb[0].mxu0 %v6206
    %v6377 = vpop.f32.mrb[0].mxu0
    %v6378 = vadd.f32 0.0, %v6377
    %v6379 = vpop.f32.mrb[0].mxu0
    %v6380 = vpop.f32.mrb[0].mxu0
    %v6381 = vadd.f32 0.0, %v6380
    %v6382 = vpop.f32.mrb[0].mxu0
    %6383 = vmatprep.mubr.bf16.mxu0 %v6323
    %6384 = vmatmul.mubr.bf16.gmra.mrb[0].mxu0 %v6208
    %v6385 = vpop.f32.mrb[0].mxu0
    %v6386 = vadd.f32 0.0, %v6385
    %v6387 = vpop.f32.mrb[0].mxu0
    %v6388 = vpop.f32.mrb[0].mxu0
    %v6389 = vadd.f32 0.0, %v6388
    %v6390 = vpop.f32.mrb[0].mxu0
    %6391 = vmatprep.mubr.bf16.mxu0 %v6326
    %6392 = vmatmul.mubr.bf16.gmra.mrb[0].mxu0 %v6210
    %v6393 = vpop.f32.mrb[0].mxu0
    %v6394 = vadd.f32 0.0, %v6393
    %v6395 = vpop.f32.mrb[0].mxu0
    %v6396 = vpop.f32.mrb[0].mxu0
    %v6397 = vadd.f32 0.0, %v6396
    %v6398 = vpop.f32.mrb[0].mxu0
    %6399 = vmatprep.mubr.bf16.mxu0 %v6329
    %6400 = vmatmul.mubr.bf16.gmra.mrb[0].mxu0 %v6212
    %v6401 = vpop.f32.mrb[0].mxu0
    %v6402 = vadd.f32 0.0, %v6401
    %v6403 = vpop.f32.mrb[0].mxu0
    %v6404 = vpop.f32.mrb[0].mxu0
    %v6405 = vadd.f32 0.0, %v6404
    %v6406 = vpop.f32.mrb[0].mxu0
    %6407 = vmatprep.mubr.bf16.mxu0 %v6332
    %6408 = vmatmul.mubr.bf16.gmra.mrb[0].mxu0 %v6214
    %v6409 = vpop.f32.mrb[0].mxu0
    %v6410 = vadd.f32 0.0, %v6409
    %v6411 = vpop.f32.mrb[0].mxu0
    %v6412 = vpop.f32.mrb[0].mxu0
    %v6413 = vadd.f32 0.0, %v6412
    %v6414 = vpop.f32.mrb[0].mxu0
    %6415 = vmatprep.mubr.bf16.mxu0 %v6335
    %6416 = vmatmul.mubr.bf16.gmra.mrb[0].mxu0 %v6216
    %v6417 = vpop.f32.mrb[0].mxu0
    %v6418 = vadd.f32 0.0, %v6417
    %v6419 = vpop.f32.mrb[0].mxu0
    %v6420 = vpop.f32.mrb[0].mxu0
    %v6421 = vadd.f32 0.0, %v6420
    %v6422 = vpop.f32.mrb[0].mxu0
    %6423 = vmatprep.mubr.bf16.mxu0 %v6338
    %6424 = vmatmul.mubr.bf16.gmra.mrb[0].mxu0 %v6218
    %v6425 = vpop.f32.mrb[0].mxu0
    %v6426 = vadd.f32 0.0, %v6425
    %v6427 = vpop.f32.mrb[0].mxu0
    %v6428 = vpop.f32.mrb[0].mxu0
    %v6429 = vadd.f32 0.0, %v6428
    %v6430 = vpop.f32.mrb[0].mxu0
    %6431 = vmatprep.mubr.bf16.mxu0 %v6341
    %6432 = vmatmul.mubr.bf16.gmra.mrb[0].mxu0 %v6220
    %v6433 = vpop.f32.mrb[0].mxu0
    %v6434 = vadd.f32 0.0, %v6433
    %v6435 = vpop.f32.mrb[0].mxu0
    %v6436 = vpop.f32.mrb[0].mxu0
    %v6437 = vadd.f32 0.0, %v6436
    %v6438 = vpop.f32.mrb[0].mxu0
    %6439 = vdwg.mxu0
    %v6440 = vadd.f32 %v5908, %v6378
    %v6441 = vadd.f32 %v5909, %v6381
    %v6442 = vadd.f32 %v5910, %v6386
    %v6443 = vadd.f32 %v5911, %v6389
    %v6444 = vadd.f32 %v5912, %v6394
    %v6445 = vadd.f32 %v5913, %v6397
    %v6446 = vadd.f32 %v5914, %v6402
    %v6447 = vadd.f32 %v5915, %v6405
    %v6448 = vadd.f32 %v5916, %v6410
    %v6449 = vadd.f32 %v5917, %v6413
    %v6450 = vadd.f32 %v5918, %v6418
    %v6451 = vadd.f32 %v5919, %v6421
    %v6452 = vadd.f32 %v5920, %v6426
    %v6453 = vadd.f32 %v5921, %v6429
    %v6454 = vadd.f32 %v5922, %v6434
    %v6455 = vadd.f32 %v5923, %v6437
    %v6456 = vmax.f32 %v6440, 0.0
    %v6457 = vmax.f32 %v6441, 0.0
    %v6458 = vmax.f32 %v6442, 0.0
    %v6459 = vmax.f32 %v6443, 0.0
    %v6460 = vmax.f32 %v6444, 0.0
    %v6461 = vmax.f32 %v6445, 0.0
    %v6462 = vmax.f32 %v6446, 0.0
    %v6463 = vmax.f32 %v6447, 0.0
    %v6464 = vmax.f32 %v6448, 0.0
    %v6465 = vmax.f32 %v6449, 0.0
    %v6466 = vmax.f32 %v6450, 0.0
    %v6467 = vmax.f32 %v6451, 0.0
    %v6468 = vmax.f32 %v6452, 0.0
    %v6469 = vmax.f32 %v6453, 0.0
    %v6470 = vmax.f32 %v6454, 0.0
    %v6471 = vmax.f32 %v6455, 0.0
    %v6472 = vpack.c.bf16 %v6457, %v6456
    %v6473 = vpack.c.bf16 %v6459, %v6458
    %v6474 = vpack.c.bf16 %v6461, %v6460
    %v6475 = vpack.c.bf16 %v6463, %v6462
    %v6476 = vpack.c.bf16 %v6465, %v6464
    %v6477 = vpack.c.bf16 %v6467, %v6466
    %v6478 = vpack.c.bf16 %v6469, %v6468
    %v6479 = vpack.c.bf16 %v6471, %v6470
    %v6480 = vld [vmem:[%s11] sm:$0xf]
    %v6481 = vld [vmem:[%s11 + $0x4] sm:$0xf]
    %v6482 = vld [vmem:[%s11 + $0x8] sm:$0xf]
    %v6483 = vld [vmem:[%s11 + $0xc] sm:$0xf]
    %v6484 = vld [vmem:[%s11 + $0x10] sm:$0xf]
    %v6485 = vld [vmem:[%s11 + $0x14] sm:$0xf]
    %v6486 = vld [vmem:[%s11 + $0x18] sm:$0xf]
    %v6487 = vld [vmem:[%s11 + $0x1c] sm:$0xf]
    %v6488 = vld [vmem:[%s11 + $0x20] sm:$0xf]
    %v6489 = vld [vmem:[%s11 + $0x24] sm:$0xf]
    %v6490 = vld [vmem:[%s11 + $0x28] sm:$0xf]
    %v6491 = vld [vmem:[%s11 + $0x2c] sm:$0xf]
    %v6492 = vld [vmem:[%s11 + $0x30] sm:$0xf]
    %v6493 = vld [vmem:[%s11 + $0x34] sm:$0xf]
    %v6494 = vld [vmem:[%s11 + $0x38] sm:$0xf]
    %v6495 = vld [vmem:[%s11 + $0x3c] sm:$0xf]
    %v6496 = vld [vmem:[%s12] sm:$0x1]
    %v6498 = vlaneseq
    %v6499 = vshrl.u32 %v6498, 7
    %v6500 = vsub.s32 0, %v6499
    %v6501 = vrot.slane %v6496, %v6500
    %v6519 = vunpack.c.l.b16 %v6480
    %v6520 = vunpack.c.l.b16 %v6481
    %v6521 = vunpack.c.l.b16 %v6482
    %v6522 = vunpack.c.l.b16 %v6483
    %v6523 = vunpack.c.l.b16 %v6484
    %v6524 = vunpack.c.l.b16 %v6485
    %v6525 = vunpack.c.l.b16 %v6486
    %v6526 = vunpack.c.l.b16 %v6487
    %v6527 = vunpack.c.l.b16 %v6488
    %v6528 = vunpack.c.l.b16 %v6489
    %v6529 = vunpack.c.l.b16 %v6490
    %v6530 = vunpack.c.l.b16 %v6491
    %v6531 = vunpack.c.l.b16 %v6492
    %v6532 = vunpack.c.l.b16 %v6493
    %v6533 = vunpack.c.l.b16 %v6494
    %v6534 = vunpack.c.l.b16 %v6495
    %v6535 = vpack.c.b16 %v6520, %v6519
    %v6536 = vpack.c.b16 %v6522, %v6521
    %v6537 = vpack.c.b16 %v6524, %v6523
    %v6538 = vpack.c.b16 %v6526, %v6525
    %v6539 = vpack.c.b16 %v6528, %v6527
    %v6540 = vpack.c.b16 %v6530, %v6529
    %v6541 = vpack.c.b16 %v6532, %v6531
    %v6542 = vpack.c.b16 %v6534, %v6533
    %6551 = vmatprep.subr.bf16.mxu0 0
    %6552 = vmatpush1.bf16.msra.mxu0 %v6535
    %6553 = vmatprep.subr.bf16.mxu0 0
    %6554 = vmatpush1.bf16.msra.mxu0 %v6536
    %6555 = vmatprep.subr.bf16.mxu0 0
    %6556 = vmatpush1.bf16.msra.mxu0 %v6537
    %6557 = vmatprep.subr.bf16.mxu0 0
    %6558 = vmatpush1.bf16.msra.mxu0 %v6538
    %6559 = vmatprep.subr.bf16.mxu0 0
    %6560 = vmatpush1.bf16.msra.mxu0 %v6539
    %6561 = vmatprep.subr.bf16.mxu0 0
    %6562 = vmatpush1.bf16.msra.mxu0 %v6540
    %6563 = vmatprep.subr.bf16.mxu0 0
    %6564 = vmatpush1.bf16.msra.mxu0 %v6541
    %6565 = vmatprep.subr.bf16.mxu0 0
    %6566 = vmatpush1.bf16.msra.mxu0 %v6542
    %6567 = vmatprep.subr.bf16.mxu0 0
    %6568 = vmatpush1.bf16.msra.mxu0 0
    %6569 = vmatprep.subr.bf16.mxu0 0
    %6570 = vmatpush1.bf16.msra.mxu0 0
    %6571 = vmatprep.subr.bf16.mxu0 0
    %6572 = vmatpush1.bf16.msra.mxu0 0
    %6573 = vmatprep.subr.bf16.mxu0 0
    %6574 = vmatpush1.bf16.msra.mxu0 0
    %6575 = vmatprep.subr.bf16.mxu0 0
    %6576 = vmatpush1.bf16.msra.mxu0 0
    %6577 = vmatprep.subr.bf16.mxu0 0
    %6578 = vmatpush1.bf16.msra.mxu0 0
    %6579 = vmatprep.subr.bf16.mxu0 0
    %6580 = vmatpush1.bf16.msra.mxu0 0
    %6581 = vmatprep.subr.bf16.mxu0 0
    %6582 = vmatpush1.bf16.msra.mxu0 0
    %6583 = vmatprep.mubr.bf16.mxu0 0
    %6584 = vmatmul.mubr.bf16.gmra.mrb[0].mxu0 %v6472
    %v6585 = vpop.f32.mrb[0].mxu0
    %v6586 = vadd.f32 %v6501, %v6585
    %v6587 = vpop.f32.mrb[0].mxu0
    %v6588 = vpop.f32.mrb[0].mxu0
    %v6589 = vadd.f32 %v6501, %v6588
    %v6590 = vpop.f32.mrb[0].mxu0
    %6591 = vmatprep.mubr.bf16.mxu0 0
    %6592 = vmatmul.mubr.bf16.gmra.mrb[0].mxu0 %v6473
    %v6593 = vpop.f32.mrb[0].mxu0
    %v6594 = vadd.f32 %v6501, %v6593
    %v6595 = vpop.f32.mrb[0].mxu0
    %v6596 = vpop.f32.mrb[0].mxu0
    %v6597 = vadd.f32 %v6501, %v6596
    %v6598 = vpop.f32.mrb[0].mxu0
    %6599 = vmatprep.mubr.bf16.mxu0 0
    %6600 = vmatmul.mubr.bf16.gmra.mrb[0].mxu0 %v6474
    %v6601 = vpop.f32.mrb[0].mxu0
    %v6602 = vadd.f32 %v6501, %v6601
    %v6603 = vpop.f32.mrb[0].mxu0
    %v6604 = vpop.f32.mrb[0].mxu0
    %v6605 = vadd.f32 %v6501, %v6604
    %v6606 = vpop.f32.mrb[0].mxu0
    %6607 = vmatprep.mubr.bf16.mxu0 0
    %6608 = vmatmul.mubr.bf16.gmra.mrb[0].mxu0 %v6475
    %v6609 = vpop.f32.mrb[0].mxu0
    %v6610 = vadd.f32 %v6501, %v6609
    %v6611 = vpop.f32.mrb[0].mxu0
    %v6612 = vpop.f32.mrb[0].mxu0
    %v6613 = vadd.f32 %v6501, %v6612
    %v6614 = vpop.f32.mrb[0].mxu0
    %6615 = vmatprep.mubr.bf16.mxu0 0
    %6616 = vmatmul.mubr.bf16.gmra.mrb[0].mxu0 %v6476
    %v6617 = vpop.f32.mrb[0].mxu0
    %v6618 = vadd.f32 %v6501, %v6617
    %v6619 = vpop.f32.mrb[0].mxu0
    %v6620 = vpop.f32.mrb[0].mxu0
    %v6621 = vadd.f32 %v6501, %v6620
    %v6622 = vpop.f32.mrb[0].mxu0
    %6623 = vmatprep.mubr.bf16.mxu0 0
    %6624 = vmatmul.mubr.bf16.gmra.mrb[0].mxu0 %v6477
    %v6625 = vpop.f32.mrb[0].mxu0
    %v6626 = vadd.f32 %v6501, %v6625
    %v6627 = vpop.f32.mrb[0].mxu0
    %v6628 = vpop.f32.mrb[0].mxu0
    %v6629 = vadd.f32 %v6501, %v6628
    %v6630 = vpop.f32.mrb[0].mxu0
    %6631 = vmatprep.mubr.bf16.mxu0 0
    %6632 = vmatmul.mubr.bf16.gmra.mrb[0].mxu0 %v6478
    %v6633 = vpop.f32.mrb[0].mxu0
    %v6634 = vadd.f32 %v6501, %v6633
    %v6635 = vpop.f32.mrb[0].mxu0
    %v6636 = vpop.f32.mrb[0].mxu0
    %v6637 = vadd.f32 %v6501, %v6636
    %v6638 = vpop.f32.mrb[0].mxu0
    %6639 = vmatprep.mubr.bf16.mxu0 0
    %6640 = vmatmul.mubr.bf16.gmra.mrb[0].mxu0 %v6479
    %v6641 = vpop.f32.mrb[0].mxu0
    %v6642 = vadd.f32 %v6501, %v6641
    %v6643 = vpop.f32.mrb[0].mxu0
    %v6644 = vpop.f32.mrb[0].mxu0
    %v6645 = vadd.f32 %v6501, %v6644
    %v6646 = vpop.f32.mrb[0].mxu0
    %6647 = vdwg.mxu0
    %6648 = vst [vmem:[%s13] sm:$0xff] %v6586
    %6649 = vst [vmem:[%s13 + $0x8] sm:$0xff] %v6589
    %6650 = vst [vmem:[%s13 + $0x10] sm:$0xff] %v6594
    %6651 = vst [vmem:[%s13 + $0x18] sm:$0xff] %v6597
    %6652 = vst [vmem:[%s13 + $0x20] sm:$0xff] %v6602
    %6653 = vst [vmem:[%s13 + $0x28] sm:$0xff] %v6605
    %6654 = vst [vmem:[%s13 + $0x30] sm:$0xff] %v6610
    %6655 = vst [vmem:[%s13 + $0x38] sm:$0xff] %v6613
    %6656 = vst [vmem:[%s13 + $0x40] sm:$0xff] %v6618
    %6657 = vst [vmem:[%s13 + $0x48] sm:$0xff] %v6621
    %6658 = vst [vmem:[%s13 + $0x50] sm:$0xff] %v6626
    %6659 = vst [vmem:[%s13 + $0x58] sm:$0xff] %v6629
    %6660 = vst [vmem:[%s13 + $0x60] sm:$0xff] %v6634
    %6661 = vst [vmem:[%s13 + $0x68] sm:$0xff] %v6637
    %6662 = vst [vmem:[%s13 + $0x70] sm:$0xff] %v6642
    %6663 = vst [vmem:[%s13 + $0x78] sm:$0xff] %v6645
    // Predicated region
    $region58: #{policy_net_forward.1} parent=1 // pred_check
      _
    $region59: #{policy_net_forward.1} parent=1 // pred_check_branch
      %6665 = sbr.rel (0) target = $region61
    $region60: #{policy_net_forward.1} parent=1 // pred_region
      _
    $region61: #{policy_net_forward.1} parent=1 // pred_fallthru
      _
    // Predicated region
    $region62: #{policy_net_forward.1} parent=1 // pred_check
      _
    $region63: #{policy_net_forward.1} parent=1 // pred_check_branch
      %6667 = sbr.rel (0) target = $region65
    $region64: #{policy_net_forward.1} parent=1 // pred_region
      _
    $region65: #{policy_net_forward.1} parent=1 // pred_fallthru
      _
    %6668 = vsyncpa [#allocation3], 1

</llo_original>
